<compile_context>
chip_gen: v7x
topology: tpu7x:2x2x1
jax: 0.10.0
libtpu: 0.0.40
codegen_flags: <defaults>
</compile_context>

<pallas_src>
import functools

import jax
import jax.numpy as jnp
from jax.experimental import pallas as pl
from jax.experimental.pallas import tpu as pltpu

LN_EPS = 1e-5


def encoder_layer_kernel(xq_ref, xf_ref, xfT_ref,
                         wq_ref, bq_ref, wk_ref, bk_ref, wv_ref, bv_ref,
                         wo_ref, bo_ref, w1_ref, b1_ref, w2_ref, b2_ref,
                         g1_ref, be1_ref, g2_ref, be2_ref,
                         o_ref,
                         kT_scratch, v_scratch, q_scratch, ctx_scratch,
                         *, num_heads, head_dim):
    nh, hd = num_heads, head_dim
    qt = pl.program_id(1)

    # ---- K/V projections for the FULL sequence, once per batch element ----
    @pl.when(qt == 0)
    def _():
        # K^T = Wk(out,in) @ x^T : (H,H)x(H,S) -> (H,S); lane-dense S, no
        # in-kernel transpose needed.
        kT = jnp.dot(wk_ref[...], xfT_ref[0],
                     preferred_element_type=jnp.float32) + bk_ref[...]
        kT_scratch[...] = kT.astype(jnp.bfloat16)
        # V = x @ Wv(in,out) : (S,H)x(H,H) -> (S,H); lane-dense H.
        v = jnp.dot(xf_ref[0], wv_ref[...],
                    preferred_element_type=jnp.float32) + bv_ref[...]
        v_scratch[...] = v.astype(jnp.bfloat16)

    xq32 = xq_ref[0]                                          # (TQ,H) f32

    # ---- merged-head Q projection (1/sqrt(hd) folded into wq/bq) ----
    q = jnp.dot(xq32.astype(jnp.bfloat16), wq_ref[...],
                preferred_element_type=jnp.float32) + bq_ref[...]
    q_scratch[...] = q.astype(jnp.bfloat16)                   # (TQ,H)

    # ---- per-head attention (static unrolled loop; one head's f32 tile live) ----
    for h in range(nh):
        lo = h * hd
        q_h = q_scratch[:, lo:lo + hd]                        # (TQ,hd) bf16
        kT_h = kT_scratch[lo:lo + hd, :]                      # (hd,S)  bf16
        s = jnp.dot(q_h, kT_h, preferred_element_type=jnp.float32)   # (TQ,S) f32
        m = jnp.max(s, axis=-1, keepdims=True)
        e = jnp.exp((s - m).astype(jnp.bfloat16))             # bf16 EUP exp
        l = jnp.sum(e.astype(jnp.float32), axis=-1, keepdims=True)
        p = e * pl.reciprocal(l, approx=True).astype(jnp.bfloat16)   # (TQ,S) bf16
        v_h = v_scratch[:, lo:lo + hd]                        # (S,hd) bf16
        ctx_h = jnp.dot(p, v_h, preferred_element_type=jnp.float32)  # (TQ,hd)
        ctx_scratch[:, lo:lo + hd] = ctx_h.astype(jnp.bfloat16)

    # ---- output projection: single (TQ,H)x(H,H), full contraction depth ----
    attn = jnp.dot(ctx_scratch[...], wo_ref[...],
                   preferred_element_type=jnp.float32) + bo_ref[...]

    # ---- residual + LayerNorm 1 (f32) ----
    h1 = xq32 + attn
    mu1 = jnp.mean(h1, axis=-1, keepdims=True)
    var1 = jnp.mean((h1 - mu1) ** 2, axis=-1, keepdims=True)
    h1n = (h1 - mu1) * jax.lax.rsqrt(var1 + LN_EPS) * g1_ref[...] + be1_ref[...]

    # ---- FFN: Linear -> ReLU -> Linear (bf16 MXU, f32 accumulate) ----
    f = jnp.dot(h1n.astype(jnp.bfloat16), w1_ref[...],
                preferred_element_type=jnp.float32) + b1_ref[...]
    f = jnp.maximum(f, 0.0)
    f = jnp.dot(f.astype(jnp.bfloat16), w2_ref[...],
                preferred_element_type=jnp.float32) + b2_ref[...]

    # ---- residual + LayerNorm 2 (f32) ----
    h2 = h1n + f
    mu2 = jnp.mean(h2, axis=-1, keepdims=True)
    var2 = jnp.mean((h2 - mu2) ** 2, axis=-1, keepdims=True)
    out = (h2 - mu2) * jax.lax.rsqrt(var2 + LN_EPS) * g2_ref[...] + be2_ref[...]

    o_ref[0] = out.astype(o_ref.dtype)


def pack_params(params, num_heads):
    """One-time weight re-layout / cast (hoisted out of the per-call path)."""
    H = params["wo"].shape[0]
    F = params["w1"].shape[1]
    hd = H // num_heads
    scale = float(hd) ** -0.5
    wqkv, bqkv = params["wqkv"], params["bqkv"]

    wq = (wqkv[:, :H] * scale).astype(jnp.bfloat16)                 # (H,H) in,out
    bq = (bqkv[:H] * scale).reshape(1, H).astype(jnp.float32)
    wk = jnp.transpose(wqkv[:, H:2 * H]).astype(jnp.bfloat16)       # (H,H) out,in
    bk = bqkv[H:2 * H].reshape(H, 1).astype(jnp.float32)            # column bias
    wv = wqkv[:, 2 * H:].astype(jnp.bfloat16)                       # (H,H) in,out
    bv = bqkv[2 * H:].reshape(1, H).astype(jnp.float32)
    wo = params["wo"].astype(jnp.bfloat16)                          # (H,H) in,out
    bo = params["bo"].reshape(1, H).astype(jnp.float32)
    w1 = params["w1"].astype(jnp.bfloat16)                          # (H,F)
    b1 = params["b1"].reshape(1, F).astype(jnp.float32)
    w2 = params["w2"].astype(jnp.bfloat16)                          # (F,H)
    b2 = params["b2"].reshape(1, H).astype(jnp.float32)
    g1 = params["g1"].reshape(1, H).astype(jnp.float32)
    be1 = params["be1"].reshape(1, H).astype(jnp.float32)
    g2 = params["g2"].reshape(1, H).astype(jnp.float32)
    be2 = params["be2"].reshape(1, H).astype(jnp.float32)
    return (wq, bq, wk, bk, wv, bv, wo, bo, w1, b1, w2, b2, g1, be1, g2, be2)


def transformer_encoder_layer(x, packed, *, num_heads, q_tile=256):
    """x: (B, S, H) float32.  packed: output of pack_params()."""
    B, S, H = x.shape
    assert H % num_heads == 0
    hd = H // num_heads
    TQ = min(q_tile, S)
    assert S % TQ == 0, "sequence length must be divisible by the query tile"
    num_q_tiles = S // TQ

    # bf16 full-sequence activations (halves K/V DMA); transposed copy so the
    # K projection produces K^T directly (lane-dense S, no in-kernel transpose).
    x_bf = x.astype(jnp.bfloat16)                 # (B,S,H)
    xT_bf = jnp.swapaxes(x_bf, 1, 2)              # (B,H,S)

    kernel = functools.partial(encoder_layer_kernel,
                               num_heads=num_heads, head_dim=hd)

    # Whole-array VMEM residency for weights (single copy, no double-buffering).
    weight_specs = [pl.BlockSpec(memory_space=pltpu.MemorySpace.VMEM)
                    for _ in packed]

    return pl.pallas_call(
        kernel,
        out_shape=jax.ShapeDtypeStruct((B, S, H), x.dtype),
        grid_spec=pltpu.PrefetchScalarGridSpec(
            num_scalar_prefetch=0,
            grid=(B, num_q_tiles),
            in_specs=[pl.BlockSpec((1, TQ, H), lambda b, qt: (b, qt, 0)),  # query rows (f32)
                      pl.BlockSpec((1, S, H), lambda b, qt: (b, 0, 0)),    # full seq (bf16)
                      pl.BlockSpec((1, H, S), lambda b, qt: (b, 0, 0))]    # full seq^T (bf16)
                     + weight_specs,
            out_specs=pl.BlockSpec((1, TQ, H), lambda b, qt: (b, qt, 0)),
            scratch_shapes=[pltpu.VMEM((H, S), jnp.bfloat16),   # K^T (merged heads)
                            pltpu.VMEM((S, H), jnp.bfloat16),   # V   (merged heads)
                            pltpu.VMEM((TQ, H), jnp.bfloat16),  # Q   (merged heads)
                            pltpu.VMEM((TQ, H), jnp.bfloat16)], # ctx (merged heads)
        ),
        compiler_params=pltpu.CompilerParams(
            dimension_semantics=("parallel", "arbitrary"),
            vmem_limit_bytes=40 * 1024 * 1024),
    )(x, x_bf, xT_bf, *packed)


def reference_forward(x, params, *, num_heads):
    """Pure-JAX f32 reference mirroring the PyTorch forward (dropout = identity)."""
    B, S, H = x.shape
    hd = H // num_heads
    scale = hd ** -0.5

    qkv = x @ params["wqkv"] + params["bqkv"]                     # (B,S,3H)
    qkv = qkv.reshape(B, S, 3, num_heads, hd)
    q, k, v = (jnp.transpose(qkv[:, :, i], (0, 2, 1, 3)) for i in range(3))
    scores = jnp.einsum("bhqd,bhkd->bhqk", q, k) * scale
    attn = jax.nn.softmax(scores, axis=-1)
    out = jnp.einsum("bhqk,bhkd->bhqd", attn, v)
    out = jnp.transpose(out, (0, 2, 1, 3)).reshape(B, S, H)
    out = out @ params["wo"] + params["bo"]

    h1 = x + out
    mu = h1.mean(-1, keepdims=True)
    var = ((h1 - mu) ** 2).mean(-1, keepdims=True)
    h1n = (h1 - mu) / jnp.sqrt(var + LN_EPS) * params["g1"] + params["be1"]

    f = jnp.maximum(h1n @ params["w1"] + params["b1"], 0.0)
    f = f @ params["w2"] + params["b2"]
    h2 = h1n + f
    mu2 = h2.mean(-1, keepdims=True)
    var2 = ((h2 - mu2) ** 2).mean(-1, keepdims=True)
    return (h2 - mu2) / jnp.sqrt(var2 + LN_EPS) * params["g2"] + params["be2"]


def init_params(key, hidden, ff_dim):
    ks = jax.random.split(key, 8)
    s = 0.05
    # Linear weights stored in (in, out) layout (i.e. PyTorch W^T); biases 1-D.
    return {
        "wqkv": jax.random.normal(ks[0], (hidden, 3 * hidden), jnp.float32) * s,
        "bqkv": jax.random.normal(ks[1], (3 * hidden,), jnp.float32) * s,
        "wo":   jax.random.normal(ks[2], (hidden, hidden), jnp.float32) * s,
        "bo":   jax.random.normal(ks[3], (hidden,), jnp.float32) * s,
        "w1":   jax.random.normal(ks[4], (hidden, ff_dim), jnp.float32) * s,
        "b1":   jax.random.normal(ks[5], (ff_dim,), jnp.float32) * s,
        "w2":   jax.random.normal(ks[6], (ff_dim, hidden), jnp.float32) * s,
        "b2":   jax.random.normal(ks[7], (hidden,), jnp.float32) * s,
        "g1":   jnp.ones((hidden,), jnp.float32),
        "be1":  jnp.zeros((hidden,), jnp.float32),
        "g2":   jnp.ones((hidden,), jnp.float32),
        "be2":  jnp.zeros((hidden,), jnp.float32),
    }


if __name__ == "__main__":
    # Small but lane/tile-friendly shapes: H, FF multiples of 128; S exercises
    # two query tiles per batch element (q_tile=128) so the persistent K/V
    # scratch path is covered.
    B, S, H = 2, 256, 128
    NUM_HEADS = 4
    FF_DIM = 256

    key = jax.random.PRNGKey(0)
    kx, kp = jax.random.split(key)
    x = jax.random.normal(kx, (B, S, H), jnp.float32)
    params = init_params(kp, H, FF_DIM)
    packed = pack_params(params, NUM_HEADS)   # one-time weight pre-packing

    out = transformer_encoder_layer(x, packed, num_heads=NUM_HEADS, q_tile=128)
    out = jax.block_until_ready(out)

    ref = reference_forward(x, params, num_heads=NUM_HEADS)
    assert out.shape == (B, S, H)
    # bf16 MXU operands / bf16 softmax exp (vs f32 reference) loosen tolerance.
    max_err = float(jnp.max(jnp.abs(out - ref)))
    assert jnp.allclose(out, ref, atol=5e-2, rtol=5e-2), (
        f"mismatch vs reference, max abs err {max_err}")

    print("KERNEL_OK")
</pallas_src>

<mosaic_0001>
module attributes {stable_mosaic.version = 11 : i64} {
  func.func @encoder_layer_kernel(%arg0: i32, %arg1: i32, %arg2: memref<1x128x128xf32, #tpu.memory_space<vmem>>, %arg3: memref<1x256x128xbf16, #tpu.memory_space<vmem>>, %arg4: memref<1x128x256xbf16, #tpu.memory_space<vmem>>, %arg5: memref<128x128xbf16, #tpu.memory_space<vmem>>, %arg6: memref<1x128xf32, #tpu.memory_space<vmem>>, %arg7: memref<128x128xbf16, #tpu.memory_space<vmem>>, %arg8: memref<128x1xf32, #tpu.memory_space<vmem>>, %arg9: memref<128x128xbf16, #tpu.memory_space<vmem>>, %arg10: memref<1x128xf32, #tpu.memory_space<vmem>>, %arg11: memref<128x128xbf16, #tpu.memory_space<vmem>>, %arg12: memref<1x128xf32, #tpu.memory_space<vmem>>, %arg13: memref<128x256xbf16, #tpu.memory_space<vmem>>, %arg14: memref<1x256xf32, #tpu.memory_space<vmem>>, %arg15: memref<256x128xbf16, #tpu.memory_space<vmem>>, %arg16: memref<1x128xf32, #tpu.memory_space<vmem>>, %arg17: memref<1x128xf32, #tpu.memory_space<vmem>>, %arg18: memref<1x128xf32, #tpu.memory_space<vmem>>, %arg19: memref<1x128xf32, #tpu.memory_space<vmem>>, %arg20: memref<1x128xf32, #tpu.memory_space<vmem>>, %arg21: memref<1x128x128xf32, #tpu.memory_space<vmem>>, %arg22: memref<128x256xbf16, #tpu.memory_space<vmem>>, %arg23: memref<256x128xbf16, #tpu.memory_space<vmem>>, %arg24: memref<128x128xbf16, #tpu.memory_space<vmem>>, %arg25: memref<128x128xbf16, #tpu.memory_space<vmem>>) attributes {dimension_semantics = [#tpu.dimension_semantics<parallel>, #tpu.dimension_semantics<arbitrary>], iteration_bounds = array<i64: 2, 2>, scalar_prefetch = 0 : i64, scratch_operands = 4 : i64, tpu.core_type = #tpu.core_type<tc>, window_params = [{transform_indices = @transform_0, window_bounds = array<i64: 1, 128, 128>}, {transform_indices = @transform_1, window_bounds = array<i64: 1, 256, 128>}, {transform_indices = @transform_2, window_bounds = array<i64: 1, 128, 256>}, {pipeline_mode = #tpu.pipeline_mode<synchronous>, transform_indices = @transform_3, window_bounds = array<i64: 128, 128>}, {pipeline_mode = #tpu.pipeline_mode<synchronous>, transform_indices = @transform_4, window_bounds = array<i64: 1, 128>}, {pipeline_mode = #tpu.pipeline_mode<synchronous>, transform_indices = @transform_5, window_bounds = array<i64: 128, 128>}, {pipeline_mode = #tpu.pipeline_mode<synchronous>, transform_indices = @transform_6, window_bounds = array<i64: 128, 1>}, {pipeline_mode = #tpu.pipeline_mode<synchronous>, transform_indices = @transform_7, window_bounds = array<i64: 128, 128>}, {pipeline_mode = #tpu.pipeline_mode<synchronous>, transform_indices = @transform_8, window_bounds = array<i64: 1, 128>}, {pipeline_mode = #tpu.pipeline_mode<synchronous>, transform_indices = @transform_9, window_bounds = array<i64: 128, 128>}, {pipeline_mode = #tpu.pipeline_mode<synchronous>, transform_indices = @transform_10, window_bounds = array<i64: 1, 128>}, {pipeline_mode = #tpu.pipeline_mode<synchronous>, transform_indices = @transform_11, window_bounds = array<i64: 128, 256>}, {pipeline_mode = #tpu.pipeline_mode<synchronous>, transform_indices = @transform_12, window_bounds = array<i64: 1, 256>}, {pipeline_mode = #tpu.pipeline_mode<synchronous>, transform_indices = @transform_13, window_bounds = array<i64: 256, 128>}, {pipeline_mode = #tpu.pipeline_mode<synchronous>, transform_indices = @transform_14, window_bounds = array<i64: 1, 128>}, {pipeline_mode = #tpu.pipeline_mode<synchronous>, transform_indices = @transform_15, window_bounds = array<i64: 1, 128>}, {pipeline_mode = #tpu.pipeline_mode<synchronous>, transform_indices = @transform_16, window_bounds = array<i64: 1, 128>}, {pipeline_mode = #tpu.pipeline_mode<synchronous>, transform_indices = @transform_17, window_bounds = array<i64: 1, 128>}, {pipeline_mode = #tpu.pipeline_mode<synchronous>, transform_indices = @transform_18, window_bounds = array<i64: 1, 128>}, {transform_indices = @transform_19, window_bounds = array<i64: 1, 128, 128>}]} {
    %c0_i32 = arith.constant 0 : i32
    %0 = arith.cmpi eq, %arg1, %c0_i32 : i32
    %1 = arith.extui %0 : i1 to i32
    %c0_i32_0 = arith.constant 0 : i32
    %2 = arith.cmpi ne, %1, %c0_i32_0 : i32
    scf.if %2 {
      %c0_93 = arith.constant 0 : index
      %c0_94 = arith.constant 0 : index
      %166 = vector.load %arg7[%c0_93, %c0_94] : memref<128x128xbf16, #tpu.memory_space<vmem>>, vector<128x128xbf16>
      %c0_95 = arith.constant 0 : index
      %c0_96 = arith.constant 0 : index
      %c0_97 = arith.constant 0 : index
      %167 = vector.load %arg4[%c0_95, %c0_96, %c0_97] : memref<1x128x256xbf16, #tpu.memory_space<vmem>>, vector<1x128x256xbf16>
      %168 = vector.shape_cast %167 : vector<1x128x256xbf16> to vector<128x256xbf16>
      %cst_98 = arith.constant dense<0.000000e+00> : vector<128x256xf32>
      %169 = tpu.matmul %166, %168, %cst_98 {dimension_numbers = #tpu.dot_dimension_numbers<[1], [0], [0], [1], [0, 0, 1, 1], [], []>} : vector<128x128xbf16>, vector<128x256xbf16>, vector<128x256xf32> -> vector<128x256xf32>
      %c0_99 = arith.constant 0 : index
      %c0_100 = arith.constant 0 : index
      %170 = vector.load %arg8[%c0_99, %c0_100] : memref<128x1xf32, #tpu.memory_space<vmem>>, vector<128x1xf32>
      %171 = vector.broadcast %170 : vector<128x1xf32> to vector<128x256xf32>
      %172 = arith.addf %169, %171 : vector<128x256xf32>
      %173 = arith.truncf %172 : vector<128x256xf32> to vector<128x256xbf16>
      %c0_101 = arith.constant 0 : index
      %c0_102 = arith.constant 0 : index
      %174 = vector.load %arg22[%c0_101, %c0_102] : memref<128x256xbf16, #tpu.memory_space<vmem>>, vector<128x256xbf16>
      tpu.vector_store %arg22[%c0_101, %c0_102], %173 {strides = array<i32>} : memref<128x256xbf16, #tpu.memory_space<vmem>>, vector<128x256xbf16>,
      %c0_103 = arith.constant 0 : index
      %c0_104 = arith.constant 0 : index
      %c0_105 = arith.constant 0 : index
      %175 = vector.load %arg3[%c0_103, %c0_104, %c0_105] : memref<1x256x128xbf16, #tpu.memory_space<vmem>>, vector<1x256x128xbf16>
      %176 = vector.shape_cast %175 : vector<1x256x128xbf16> to vector<256x128xbf16>
      %c0_106 = arith.constant 0 : index
      %c0_107 = arith.constant 0 : index
      %177 = vector.load %arg9[%c0_106, %c0_107] : memref<128x128xbf16, #tpu.memory_space<vmem>>, vector<128x128xbf16>
      %cst_108 = arith.constant dense<0.000000e+00> : vector<256x128xf32>
      %178 = tpu.matmul %176, %177, %cst_108 {dimension_numbers = #tpu.dot_dimension_numbers<[1], [0], [0], [1], [0, 0, 1, 1], [], []>} : vector<256x128xbf16>, vector<128x128xbf16>, vector<256x128xf32> -> vector<256x128xf32>
      %c0_109 = arith.constant 0 : index
      %c0_110 = arith.constant 0 : index
      %179 = vector.load %arg10[%c0_109, %c0_110] : memref<1x128xf32, #tpu.memory_space<vmem>>, vector<1x128xf32>
      %180 = vector.broadcast %179 : vector<1x128xf32> to vector<256x128xf32>
      %181 = arith.addf %178, %180 : vector<256x128xf32>
      %182 = arith.truncf %181 : vector<256x128xf32> to vector<256x128xbf16>
      %c0_111 = arith.constant 0 : index
      %c0_112 = arith.constant 0 : index
      %183 = vector.load %arg23[%c0_111, %c0_112] : memref<256x128xbf16, #tpu.memory_space<vmem>>, vector<256x128xbf16>
      tpu.vector_store %arg23[%c0_111, %c0_112], %182 {strides = array<i32>} : memref<256x128xbf16, #tpu.memory_space<vmem>>, vector<256x128xbf16>,
    } else {
    }
    %c0 = arith.constant 0 : index
    %c0_1 = arith.constant 0 : index
    %c0_2 = arith.constant 0 : index
    %3 = vector.load %arg2[%c0, %c0_1, %c0_2] : memref<1x128x128xf32, #tpu.memory_space<vmem>>, vector<1x128x128xf32>
    %4 = vector.shape_cast %3 : vector<1x128x128xf32> to vector<128x128xf32>
    %5 = arith.truncf %4 : vector<128x128xf32> to vector<128x128xbf16>
    %c0_3 = arith.constant 0 : index
    %c0_4 = arith.constant 0 : index
    %6 = vector.load %arg5[%c0_3, %c0_4] : memref<128x128xbf16, #tpu.memory_space<vmem>>, vector<128x128xbf16>
    %cst = arith.constant dense<0.000000e+00> : vector<128x128xf32>
    %7 = tpu.matmul %5, %6, %cst {dimension_numbers = #tpu.dot_dimension_numbers<[1], [0], [0], [1], [0, 0, 1, 1], [], []>} : vector<128x128xbf16>, vector<128x128xbf16>, vector<128x128xf32> -> vector<128x128xf32>
    %c0_5 = arith.constant 0 : index
    %c0_6 = arith.constant 0 : index
    %8 = vector.load %arg6[%c0_5, %c0_6] : memref<1x128xf32, #tpu.memory_space<vmem>>, vector<1x128xf32>
    %9 = vector.broadcast %8 : vector<1x128xf32> to vector<128x128xf32>
    %10 = arith.addf %7, %9 : vector<128x128xf32>
    %11 = arith.truncf %10 : vector<128x128xf32> to vector<128x128xbf16>
    %c0_7 = arith.constant 0 : index
    %c0_8 = arith.constant 0 : index
    %12 = vector.load %arg24[%c0_7, %c0_8] : memref<128x128xbf16, #tpu.memory_space<vmem>>, vector<128x128xbf16>
    tpu.vector_store %arg24[%c0_7, %c0_8], %11 {strides = array<i32>} : memref<128x128xbf16, #tpu.memory_space<vmem>>, vector<128x128xbf16>,
    %c0_9 = arith.constant 0 : index
    %c0_10 = arith.constant 0 : index
    %13 = vector.load %arg24[%c0_9, %c0_10] : memref<128x128xbf16, #tpu.memory_space<vmem>>, vector<128x32xbf16>
    %c0_11 = arith.constant 0 : index
    %c0_12 = arith.constant 0 : index
    %14 = vector.load %arg22[%c0_11, %c0_12] : memref<128x256xbf16, #tpu.memory_space<vmem>>, vector<32x256xbf16>
    %cst_13 = arith.constant dense<0.000000e+00> : vector<128x256xf32>
    %15 = tpu.matmul %13, %14, %cst_13 {dimension_numbers = #tpu.dot_dimension_numbers<[1], [0], [0], [1], [0, 0, 1, 1], [], []>} : vector<128x32xbf16>, vector<32x256xbf16>, vector<128x256xf32> -> vector<128x256xf32>
    %cst_14 = arith.constant dense<0xFF800000> : vector<128xf32>
    %16 = vector.multi_reduction <maximumf>, %15, %cst_14 [1] : vector<128x256xf32> to vector<128xf32>
    %17 = vector.shape_cast %16 : vector<128xf32> to vector<128x1xf32>
    %18 = vector.broadcast %17 : vector<128x1xf32> to vector<128x256xf32>
    %19 = arith.subf %15, %18 : vector<128x256xf32>
    %20 = arith.truncf %19 : vector<128x256xf32> to vector<128x256xbf16>
    %21 = math.exp %20 : vector<128x256xbf16>
    %22 = arith.extf %21 : vector<128x256xbf16> to vector<128x256xf32>
    %cst_15 = arith.constant dense<0.000000e+00> : vector<128xf32>
    %23 = vector.multi_reduction <add>, %22, %cst_15 [1] : vector<128x256xf32> to vector<128xf32>
    %24 = vector.shape_cast %23 : vector<128xf32> to vector<128x1xf32>
    %25 = tpu.reciprocal %24 {approx = true} : vector<128x1xf32> -> vector<128x1xf32>
    %26 = arith.truncf %25 : vector<128x1xf32> to vector<128x1xbf16>
    %27 = vector.broadcast %26 : vector<128x1xbf16> to vector<128x256xbf16>
    %28 = arith.mulf %21, %27 : vector<128x256xbf16>
    %c0_16 = arith.constant 0 : index
    %c0_17 = arith.constant 0 : index
    %29 = vector.load %arg23[%c0_16, %c0_17] : memref<256x128xbf16, #tpu.memory_space<vmem>>, vector<256x32xbf16>
    %cst_18 = arith.constant dense<0.000000e+00> : vector<128x32xf32>
    %30 = tpu.matmul %28, %29, %cst_18 {dimension_numbers = #tpu.dot_dimension_numbers<[1], [0], [0], [1], [0, 0, 1, 1], [], []>} : vector<128x256xbf16>, vector<256x32xbf16>, vector<128x32xf32> -> vector<128x32xf32>
    %31 = arith.truncf %30 : vector<128x32xf32> to vector<128x32xbf16>
    %c0_19 = arith.constant 0 : index
    %c0_20 = arith.constant 0 : index
    %32 = vector.load %arg25[%c0_19, %c0_20] : memref<128x128xbf16, #tpu.memory_space<vmem>>, vector<128x32xbf16>
    tpu.vector_store %arg25[%c0_19, %c0_20], %31 {strides = array<i32>} : memref<128x128xbf16, #tpu.memory_space<vmem>>, vector<128x32xbf16>,
    %c0_21 = arith.constant 0 : index
    %c32 = arith.constant 32 : index
    %33 = vector.load %arg24[%c0_21, %c32] : memref<128x128xbf16, #tpu.memory_space<vmem>>, vector<128x32xbf16>
    %c32_22 = arith.constant 32 : index
    %c0_23 = arith.constant 0 : index
    %34 = vector.load %arg22[%c32_22, %c0_23] : memref<128x256xbf16, #tpu.memory_space<vmem>>, vector<32x256xbf16>
    %cst_24 = arith.constant dense<0.000000e+00> : vector<128x256xf32>
    %35 = tpu.matmul %33, %34, %cst_24 {dimension_numbers = #tpu.dot_dimension_numbers<[1], [0], [0], [1], [0, 0, 1, 1], [], []>} : vector<128x32xbf16>, vector<32x256xbf16>, vector<128x256xf32> -> vector<128x256xf32>
    %cst_25 = arith.constant dense<0xFF800000> : vector<128xf32>
    %36 = vector.multi_reduction <maximumf>, %35, %cst_25 [1] : vector<128x256xf32> to vector<128xf32>
    %37 = vector.shape_cast %36 : vector<128xf32> to vector<128x1xf32>
    %38 = vector.broadcast %37 : vector<128x1xf32> to vector<128x256xf32>
    %39 = arith.subf %35, %38 : vector<128x256xf32>
    %40 = arith.truncf %39 : vector<128x256xf32> to vector<128x256xbf16>
    %41 = math.exp %40 : vector<128x256xbf16>
    %42 = arith.extf %41 : vector<128x256xbf16> to vector<128x256xf32>
    %cst_26 = arith.constant dense<0.000000e+00> : vector<128xf32>
    %43 = vector.multi_reduction <add>, %42, %cst_26 [1] : vector<128x256xf32> to vector<128xf32>
    %44 = vector.shape_cast %43 : vector<128xf32> to vector<128x1xf32>
    %45 = tpu.reciprocal %44 {approx = true} : vector<128x1xf32> -> vector<128x1xf32>
    %46 = arith.truncf %45 : vector<128x1xf32> to vector<128x1xbf16>
    %47 = vector.broadcast %46 : vector<128x1xbf16> to vector<128x256xbf16>
    %48 = arith.mulf %41, %47 : vector<128x256xbf16>
    %c0_27 = arith.constant 0 : index
    %c32_28 = arith.constant 32 : index
    %49 = vector.load %arg23[%c0_27, %c32_28] : memref<256x128xbf16, #tpu.memory_space<vmem>>, vector<256x32xbf16>
    %cst_29 = arith.constant dense<0.000000e+00> : vector<128x32xf32>
    %50 = tpu.matmul %48, %49, %cst_29 {dimension_numbers = #tpu.dot_dimension_numbers<[1], [0], [0], [1], [0, 0, 1, 1], [], []>} : vector<128x256xbf16>, vector<256x32xbf16>, vector<128x32xf32> -> vector<128x32xf32>
    %51 = arith.truncf %50 : vector<128x32xf32> to vector<128x32xbf16>
    %c0_30 = arith.constant 0 : index
    %c32_31 = arith.constant 32 : index
    %52 = vector.load %arg25[%c0_30, %c32_31] : memref<128x128xbf16, #tpu.memory_space<vmem>>, vector<128x32xbf16>
    tpu.vector_store %arg25[%c0_30, %c32_31], %51 {strides = array<i32>} : memref<128x128xbf16, #tpu.memory_space<vmem>>, vector<128x32xbf16>,
    %c0_32 = arith.constant 0 : index
    %c64 = arith.constant 64 : index
    %53 = vector.load %arg24[%c0_32, %c64] : memref<128x128xbf16, #tpu.memory_space<vmem>>, vector<128x32xbf16>
    %c64_33 = arith.constant 64 : index
    %c0_34 = arith.constant 0 : index
    %54 = vector.load %arg22[%c64_33, %c0_34] : memref<128x256xbf16, #tpu.memory_space<vmem>>, vector<32x256xbf16>
    %cst_35 = arith.constant dense<0.000000e+00> : vector<128x256xf32>
    %55 = tpu.matmul %53, %54, %cst_35 {dimension_numbers = #tpu.dot_dimension_numbers<[1], [0], [0], [1], [0, 0, 1, 1], [], []>} : vector<128x32xbf16>, vector<32x256xbf16>, vector<128x256xf32> -> vector<128x256xf32>
    %cst_36 = arith.constant dense<0xFF800000> : vector<128xf32>
    %56 = vector.multi_reduction <maximumf>, %55, %cst_36 [1] : vector<128x256xf32> to vector<128xf32>
    %57 = vector.shape_cast %56 : vector<128xf32> to vector<128x1xf32>
    %58 = vector.broadcast %57 : vector<128x1xf32> to vector<128x256xf32>
    %59 = arith.subf %55, %58 : vector<128x256xf32>
    %60 = arith.truncf %59 : vector<128x256xf32> to vector<128x256xbf16>
    %61 = math.exp %60 : vector<128x256xbf16>
    %62 = arith.extf %61 : vector<128x256xbf16> to vector<128x256xf32>
    %cst_37 = arith.constant dense<0.000000e+00> : vector<128xf32>
    %63 = vector.multi_reduction <add>, %62, %cst_37 [1] : vector<128x256xf32> to vector<128xf32>
    %64 = vector.shape_cast %63 : vector<128xf32> to vector<128x1xf32>
    %65 = tpu.reciprocal %64 {approx = true} : vector<128x1xf32> -> vector<128x1xf32>
    %66 = arith.truncf %65 : vector<128x1xf32> to vector<128x1xbf16>
    %67 = vector.broadcast %66 : vector<128x1xbf16> to vector<128x256xbf16>
    %68 = arith.mulf %61, %67 : vector<128x256xbf16>
    %c0_38 = arith.constant 0 : index
    %c64_39 = arith.constant 64 : index
    %69 = vector.load %arg23[%c0_38, %c64_39] : memref<256x128xbf16, #tpu.memory_space<vmem>>, vector<256x32xbf16>
    %cst_40 = arith.constant dense<0.000000e+00> : vector<128x32xf32>
    %70 = tpu.matmul %68, %69, %cst_40 {dimension_numbers = #tpu.dot_dimension_numbers<[1], [0], [0], [1], [0, 0, 1, 1], [], []>} : vector<128x256xbf16>, vector<256x32xbf16>, vector<128x32xf32> -> vector<128x32xf32>
    %71 = arith.truncf %70 : vector<128x32xf32> to vector<128x32xbf16>
    %c0_41 = arith.constant 0 : index
    %c64_42 = arith.constant 64 : index
    %72 = vector.load %arg25[%c0_41, %c64_42] : memref<128x128xbf16, #tpu.memory_space<vmem>>, vector<128x32xbf16>
    tpu.vector_store %arg25[%c0_41, %c64_42], %71 {strides = array<i32>} : memref<128x128xbf16, #tpu.memory_space<vmem>>, vector<128x32xbf16>,
    %c0_43 = arith.constant 0 : index
    %c96 = arith.constant 96 : index
    %73 = vector.load %arg24[%c0_43, %c96] : memref<128x128xbf16, #tpu.memory_space<vmem>>, vector<128x32xbf16>
    %c96_44 = arith.constant 96 : index
    %c0_45 = arith.constant 0 : index
    %74 = vector.load %arg22[%c96_44, %c0_45] : memref<128x256xbf16, #tpu.memory_space<vmem>>, vector<32x256xbf16>
    %cst_46 = arith.constant dense<0.000000e+00> : vector<128x256xf32>
    %75 = tpu.matmul %73, %74, %cst_46 {dimension_numbers = #tpu.dot_dimension_numbers<[1], [0], [0], [1], [0, 0, 1, 1], [], []>} : vector<128x32xbf16>, vector<32x256xbf16>, vector<128x256xf32> -> vector<128x256xf32>
    %cst_47 = arith.constant dense<0xFF800000> : vector<128xf32>
    %76 = vector.multi_reduction <maximumf>, %75, %cst_47 [1] : vector<128x256xf32> to vector<128xf32>
    %77 = vector.shape_cast %76 : vector<128xf32> to vector<128x1xf32>
    %78 = vector.broadcast %77 : vector<128x1xf32> to vector<128x256xf32>
    %79 = arith.subf %75, %78 : vector<128x256xf32>
    %80 = arith.truncf %79 : vector<128x256xf32> to vector<128x256xbf16>
    %81 = math.exp %80 : vector<128x256xbf16>
    %82 = arith.extf %81 : vector<128x256xbf16> to vector<128x256xf32>
    %cst_48 = arith.constant dense<0.000000e+00> : vector<128xf32>
    %83 = vector.multi_reduction <add>, %82, %cst_48 [1] : vector<128x256xf32> to vector<128xf32>
    %84 = vector.shape_cast %83 : vector<128xf32> to vector<128x1xf32>
    %85 = tpu.reciprocal %84 {approx = true} : vector<128x1xf32> -> vector<128x1xf32>
    %86 = arith.truncf %85 : vector<128x1xf32> to vector<128x1xbf16>
    %87 = vector.broadcast %86 : vector<128x1xbf16> to vector<128x256xbf16>
    %88 = arith.mulf %81, %87 : vector<128x256xbf16>
    %c0_49 = arith.constant 0 : index
    %c96_50 = arith.constant 96 : index
    %89 = vector.load %arg23[%c0_49, %c96_50] : memref<256x128xbf16, #tpu.memory_space<vmem>>, vector<256x32xbf16>
    %cst_51 = arith.constant dense<0.000000e+00> : vector<128x32xf32>
    %90 = tpu.matmul %88, %89, %cst_51 {dimension_numbers = #tpu.dot_dimension_numbers<[1], [0], [0], [1], [0, 0, 1, 1], [], []>} : vector<128x256xbf16>, vector<256x32xbf16>, vector<128x32xf32> -> vector<128x32xf32>
    %91 = arith.truncf %90 : vector<128x32xf32> to vector<128x32xbf16>
    %c0_52 = arith.constant 0 : index
    %c96_53 = arith.constant 96 : index
    %92 = vector.load %arg25[%c0_52, %c96_53] : memref<128x128xbf16, #tpu.memory_space<vmem>>, vector<128x32xbf16>
    tpu.vector_store %arg25[%c0_52, %c96_53], %91 {strides = array<i32>} : memref<128x128xbf16, #tpu.memory_space<vmem>>, vector<128x32xbf16>,
    %c0_54 = arith.constant 0 : index
    %c0_55 = arith.constant 0 : index
    %93 = vector.load %arg25[%c0_54, %c0_55] : memref<128x128xbf16, #tpu.memory_space<vmem>>, vector<128x128xbf16>
    %c0_56 = arith.constant 0 : index
    %c0_57 = arith.constant 0 : index
    %94 = vector.load %arg11[%c0_56, %c0_57] : memref<128x128xbf16, #tpu.memory_space<vmem>>, vector<128x128xbf16>
    %cst_58 = arith.constant dense<0.000000e+00> : vector<128x128xf32>
    %95 = tpu.matmul %93, %94, %cst_58 {dimension_numbers = #tpu.dot_dimension_numbers<[1], [0], [0], [1], [0, 0, 1, 1], [], []>} : vector<128x128xbf16>, vector<128x128xbf16>, vector<128x128xf32> -> vector<128x128xf32>
    %c0_59 = arith.constant 0 : index
    %c0_60 = arith.constant 0 : index
    %96 = vector.load %arg12[%c0_59, %c0_60] : memref<1x128xf32, #tpu.memory_space<vmem>>, vector<1x128xf32>
    %97 = vector.broadcast %96 : vector<1x128xf32> to vector<128x128xf32>
    %98 = arith.addf %95, %97 : vector<128x128xf32>
    %99 = arith.addf %4, %98 : vector<128x128xf32>
    %cst_61 = arith.constant dense<0.000000e+00> : vector<128xf32>
    %100 = vector.multi_reduction <add>, %99, %cst_61 [1] : vector<128x128xf32> to vector<128xf32>
    %101 = vector.shape_cast %100 : vector<128xf32> to vector<128x1xf32>
    %cst_62 = arith.constant 1.280000e+02 : f32
    %102 = vector.broadcast %cst_62 : f32 to vector<128x1xf32>
    %103 = arith.divf %101, %102 : vector<128x1xf32>
    %104 = vector.broadcast %103 : vector<128x1xf32> to vector<128x128xf32>
    %105 = arith.subf %99, %104 : vector<128x128xf32>
    %106 = arith.mulf %105, %105 : vector<128x128xf32>
    %cst_63 = arith.constant dense<0.000000e+00> : vector<128xf32>
    %107 = vector.multi_reduction <add>, %106, %cst_63 [1] : vector<128x128xf32> to vector<128xf32>
    %108 = vector.shape_cast %107 : vector<128xf32> to vector<128x1xf32>
    %cst_64 = arith.constant 1.280000e+02 : f32
    %109 = vector.broadcast %cst_64 : f32 to vector<128x1xf32>
    %110 = arith.divf %108, %109 : vector<128x1xf32>
    %111 = vector.broadcast %103 : vector<128x1xf32> to vector<128x128xf32>
    %112 = arith.subf %99, %111 : vector<128x128xf32>
    %cst_65 = arith.constant 9.99999974E-6 : f32
    %113 = vector.broadcast %cst_65 : f32 to vector<128x1xf32>
    %114 = arith.addf %110, %113 : vector<128x1xf32>
    %115 = math.rsqrt %114 : vector<128x1xf32>
    %116 = vector.broadcast %115 : vector<128x1xf32> to vector<128x128xf32>
    %117 = arith.mulf %112, %116 : vector<128x128xf32>
    %c0_66 = arith.constant 0 : index
    %c0_67 = arith.constant 0 : index
    %118 = vector.load %arg17[%c0_66, %c0_67] : memref<1x128xf32, #tpu.memory_space<vmem>>, vector<1x128xf32>
    %119 = vector.broadcast %118 : vector<1x128xf32> to vector<128x128xf32>
    %120 = arith.mulf %117, %119 : vector<128x128xf32>
    %c0_68 = arith.constant 0 : index
    %c0_69 = arith.constant 0 : index
    %121 = vector.load %arg18[%c0_68, %c0_69] : memref<1x128xf32, #tpu.memory_space<vmem>>, vector<1x128xf32>
    %122 = vector.broadcast %121 : vector<1x128xf32> to vector<128x128xf32>
    %123 = arith.addf %120, %122 : vector<128x128xf32>
    %124 = arith.truncf %123 : vector<128x128xf32> to vector<128x128xbf16>
    %c0_70 = arith.constant 0 : index
    %c0_71 = arith.constant 0 : index
    %125 = vector.load %arg13[%c0_70, %c0_71] : memref<128x256xbf16, #tpu.memory_space<vmem>>, vector<128x256xbf16>
    %cst_72 = arith.constant dense<0.000000e+00> : vector<128x256xf32>
    %126 = tpu.matmul %124, %125, %cst_72 {dimension_numbers = #tpu.dot_dimension_numbers<[1], [0], [0], [1], [0, 0, 1, 1], [], []>} : vector<128x128xbf16>, vector<128x256xbf16>, vector<128x256xf32> -> vector<128x256xf32>
    %c0_73 = arith.constant 0 : index
    %c0_74 = arith.constant 0 : index
    %127 = vector.load %arg14[%c0_73, %c0_74] : memref<1x256xf32, #tpu.memory_space<vmem>>, vector<1x256xf32>
    %128 = vector.broadcast %127 : vector<1x256xf32> to vector<128x256xf32>
    %129 = arith.addf %126, %128 : vector<128x256xf32>
    %cst_75 = arith.constant 0.000000e+00 : f32
    %130 = vector.broadcast %cst_75 : f32 to vector<128x256xf32>
    %131 = arith.maximumf %129, %130 : vector<128x256xf32>
    %132 = arith.truncf %131 : vector<128x256xf32> to vector<128x256xbf16>
    %c0_76 = arith.constant 0 : index
    %c0_77 = arith.constant 0 : index
    %133 = vector.load %arg15[%c0_76, %c0_77] : memref<256x128xbf16, #tpu.memory_space<vmem>>, vector<256x128xbf16>
    %cst_78 = arith.constant dense<0.000000e+00> : vector<128x128xf32>
    %134 = tpu.matmul %132, %133, %cst_78 {dimension_numbers = #tpu.dot_dimension_numbers<[1], [0], [0], [1], [0, 0, 1, 1], [], []>} : vector<128x256xbf16>, vector<256x128xbf16>, vector<128x128xf32> -> vector<128x128xf32>
    %c0_79 = arith.constant 0 : index
    %c0_80 = arith.constant 0 : index
    %135 = vector.load %arg16[%c0_79, %c0_80] : memref<1x128xf32, #tpu.memory_space<vmem>>, vector<1x128xf32>
    %136 = vector.broadcast %135 : vector<1x128xf32> to vector<128x128xf32>
    %137 = arith.addf %134, %136 : vector<128x128xf32>
    %138 = arith.addf %123, %137 : vector<128x128xf32>
    %cst_81 = arith.constant dense<0.000000e+00> : vector<128xf32>
    %139 = vector.multi_reduction <add>, %138, %cst_81 [1] : vector<128x128xf32> to vector<128xf32>
    %140 = vector.shape_cast %139 : vector<128xf32> to vector<128x1xf32>
    %cst_82 = arith.constant 1.280000e+02 : f32
    %141 = vector.broadcast %cst_82 : f32 to vector<128x1xf32>
    %142 = arith.divf %140, %141 : vector<128x1xf32>
    %143 = vector.broadcast %142 : vector<128x1xf32> to vector<128x128xf32>
    %144 = arith.subf %138, %143 : vector<128x128xf32>
    %145 = arith.mulf %144, %144 : vector<128x128xf32>
    %cst_83 = arith.constant dense<0.000000e+00> : vector<128xf32>
    %146 = vector.multi_reduction <add>, %145, %cst_83 [1] : vector<128x128xf32> to vector<128xf32>
    %147 = vector.shape_cast %146 : vector<128xf32> to vector<128x1xf32>
    %cst_84 = arith.constant 1.280000e+02 : f32
    %148 = vector.broadcast %cst_84 : f32 to vector<128x1xf32>
    %149 = arith.divf %147, %148 : vector<128x1xf32>
    %150 = vector.broadcast %142 : vector<128x1xf32> to vector<128x128xf32>
    %151 = arith.subf %138, %150 : vector<128x128xf32>
    %cst_85 = arith.constant 9.99999974E-6 : f32
    %152 = vector.broadcast %cst_85 : f32 to vector<128x1xf32>
    %153 = arith.addf %149, %152 : vector<128x1xf32>
    %154 = math.rsqrt %153 : vector<128x1xf32>
    %155 = vector.broadcast %154 : vector<128x1xf32> to vector<128x128xf32>
    %156 = arith.mulf %151, %155 : vector<128x128xf32>
    %c0_86 = arith.constant 0 : index
    %c0_87 = arith.constant 0 : index
    %157 = vector.load %arg19[%c0_86, %c0_87] : memref<1x128xf32, #tpu.memory_space<vmem>>, vector<1x128xf32>
    %158 = vector.broadcast %157 : vector<1x128xf32> to vector<128x128xf32>
    %159 = arith.mulf %156, %158 : vector<128x128xf32>
    %c0_88 = arith.constant 0 : index
    %c0_89 = arith.constant 0 : index
    %160 = vector.load %arg20[%c0_88, %c0_89] : memref<1x128xf32, #tpu.memory_space<vmem>>, vector<1x128xf32>
    %161 = vector.broadcast %160 : vector<1x128xf32> to vector<128x128xf32>
    %162 = arith.addf %159, %161 : vector<128x128xf32>
    %c0_90 = arith.constant 0 : index
    %c0_91 = arith.constant 0 : index
    %c0_92 = arith.constant 0 : index
    %163 = vector.load %arg21[%c0_90, %c0_91, %c0_92] : memref<1x128x128xf32, #tpu.memory_space<vmem>>, vector<1x128x128xf32>
    %164 = vector.shape_cast %163 : vector<1x128x128xf32> to vector<128x128xf32>
    %165 = vector.shape_cast %162 : vector<128x128xf32> to vector<1x128x128xf32>
    tpu.vector_store %arg21[%c0_90, %c0_91, %c0_92], %165 {strides = array<i32>} : memref<1x128x128xf32, #tpu.memory_space<vmem>>, vector<1x128x128xf32>,
    return
  }
  func.func @transform_0(%arg0: i32, %arg1: i32) -> (i32, i32, i32) {
    %c0_i32 = arith.constant 0 : i32
    %c0_i32_0 = arith.constant 0 : i32
    return %arg0, %arg1, %c0_i32 : i32, i32, i32
  }
  func.func @transform_1(%arg0: i32, %arg1: i32) -> (i32, i32, i32) {
    %c0_i32 = arith.constant 0 : i32
    %c0_i32_0 = arith.constant 0 : i32
    %c0_i32_1 = arith.constant 0 : i32
    return %arg0, %c0_i32, %c0_i32_0 : i32, i32, i32
  }
  func.func @transform_2(%arg0: i32, %arg1: i32) -> (i32, i32, i32) {
    %c0_i32 = arith.constant 0 : i32
    %c0_i32_0 = arith.constant 0 : i32
    %c0_i32_1 = arith.constant 0 : i32
    return %arg0, %c0_i32, %c0_i32_0 : i32, i32, i32
  }
  func.func @transform_3(%arg0: i32, %arg1: i32) -> (i32, i32) {
    %c0_i32 = arith.constant 0 : i32
    %c0_i32_0 = arith.constant 0 : i32
    %c0_i32_1 = arith.constant 0 : i32
    return %c0_i32, %c0_i32_0 : i32, i32
  }
  func.func @transform_4(%arg0: i32, %arg1: i32) -> (i32, i32) {
    %c0_i32 = arith.constant 0 : i32
    %c0_i32_0 = arith.constant 0 : i32
    %c0_i32_1 = arith.constant 0 : i32
    return %c0_i32, %c0_i32_0 : i32, i32
  }
  func.func @transform_5(%arg0: i32, %arg1: i32) -> (i32, i32) {
    %c0_i32 = arith.constant 0 : i32
    %c0_i32_0 = arith.constant 0 : i32
    %c0_i32_1 = arith.constant 0 : i32
    return %c0_i32, %c0_i32_0 : i32, i32
  }
  func.func @transform_6(%arg0: i32, %arg1: i32) -> (i32, i32) {
    %c0_i32 = arith.constant 0 : i32
    %c0_i32_0 = arith.constant 0 : i32
    %c0_i32_1 = arith.constant 0 : i32
    return %c0_i32, %c0_i32_0 : i32, i32
  }
  func.func @transform_7(%arg0: i32, %arg1: i32) -> (i32, i32) {
    %c0_i32 = arith.constant 0 : i32
    %c0_i32_0 = arith.constant 0 : i32
    %c0_i32_1 = arith.constant 0 : i32
    return %c0_i32, %c0_i32_0 : i32, i32
  }
  func.func @transform_8(%arg0: i32, %arg1: i32) -> (i32, i32) {
    %c0_i32 = arith.constant 0 : i32
    %c0_i32_0 = arith.constant 0 : i32
    %c0_i32_1 = arith.constant 0 : i32
    return %c0_i32, %c0_i32_0 : i32, i32
  }
  func.func @transform_9(%arg0: i32, %arg1: i32) -> (i32, i32) {
    %c0_i32 = arith.constant 0 : i32
    %c0_i32_0 = arith.constant 0 : i32
    %c0_i32_1 = arith.constant 0 : i32
    return %c0_i32, %c0_i32_0 : i32, i32
  }
  func.func @transform_10(%arg0: i32, %arg1: i32) -> (i32, i32) {
    %c0_i32 = arith.constant 0 : i32
    %c0_i32_0 = arith.constant 0 : i32
    %c0_i32_1 = arith.constant 0 : i32
    return %c0_i32, %c0_i32_0 : i32, i32
  }
  func.func @transform_11(%arg0: i32, %arg1: i32) -> (i32, i32) {
    %c0_i32 = arith.constant 0 : i32
    %c0_i32_0 = arith.constant 0 : i32
    %c0_i32_1 = arith.constant 0 : i32
    return %c0_i32, %c0_i32_0 : i32, i32
  }
  func.func @transform_12(%arg0: i32, %arg1: i32) -> (i32, i32) {
    %c0_i32 = arith.constant 0 : i32
    %c0_i32_0 = arith.constant 0 : i32
    %c0_i32_1 = arith.constant 0 : i32
    return %c0_i32, %c0_i32_0 : i32, i32
  }
  func.func @transform_13(%arg0: i32, %arg1: i32) -> (i32, i32) {
    %c0_i32 = arith.constant 0 : i32
    %c0_i32_0 = arith.constant 0 : i32
    %c0_i32_1 = arith.constant 0 : i32
    return %c0_i32, %c0_i32_0 : i32, i32
  }
  func.func @transform_14(%arg0: i32, %arg1: i32) -> (i32, i32) {
    %c0_i32 = arith.constant 0 : i32
    %c0_i32_0 = arith.constant 0 : i32
    %c0_i32_1 = arith.constant 0 : i32
    return %c0_i32, %c0_i32_0 : i32, i32
  }
  func.func @transform_15(%arg0: i32, %arg1: i32) -> (i32, i32) {
    %c0_i32 = arith.constant 0 : i32
    %c0_i32_0 = arith.constant 0 : i32
    %c0_i32_1 = arith.constant 0 : i32
    return %c0_i32, %c0_i32_0 : i32, i32
  }
  func.func @transform_16(%arg0: i32, %arg1: i32) -> (i32, i32) {
    %c0_i32 = arith.constant 0 : i32
    %c0_i32_0 = arith.constant 0 : i32
    %c0_i32_1 = arith.constant 0 : i32
    return %c0_i32, %c0_i32_0 : i32, i32
  }
  func.func @transform_17(%arg0: i32, %arg1: i32) -> (i32, i32) {
    %c0_i32 = arith.constant 0 : i32
    %c0_i32_0 = arith.constant 0 : i32
    %c0_i32_1 = arith.constant 0 : i32
    return %c0_i32, %c0_i32_0 : i32, i32
  }
  func.func @transform_18(%arg0: i32, %arg1: i32) -> (i32, i32) {
    %c0_i32 = arith.constant 0 : i32
    %c0_i32_0 = arith.constant 0 : i32
    %c0_i32_1 = arith.constant 0 : i32
    return %c0_i32, %c0_i32_0 : i32, i32
  }
  func.func @transform_19(%arg0: i32, %arg1: i32) -> (i32, i32, i32) {
    %c0_i32 = arith.constant 0 : i32
    %c0_i32_0 = arith.constant 0 : i32
    return %arg0, %arg1, %c0_i32 : i32, i32, i32
  }
}

</mosaic_0001>

<llo_original>
// kernel: tpu_custom_call.1
$region0: #{tpu_custom_call.1}
  #allocation0 [shape = 'u32[]', space=smem, size = 0x4, offset = 0x4, fixed_abs, tag = 'smem constant byte address 0x4 - core index']
  #allocation1 [shape = 'u32[144,128]{1,0:T(1,128)}', space=vmem, size = 0x12000, scoped, tag = 'internal scratch']
  #allocation2 [shape = 'bf16[128,256]{1,0:T(16,128)(2,1)}', space=vmem, size = 0x10000, scoped, tag = 'scratch operand']
  #allocation3 [shape = 'bf16[256,128]{1,0:T(16,128)(2,1)}', space=vmem, size = 0x10000, scoped, tag = 'scratch operand']
  #allocation4 [shape = 'bf16[128,128]{1,0:T(16,128)(2,1)}', space=vmem, size = 0x8000, scoped, tag = 'scratch operand']
  #allocation5 [shape = 'bf16[128,128]{1,0:T(16,128)(2,1)}', space=vmem, size = 0x8000, scoped, tag = 'scratch operand']
  %s0 = inlined_call_operand.hbm [shape: f32[2,256,128], index: 0, kind: input, shape index: {}]
  %s1 = inlined_call_operand.hbm [shape: bf16[2,256,128], index: 1, kind: input, shape index: {}]
  %s2 = inlined_call_operand.hbm [shape: bf16[2,128,256], index: 2, kind: input, shape index: {}]
  %s3 = inlined_call_operand.hbm [shape: bf16[128,128], index: 3, kind: input, shape index: {}]
  %s4 = inlined_call_operand.vmem [shape: f32[1,128], index: 4, kind: input, shape index: {}]
  %s5 = inlined_call_operand.hbm [shape: bf16[128,128], index: 5, kind: input, shape index: {}]
  %s6 = inlined_call_operand.vmem [shape: f32[128,1], index: 6, kind: input, shape index: {}]
  %s7 = inlined_call_operand.hbm [shape: bf16[128,128], index: 7, kind: input, shape index: {}]
  %s8 = inlined_call_operand.vmem [shape: f32[1,128], index: 8, kind: input, shape index: {}]
  %s9 = inlined_call_operand.hbm [shape: bf16[128,128], index: 9, kind: input, shape index: {}]
  %s10 = inlined_call_operand.vmem [shape: f32[1,128], index: 10, kind: input, shape index: {}]
  %s11 = inlined_call_operand.vmem [shape: bf16[128,256], index: 11, kind: input, shape index: {}]
  %s12 = inlined_call_operand.vmem [shape: f32[1,256], index: 12, kind: input, shape index: {}]
  %s13 = inlined_call_operand.hbm [shape: bf16[256,128], index: 13, kind: input, shape index: {}]
  %s14 = inlined_call_operand.vmem [shape: f32[1,128], index: 14, kind: input, shape index: {}]
  %s15 = inlined_call_operand.vmem [shape: f32[1,128], index: 15, kind: input, shape index: {}]
  %s16 = inlined_call_operand.vmem [shape: f32[1,128], index: 16, kind: input, shape index: {}]
  %s17 = inlined_call_operand.vmem [shape: f32[1,128], index: 17, kind: input, shape index: {}]
  %s18 = inlined_call_operand.vmem [shape: f32[1,128], index: 18, kind: input, shape index: {}]
  %s19 = inlined_call_operand.hbm [shape: f32[2,256,128], index: 19, kind: output, shape index: {}]
  %s20 = sld [smem:[#allocation0]]
  $region145: #{tpu_custom_call.1} parent=0
    _
  %s22 = ssub.s32 1, %s20
  %s23 = scalar_select 0, %s22, %s20
  $region1: #{tpu_custom_call.1} parent=0
    #allocation6 [shape = 'u8[131072]{0}', space=vmem, size = 0x20000, scoped, tag = 'input window, operand 0']
    #allocation7 [shape = 's32[2]{0}', space=sflag, size = 0x8, scoped, tag = 'scoped memory for tpu_custom_call.1']
    #allocation8 [shape = 's32[2]{0}', space=sflag, size = 0x8, scoped, tag = 'scoped memory for tpu_custom_call.1']
    #allocation9 [shape = 'u8[131072]{0}', space=vmem, size = 0x20000, scoped, tag = 'input window, operand 1']
    #allocation10 [shape = 's32[2]{0}', space=sflag, size = 0x8, scoped, tag = 'scoped memory for tpu_custom_call.1']
    #allocation11 [shape = 'u8[131072]{0}', space=vmem, size = 0x20000, scoped, tag = 'input window, operand 2']
    #allocation12 [shape = 'u8[32768]{0}', space=vmem, size = 0x8000, scoped, tag = 'input window, operand 3, single buffered']
    #allocation13 [shape = 's32[1]{0}', space=sflag, size = 0x4, scoped, tag = 'scoped memory for tpu_custom_call.1']
    #allocation14 [shape = 'u8[32768]{0}', space=vmem, size = 0x8000, scoped, tag = 'input window, operand 5, single buffered']
    #allocation15 [shape = 'u8[32768]{0}', space=vmem, size = 0x8000, scoped, tag = 'input window, operand 7, single buffered']
    #allocation16 [shape = 's32[1]{0}', space=sflag, size = 0x4, scoped, tag = 'scoped memory for tpu_custom_call.1']
    #allocation17 [shape = 'u8[32768]{0}', space=vmem, size = 0x8000, scoped, tag = 'input window, operand 9, single buffered']
    #allocation18 [shape = 'u8[65536]{0}', space=vmem, size = 0x10000, scoped, tag = 'input window, operand 13, single buffered']
    #allocation19 [shape = 's32[1]{0}', space=sflag, size = 0x4, scoped, tag = 'scoped memory for tpu_custom_call.1']
    #allocation20 [shape = 'u8[131072]{0}', space=vmem, size = 0x20000, scoped, tag = 'output window, operand 0']
    %24 = vsyncpa [#allocation7], 0
    %s25 = scalar_lea.sflag [#allocation7], 1
    %26 = vsyncpa %s25, 0
    %27 = vsyncpa [#allocation10], 0
    %s28 = scalar_lea.sflag [#allocation10], 1
    %29 = vsyncpa %s28, 0
    %30 = vsyncpa [#allocation13], 0
    %31 = vsyncpa [#allocation16], 0
    %32 = vsyncpa [#allocation19], 0
    %33 = vsyncpa [#allocation8], 0
    %s34 = scalar_lea.sflag [#allocation8], 1
    %35 = vsyncpa %s34, 0
    loop: start=0, step=1, limit=6
    $region2: #{tpu_custom_call.1} parent=1 // loop_pre_header
      _
    $region3: #{tpu_custom_call.1} parent=1 // loop_header
      %s37 = sphi 0, %s41
      %p38 = scmp.ge.s32.totalorder %s37, 6
      %s44 = sphi 0, %s56
      %s45 = sphi 0, %s52
      %s46 = sphi 0, %s44
      %s47 = sphi 0, %s45
      %s48 = sphi 0, %s46
      %s49 = sphi 0, %s47
      %s61 = sphi 0, %s63
      %s64 = sphi 0, %s61
      %s65 = sphi 0, %s64
      %s81 = sphi 0, %s65
      %s87 = sphi 0, %s89
      %s90 = sphi 0, %s87
      %s91 = sphi 0, %s90
      %s107 = sphi 0, %s91
      %s113 = sphi 0, %s115
      %s116 = sphi 0, %s113
      %s117 = sphi 0, %s116
      %s133 = sphi 0, %s117
      %s137 = sphi 0, %s137
      %s139 = sphi 0, %s137
      %s140 = sphi 0, %s139
      %s154 = sphi 0, %s140
      %s158 = sphi 0, %s158
      %s160 = sphi 0, %s158
      %s161 = sphi 0, %s160
      %s175 = sphi 0, %s161
      %s179 = sphi 0, %s179
      %s181 = sphi 0, %s179
      %s182 = sphi 0, %s181
      %s196 = sphi 0, %s182
      %s200 = sphi 0, %s200
      %s202 = sphi 0, %s200
      %s203 = sphi 0, %s202
      %s217 = sphi 0, %s203
      %s221 = sphi 0, %s221
      %s223 = sphi 0, %s221
      %s224 = sphi 0, %s223
      %s238 = sphi 0, %s224
      %s242 = sphi 0, %s242
      %s244 = sphi 0, %s242
      %s245 = sphi 0, %s244
      %s259 = sphi 0, %s245
      %s263 = sphi 0, %s263
      %s265 = sphi 0, %s263
      %s266 = sphi 0, %s265
      %s280 = sphi 0, %s266
      %s284 = sphi 0, %s284
      %s286 = sphi 0, %s284
      %s287 = sphi 0, %s286
      %s301 = sphi 0, %s287
      %s305 = sphi 0, %s305
      %s307 = sphi 0, %s305
      %s308 = sphi 0, %s307
      %s322 = sphi 0, %s308
      %s326 = sphi 0, %s326
      %s328 = sphi 0, %s326
      %s329 = sphi 0, %s328
      %s343 = sphi 0, %s329
      %s347 = sphi 0, %s347
      %s349 = sphi 0, %s347
      %s350 = sphi 0, %s349
      %s364 = sphi 0, %s350
      %s368 = sphi 0, %s368
      %s370 = sphi 0, %s368
      %s371 = sphi 0, %s370
      %s385 = sphi 0, %s371
      %s389 = sphi 0, %s389
      %s391 = sphi 0, %s389
      %s392 = sphi 0, %s391
      %s406 = sphi 0, %s392
      %s410 = sphi 0, %s410
      %s412 = sphi 0, %s410
      %s413 = sphi 0, %s412
      %s427 = sphi 0, %s413
      %s431 = sphi 0, %s431
      %s433 = sphi 0, %s431
      %s434 = sphi 0, %s433
      %s448 = sphi 0, %s434
      %s452 = sphi 0, %s452
      %s454 = sphi 0, %s452
      %s455 = sphi 0, %s454
      %s469 = sphi 0, %s455
      %s477 = sphi 0, %s479
      %s480 = sphi 0, %s477
      %s481 = sphi 0, %s480
      %s497 = sphi 0, %s481
    $region4: #{tpu_custom_call.1} parent=1 // loop_header_branch
      %40 = sbr.rel (%p38) target = $region8
    $region5: #{tpu_custom_call.1} parent=1 // loop_body
      %s42 = ssub.s32 %s37, 1
      %s43 = ssub.s32 %s37, 2
      %s50 = sadd.s32 1, %s45
      %p51 = scmp.ge.s32.totalorder %s50, 2
      %s52 = scalar_select %p51, 0, %s50
      %s53 = sadd.s32 1, %s44
      %s54 = scalar_select %p51, %s53, %s44
      %p55 = scmp.ge.s32.totalorder %s54, 2
      %s56 = scalar_select %p55, 0, %s54
      %s57 = ssub.s32 %s44, %s56
      %s58 = ssub.s32 %s45, %s52
      %s59 = sor.u32 %s57, %s58
      %p60 = scmp.eq.s32.totalorder %s59, 0
      %s62 = sadd.s32 %s61, 1
      %s63 = scalar_select %p60, %s61, %s62
      %p66 = pneg %p60
      %p67 = scmp.eq.s32.totalorder %s37, 3
      %p68 = por %p66, %p67
      %p69 = scmp.ne.s32.totalorder %s61, %s64
      %p70 = scmp.eq.s32.totalorder %s37, 0
      %p71 = por %p69, %p70
      %p72 = scmp.ne.s32.totalorder %s61, %s64
      %p73 = scmp.eq.s32.totalorder %s42, 3
      %p74 = por %p72, %p73
      %p75 = scmp.ne.s32.totalorder %s64, %s65
      %p76 = scmp.eq.s32.totalorder %s42, 0
      %p77 = por %p75, %p76
      %p78 = scmp.ne.s32.totalorder %s64, %s65
      %p79 = scmp.eq.s32.totalorder %s43, 3
      %p80 = por %p78, %p79
      %p82 = scmp.ne.s32.totalorder %s65, %s81
      %p83 = scmp.eq.s32.totalorder %s43, 0
      %p84 = por %p82, %p83
      %s85 = ssub.s32 %s44, %s56
      %p86 = scmp.eq.s32.totalorder %s85, 0
      %s88 = sadd.s32 %s87, 1
      %s89 = scalar_select %p86, %s87, %s88
      %p92 = pneg %p86
      %p93 = scmp.eq.s32.totalorder %s37, 3
      %p94 = por %p92, %p93
      %p95 = scmp.ne.s32.totalorder %s87, %s90
      %p96 = scmp.eq.s32.totalorder %s37, 0
      %p97 = por %p95, %p96
      %p98 = scmp.ne.s32.totalorder %s87, %s90
      %p99 = scmp.eq.s32.totalorder %s42, 3
      %p100 = por %p98, %p99
      %p101 = scmp.ne.s32.totalorder %s90, %s91
      %p102 = scmp.eq.s32.totalorder %s42, 0
      %p103 = por %p101, %p102
      %p104 = scmp.ne.s32.totalorder %s90, %s91
      %p105 = scmp.eq.s32.totalorder %s43, 3
      %p106 = por %p104, %p105
      %p108 = scmp.ne.s32.totalorder %s91, %s107
      %p109 = scmp.eq.s32.totalorder %s43, 0
      %p110 = por %p108, %p109
      %s111 = ssub.s32 %s44, %s56
      %p112 = scmp.eq.s32.totalorder %s111, 0
      %s114 = sadd.s32 %s113, 1
      %s115 = scalar_select %p112, %s113, %s114
      %p118 = pneg %p112
      %p119 = scmp.eq.s32.totalorder %s37, 3
      %p120 = por %p118, %p119
      %p121 = scmp.ne.s32.totalorder %s113, %s116
      %p122 = scmp.eq.s32.totalorder %s37, 0
      %p123 = por %p121, %p122
      %p124 = scmp.ne.s32.totalorder %s113, %s116
      %p125 = scmp.eq.s32.totalorder %s42, 3
      %p126 = por %p124, %p125
      %p127 = scmp.ne.s32.totalorder %s116, %s117
      %p128 = scmp.eq.s32.totalorder %s42, 0
      %p129 = por %p127, %p128
      %p130 = scmp.ne.s32.totalorder %s116, %s117
      %p131 = scmp.eq.s32.totalorder %s43, 3
      %p132 = por %p130, %p131
      %p134 = scmp.ne.s32.totalorder %s117, %s133
      %p135 = scmp.eq.s32.totalorder %s43, 0
      %p136 = por %p134, %p135
      %s138 = sadd.s32 %s137, 1
      %p141 = scmp.eq.s32.totalorder %s37, 3
      %p142 = scmp.ne.s32.totalorder %s137, %s139
      %p143 = scmp.eq.s32.totalorder %s37, 0
      %p144 = por %p142, %p143
      %p145 = scmp.ne.s32.totalorder %s137, %s139
      %p146 = scmp.eq.s32.totalorder %s42, 3
      %p147 = por %p145, %p146
      %p148 = scmp.ne.s32.totalorder %s139, %s140
      %p149 = scmp.eq.s32.totalorder %s42, 0
      %p150 = por %p148, %p149
      %p151 = scmp.ne.s32.totalorder %s139, %s140
      %p152 = scmp.eq.s32.totalorder %s43, 3
      %p153 = por %p151, %p152
      %p155 = scmp.ne.s32.totalorder %s140, %s154
      %p156 = scmp.eq.s32.totalorder %s43, 0
      %p157 = por %p155, %p156
      %s159 = sadd.s32 %s158, 1
      %p162 = scmp.eq.s32.totalorder %s37, 3
      %p163 = scmp.ne.s32.totalorder %s158, %s160
      %p164 = scmp.eq.s32.totalorder %s37, 0
      %p165 = por %p163, %p164
      %p166 = scmp.ne.s32.totalorder %s158, %s160
      %p167 = scmp.eq.s32.totalorder %s42, 3
      %p168 = por %p166, %p167
      %p169 = scmp.ne.s32.totalorder %s160, %s161
      %p170 = scmp.eq.s32.totalorder %s42, 0
      %p171 = por %p169, %p170
      %p172 = scmp.ne.s32.totalorder %s160, %s161
      %p173 = scmp.eq.s32.totalorder %s43, 3
      %p174 = por %p172, %p173
      %p176 = scmp.ne.s32.totalorder %s161, %s175
      %p177 = scmp.eq.s32.totalorder %s43, 0
      %p178 = por %p176, %p177
      %s180 = sadd.s32 %s179, 1
      %p183 = scmp.eq.s32.totalorder %s37, 3
      %p184 = scmp.ne.s32.totalorder %s179, %s181
      %p185 = scmp.eq.s32.totalorder %s37, 0
      %p186 = por %p184, %p185
      %p187 = scmp.ne.s32.totalorder %s179, %s181
      %p188 = scmp.eq.s32.totalorder %s42, 3
      %p189 = por %p187, %p188
      %p190 = scmp.ne.s32.totalorder %s181, %s182
      %p191 = scmp.eq.s32.totalorder %s42, 0
      %p192 = por %p190, %p191
      %p193 = scmp.ne.s32.totalorder %s181, %s182
      %p194 = scmp.eq.s32.totalorder %s43, 3
      %p195 = por %p193, %p194
      %p197 = scmp.ne.s32.totalorder %s182, %s196
      %p198 = scmp.eq.s32.totalorder %s43, 0
      %p199 = por %p197, %p198
      %s201 = sadd.s32 %s200, 1
      %p204 = scmp.eq.s32.totalorder %s37, 3
      %p205 = scmp.ne.s32.totalorder %s200, %s202
      %p206 = scmp.eq.s32.totalorder %s37, 0
      %p207 = por %p205, %p206
      %p208 = scmp.ne.s32.totalorder %s200, %s202
      %p209 = scmp.eq.s32.totalorder %s42, 3
      %p210 = por %p208, %p209
      %p211 = scmp.ne.s32.totalorder %s202, %s203
      %p212 = scmp.eq.s32.totalorder %s42, 0
      %p213 = por %p211, %p212
      %p214 = scmp.ne.s32.totalorder %s202, %s203
      %p215 = scmp.eq.s32.totalorder %s43, 3
      %p216 = por %p214, %p215
      %p218 = scmp.ne.s32.totalorder %s203, %s217
      %p219 = scmp.eq.s32.totalorder %s43, 0
      %p220 = por %p218, %p219
      %s222 = sadd.s32 %s221, 1
      %p225 = scmp.eq.s32.totalorder %s37, 3
      %p226 = scmp.ne.s32.totalorder %s221, %s223
      %p227 = scmp.eq.s32.totalorder %s37, 0
      %p228 = por %p226, %p227
      %p229 = scmp.ne.s32.totalorder %s221, %s223
      %p230 = scmp.eq.s32.totalorder %s42, 3
      %p231 = por %p229, %p230
      %p232 = scmp.ne.s32.totalorder %s223, %s224
      %p233 = scmp.eq.s32.totalorder %s42, 0
      %p234 = por %p232, %p233
      %p235 = scmp.ne.s32.totalorder %s223, %s224
      %p236 = scmp.eq.s32.totalorder %s43, 3
      %p237 = por %p235, %p236
      %p239 = scmp.ne.s32.totalorder %s224, %s238
      %p240 = scmp.eq.s32.totalorder %s43, 0
      %p241 = por %p239, %p240
      %s243 = sadd.s32 %s242, 1
      %p246 = scmp.eq.s32.totalorder %s37, 3
      %p247 = scmp.ne.s32.totalorder %s242, %s244
      %p248 = scmp.eq.s32.totalorder %s37, 0
      %p249 = por %p247, %p248
      %p250 = scmp.ne.s32.totalorder %s242, %s244
      %p251 = scmp.eq.s32.totalorder %s42, 3
      %p252 = por %p250, %p251
      %p253 = scmp.ne.s32.totalorder %s244, %s245
      %p254 = scmp.eq.s32.totalorder %s42, 0
      %p255 = por %p253, %p254
      %p256 = scmp.ne.s32.totalorder %s244, %s245
      %p257 = scmp.eq.s32.totalorder %s43, 3
      %p258 = por %p256, %p257
      %p260 = scmp.ne.s32.totalorder %s245, %s259
      %p261 = scmp.eq.s32.totalorder %s43, 0
      %p262 = por %p260, %p261
      %s264 = sadd.s32 %s263, 1
      %p267 = scmp.eq.s32.totalorder %s37, 3
      %p268 = scmp.ne.s32.totalorder %s263, %s265
      %p269 = scmp.eq.s32.totalorder %s37, 0
      %p270 = por %p268, %p269
      %p271 = scmp.ne.s32.totalorder %s263, %s265
      %p272 = scmp.eq.s32.totalorder %s42, 3
      %p273 = por %p271, %p272
      %p274 = scmp.ne.s32.totalorder %s265, %s266
      %p275 = scmp.eq.s32.totalorder %s42, 0
      %p276 = por %p274, %p275
      %p277 = scmp.ne.s32.totalorder %s265, %s266
      %p278 = scmp.eq.s32.totalorder %s43, 3
      %p279 = por %p277, %p278
      %p281 = scmp.ne.s32.totalorder %s266, %s280
      %p282 = scmp.eq.s32.totalorder %s43, 0
      %p283 = por %p281, %p282
      %s285 = sadd.s32 %s284, 1
      %p288 = scmp.eq.s32.totalorder %s37, 3
      %p289 = scmp.ne.s32.totalorder %s284, %s286
      %p290 = scmp.eq.s32.totalorder %s37, 0
      %p291 = por %p289, %p290
      %p292 = scmp.ne.s32.totalorder %s284, %s286
      %p293 = scmp.eq.s32.totalorder %s42, 3
      %p294 = por %p292, %p293
      %p295 = scmp.ne.s32.totalorder %s286, %s287
      %p296 = scmp.eq.s32.totalorder %s42, 0
      %p297 = por %p295, %p296
      %p298 = scmp.ne.s32.totalorder %s286, %s287
      %p299 = scmp.eq.s32.totalorder %s43, 3
      %p300 = por %p298, %p299
      %p302 = scmp.ne.s32.totalorder %s287, %s301
      %p303 = scmp.eq.s32.totalorder %s43, 0
      %p304 = por %p302, %p303
      %s306 = sadd.s32 %s305, 1
      %p309 = scmp.eq.s32.totalorder %s37, 3
      %p310 = scmp.ne.s32.totalorder %s305, %s307
      %p311 = scmp.eq.s32.totalorder %s37, 0
      %p312 = por %p310, %p311
      %p313 = scmp.ne.s32.totalorder %s305, %s307
      %p314 = scmp.eq.s32.totalorder %s42, 3
      %p315 = por %p313, %p314
      %p316 = scmp.ne.s32.totalorder %s307, %s308
      %p317 = scmp.eq.s32.totalorder %s42, 0
      %p318 = por %p316, %p317
      %p319 = scmp.ne.s32.totalorder %s307, %s308
      %p320 = scmp.eq.s32.totalorder %s43, 3
      %p321 = por %p319, %p320
      %p323 = scmp.ne.s32.totalorder %s308, %s322
      %p324 = scmp.eq.s32.totalorder %s43, 0
      %p325 = por %p323, %p324
      %s327 = sadd.s32 %s326, 1
      %p330 = scmp.eq.s32.totalorder %s37, 3
      %p331 = scmp.ne.s32.totalorder %s326, %s328
      %p332 = scmp.eq.s32.totalorder %s37, 0
      %p333 = por %p331, %p332
      %p334 = scmp.ne.s32.totalorder %s326, %s328
      %p335 = scmp.eq.s32.totalorder %s42, 3
      %p336 = por %p334, %p335
      %p337 = scmp.ne.s32.totalorder %s328, %s329
      %p338 = scmp.eq.s32.totalorder %s42, 0
      %p339 = por %p337, %p338
      %p340 = scmp.ne.s32.totalorder %s328, %s329
      %p341 = scmp.eq.s32.totalorder %s43, 3
      %p342 = por %p340, %p341
      %p344 = scmp.ne.s32.totalorder %s329, %s343
      %p345 = scmp.eq.s32.totalorder %s43, 0
      %p346 = por %p344, %p345
      %s348 = sadd.s32 %s347, 1
      %p351 = scmp.eq.s32.totalorder %s37, 3
      %p352 = scmp.ne.s32.totalorder %s347, %s349
      %p353 = scmp.eq.s32.totalorder %s37, 0
      %p354 = por %p352, %p353
      %p355 = scmp.ne.s32.totalorder %s347, %s349
      %p356 = scmp.eq.s32.totalorder %s42, 3
      %p357 = por %p355, %p356
      %p358 = scmp.ne.s32.totalorder %s349, %s350
      %p359 = scmp.eq.s32.totalorder %s42, 0
      %p360 = por %p358, %p359
      %p361 = scmp.ne.s32.totalorder %s349, %s350
      %p362 = scmp.eq.s32.totalorder %s43, 3
      %p363 = por %p361, %p362
      %p365 = scmp.ne.s32.totalorder %s350, %s364
      %p366 = scmp.eq.s32.totalorder %s43, 0
      %p367 = por %p365, %p366
      %s369 = sadd.s32 %s368, 1
      %p372 = scmp.eq.s32.totalorder %s37, 3
      %p373 = scmp.ne.s32.totalorder %s368, %s370
      %p374 = scmp.eq.s32.totalorder %s37, 0
      %p375 = por %p373, %p374
      %p376 = scmp.ne.s32.totalorder %s368, %s370
      %p377 = scmp.eq.s32.totalorder %s42, 3
      %p378 = por %p376, %p377
      %p379 = scmp.ne.s32.totalorder %s370, %s371
      %p380 = scmp.eq.s32.totalorder %s42, 0
      %p381 = por %p379, %p380
      %p382 = scmp.ne.s32.totalorder %s370, %s371
      %p383 = scmp.eq.s32.totalorder %s43, 3
      %p384 = por %p382, %p383
      %p386 = scmp.ne.s32.totalorder %s371, %s385
      %p387 = scmp.eq.s32.totalorder %s43, 0
      %p388 = por %p386, %p387
      %s390 = sadd.s32 %s389, 1
      %p393 = scmp.eq.s32.totalorder %s37, 3
      %p394 = scmp.ne.s32.totalorder %s389, %s391
      %p395 = scmp.eq.s32.totalorder %s37, 0
      %p396 = por %p394, %p395
      %p397 = scmp.ne.s32.totalorder %s389, %s391
      %p398 = scmp.eq.s32.totalorder %s42, 3
      %p399 = por %p397, %p398
      %p400 = scmp.ne.s32.totalorder %s391, %s392
      %p401 = scmp.eq.s32.totalorder %s42, 0
      %p402 = por %p400, %p401
      %p403 = scmp.ne.s32.totalorder %s391, %s392
      %p404 = scmp.eq.s32.totalorder %s43, 3
      %p405 = por %p403, %p404
      %p407 = scmp.ne.s32.totalorder %s392, %s406
      %p408 = scmp.eq.s32.totalorder %s43, 0
      %p409 = por %p407, %p408
      %s411 = sadd.s32 %s410, 1
      %p414 = scmp.eq.s32.totalorder %s37, 3
      %p415 = scmp.ne.s32.totalorder %s410, %s412
      %p416 = scmp.eq.s32.totalorder %s37, 0
      %p417 = por %p415, %p416
      %p418 = scmp.ne.s32.totalorder %s410, %s412
      %p419 = scmp.eq.s32.totalorder %s42, 3
      %p420 = por %p418, %p419
      %p421 = scmp.ne.s32.totalorder %s412, %s413
      %p422 = scmp.eq.s32.totalorder %s42, 0
      %p423 = por %p421, %p422
      %p424 = scmp.ne.s32.totalorder %s412, %s413
      %p425 = scmp.eq.s32.totalorder %s43, 3
      %p426 = por %p424, %p425
      %p428 = scmp.ne.s32.totalorder %s413, %s427
      %p429 = scmp.eq.s32.totalorder %s43, 0
      %p430 = por %p428, %p429
      %s432 = sadd.s32 %s431, 1
      %p435 = scmp.eq.s32.totalorder %s37, 3
      %p436 = scmp.ne.s32.totalorder %s431, %s433
      %p437 = scmp.eq.s32.totalorder %s37, 0
      %p438 = por %p436, %p437
      %p439 = scmp.ne.s32.totalorder %s431, %s433
      %p440 = scmp.eq.s32.totalorder %s42, 3
      %p441 = por %p439, %p440
      %p442 = scmp.ne.s32.totalorder %s433, %s434
      %p443 = scmp.eq.s32.totalorder %s42, 0
      %p444 = por %p442, %p443
      %p445 = scmp.ne.s32.totalorder %s433, %s434
      %p446 = scmp.eq.s32.totalorder %s43, 3
      %p447 = por %p445, %p446
      %p449 = scmp.ne.s32.totalorder %s434, %s448
      %p450 = scmp.eq.s32.totalorder %s43, 0
      %p451 = por %p449, %p450
      %s453 = sadd.s32 %s452, 1
      %p456 = scmp.eq.s32.totalorder %s37, 3
      %p457 = scmp.ne.s32.totalorder %s452, %s454
      %p458 = scmp.eq.s32.totalorder %s37, 0
      %p459 = por %p457, %p458
      %p460 = scmp.ne.s32.totalorder %s452, %s454
      %p461 = scmp.eq.s32.totalorder %s42, 3
      %p462 = por %p460, %p461
      %p463 = scmp.ne.s32.totalorder %s454, %s455
      %p464 = scmp.eq.s32.totalorder %s42, 0
      %p465 = por %p463, %p464
      %p466 = scmp.ne.s32.totalorder %s454, %s455
      %p467 = scmp.eq.s32.totalorder %s43, 3
      %p468 = por %p466, %p467
      %p470 = scmp.ne.s32.totalorder %s455, %s469
      %p471 = scmp.eq.s32.totalorder %s43, 0
      %p472 = por %p470, %p471
      %s473 = ssub.s32 %s44, %s56
      %s474 = ssub.s32 %s45, %s52
      %s475 = sor.u32 %s473, %s474
      %p476 = scmp.eq.s32.totalorder %s475, 0
      %s478 = sadd.s32 %s477, 1
      %s479 = scalar_select %p476, %s477, %s478
      %p482 = pneg %p476
      %p483 = scmp.eq.s32.totalorder %s37, 3
      %p484 = por %p482, %p483
      %p485 = scmp.ne.s32.totalorder %s477, %s480
      %p486 = scmp.eq.s32.totalorder %s37, 0
      %p487 = por %p485, %p486
      %p488 = scmp.ne.s32.totalorder %s477, %s480
      %p489 = scmp.eq.s32.totalorder %s42, 3
      %p490 = por %p488, %p489
      %p491 = scmp.ne.s32.totalorder %s480, %s481
      %p492 = scmp.eq.s32.totalorder %s42, 0
      %p493 = por %p491, %p492
      %p494 = scmp.ne.s32.totalorder %s480, %s481
      %p495 = scmp.eq.s32.totalorder %s43, 3
      %p496 = por %p494, %p495
      %p498 = scmp.ne.s32.totalorder %s481, %s497
      %p499 = scmp.eq.s32.totalorder %s43, 0
      %p500 = por %p498, %p499
      %p501 = scmp.le.s32.totalorder 1, %s37
      %p502 = scmp.lt.s32.totalorder %s37, 5
      %p503 = pnand %p501, %p502
      %p504 = pneg %p503
      // Predicated region
      $region9: #{tpu_custom_call.1} parent=5 // pred_check
        _
      $region10: #{tpu_custom_call.1} parent=5 // pred_check_branch
        %506 = sbr.rel (%p503) target = $region12
      $region11: #{tpu_custom_call.1} parent=5 // pred_region
        %s507 = ssub.s32 %s37, 1
        // Predicated region
        $region13: #{tpu_custom_call.1} parent=11 // pred_check
          %p508 = pneg %p150
        $region14: #{tpu_custom_call.1} parent=11 // pred_check_branch
          %510 = sbr.rel (%p508) target = $region16
        $region15: #{tpu_custom_call.1} parent=11 // pred_region
          %s512 = ssub.s32 1024, 1024
          %513 = vsyncadd [#allocation13], %s512
          %s514 = sshll.u32 [#allocation12], 4
          %s515 = int_to_ptr.vmem [resolvable:$true] %s514
          %520 = dma.hbm_to_vmem [thread:$0]  %s3, 1024, %s515, [#allocation13], 64, 64, 4
        $region16: #{tpu_custom_call.1} parent=11 // pred_fallthru
          _
        // Predicated region
        $region17: #{tpu_custom_call.1} parent=11 // pred_check
          %p521 = pneg %p171
        $region18: #{tpu_custom_call.1} parent=11 // pred_check_branch
          %523 = sbr.rel (%p521) target = $region20
        $region19: #{tpu_custom_call.1} parent=11 // pred_region
          _
        $region20: #{tpu_custom_call.1} parent=11 // pred_fallthru
          _
        // Predicated region
        $region21: #{tpu_custom_call.1} parent=11 // pred_check
          %p524 = pneg %p192
        $region22: #{tpu_custom_call.1} parent=11 // pred_check_branch
          %526 = sbr.rel (%p524) target = $region24
        $region23: #{tpu_custom_call.1} parent=11 // pred_region
          %s528 = ssub.s32 1024, 1024
          %529 = vsyncadd [#allocation13], %s528
          %s530 = sshll.u32 [#allocation14], 4
          %s531 = int_to_ptr.vmem [resolvable:$true] %s530
          %536 = dma.hbm_to_vmem [thread:$0]  %s5, 1024, %s531, [#allocation13], 64, 64, 4
        $region24: #{tpu_custom_call.1} parent=11 // pred_fallthru
          _
        // Predicated region
        $region25: #{tpu_custom_call.1} parent=11 // pred_check
          %p537 = pneg %p213
        $region26: #{tpu_custom_call.1} parent=11 // pred_check_branch
          %539 = sbr.rel (%p537) target = $region28
        $region27: #{tpu_custom_call.1} parent=11 // pred_region
          _
        $region28: #{tpu_custom_call.1} parent=11 // pred_fallthru
          _
        // Predicated region
        $region29: #{tpu_custom_call.1} parent=11 // pred_check
          %p540 = pneg %p234
        $region30: #{tpu_custom_call.1} parent=11 // pred_check_branch
          %542 = sbr.rel (%p540) target = $region32
        $region31: #{tpu_custom_call.1} parent=11 // pred_region
          %s544 = ssub.s32 1024, 1024
          %545 = vsyncadd [#allocation16], %s544
          %s546 = sshll.u32 [#allocation15], 4
          %s547 = int_to_ptr.vmem [resolvable:$true] %s546
          %552 = dma.hbm_to_vmem [thread:$0]  %s7, 1024, %s547, [#allocation16], 64, 64, 4
        $region32: #{tpu_custom_call.1} parent=11 // pred_fallthru
          _
        // Predicated region
        $region33: #{tpu_custom_call.1} parent=11 // pred_check
          %p553 = pneg %p255
        $region34: #{tpu_custom_call.1} parent=11 // pred_check_branch
          %555 = sbr.rel (%p553) target = $region36
        $region35: #{tpu_custom_call.1} parent=11 // pred_region
          _
        $region36: #{tpu_custom_call.1} parent=11 // pred_fallthru
          _
        // Predicated region
        $region37: #{tpu_custom_call.1} parent=11 // pred_check
          %p556 = pneg %p276
        $region38: #{tpu_custom_call.1} parent=11 // pred_check_branch
          %558 = sbr.rel (%p556) target = $region40
        $region39: #{tpu_custom_call.1} parent=11 // pred_region
          %s560 = ssub.s32 1024, 1024
          %561 = vsyncadd [#allocation16], %s560
          %s562 = sshll.u32 [#allocation17], 4
          %s563 = int_to_ptr.vmem [resolvable:$true] %s562
          %568 = dma.hbm_to_vmem [thread:$0]  %s9, 1024, %s563, [#allocation16], 64, 64, 4
        $region40: #{tpu_custom_call.1} parent=11 // pred_fallthru
          _
        // Predicated region
        $region41: #{tpu_custom_call.1} parent=11 // pred_check
          %p569 = pneg %p297
        $region42: #{tpu_custom_call.1} parent=11 // pred_check_branch
          %571 = sbr.rel (%p569) target = $region44
        $region43: #{tpu_custom_call.1} parent=11 // pred_region
          _
        $region44: #{tpu_custom_call.1} parent=11 // pred_fallthru
          _
        // Predicated region
        $region45: #{tpu_custom_call.1} parent=11 // pred_check
          %p572 = pneg %p318
        $region46: #{tpu_custom_call.1} parent=11 // pred_check_branch
          %574 = sbr.rel (%p572) target = $region48
        $region47: #{tpu_custom_call.1} parent=11 // pred_region
          _
        $region48: #{tpu_custom_call.1} parent=11 // pred_fallthru
          _
        // Predicated region
        $region49: #{tpu_custom_call.1} parent=11 // pred_check
          %p575 = pneg %p339
        $region50: #{tpu_custom_call.1} parent=11 // pred_check_branch
          %577 = sbr.rel (%p575) target = $region52
        $region51: #{tpu_custom_call.1} parent=11 // pred_region
          _
        $region52: #{tpu_custom_call.1} parent=11 // pred_fallthru
          _
        // Predicated region
        $region53: #{tpu_custom_call.1} parent=11 // pred_check
          %p578 = pneg %p360
        $region54: #{tpu_custom_call.1} parent=11 // pred_check_branch
          %580 = sbr.rel (%p578) target = $region56
        $region55: #{tpu_custom_call.1} parent=11 // pred_region
          %s582 = ssub.s32 2048, 2048
          %583 = vsyncadd [#allocation19], %s582
          %s584 = sshll.u32 [#allocation18], 4
          %s585 = int_to_ptr.vmem [resolvable:$true] %s584
          %590 = dma.hbm_to_vmem [thread:$0]  %s13, 2048, %s585, [#allocation19], 64, 64, 4
        $region56: #{tpu_custom_call.1} parent=11 // pred_fallthru
          _
        // Predicated region
        $region57: #{tpu_custom_call.1} parent=11 // pred_check
          %p591 = pneg %p381
        $region58: #{tpu_custom_call.1} parent=11 // pred_check_branch
          %593 = sbr.rel (%p591) target = $region60
        $region59: #{tpu_custom_call.1} parent=11 // pred_region
          _
        $region60: #{tpu_custom_call.1} parent=11 // pred_fallthru
          _
        // Predicated region
        $region61: #{tpu_custom_call.1} parent=11 // pred_check
          %p594 = pneg %p402
        $region62: #{tpu_custom_call.1} parent=11 // pred_check_branch
          %596 = sbr.rel (%p594) target = $region64
        $region63: #{tpu_custom_call.1} parent=11 // pred_region
          _
        $region64: #{tpu_custom_call.1} parent=11 // pred_fallthru
          _
        // Predicated region
        $region65: #{tpu_custom_call.1} parent=11 // pred_check
          %p597 = pneg %p423
        $region66: #{tpu_custom_call.1} parent=11 // pred_check_branch
          %599 = sbr.rel (%p597) target = $region68
        $region67: #{tpu_custom_call.1} parent=11 // pred_region
          _
        $region68: #{tpu_custom_call.1} parent=11 // pred_fallthru
          _
        // Predicated region
        $region69: #{tpu_custom_call.1} parent=11 // pred_check
          %p600 = pneg %p444
        $region70: #{tpu_custom_call.1} parent=11 // pred_check_branch
          %602 = sbr.rel (%p600) target = $region72
        $region71: #{tpu_custom_call.1} parent=11 // pred_region
          _
        $region72: #{tpu_custom_call.1} parent=11 // pred_fallthru
          _
        // Predicated region
        $region73: #{tpu_custom_call.1} parent=11 // pred_check
          %p603 = pneg %p465
        $region74: #{tpu_custom_call.1} parent=11 // pred_check_branch
          %605 = sbr.rel (%p603) target = $region76
        $region75: #{tpu_custom_call.1} parent=11 // pred_region
          _
        $region76: #{tpu_custom_call.1} parent=11 // pred_fallthru
          _
      $region12: #{tpu_custom_call.1} parent=5 // pred_fallthru
        _
      %p606 = scmp.lt.s32.totalorder %s37, 4
      // Predicated region
      $region77: #{tpu_custom_call.1} parent=5 // pred_check
        %p607 = pneg %p606
      $region78: #{tpu_custom_call.1} parent=5 // pred_check_branch
        %609 = sbr.rel (%p607) target = $region80
      $region79: #{tpu_custom_call.1} parent=5 // pred_region
        // Predicated region
        $region81: #{tpu_custom_call.1} parent=79 // pred_check
          %p610 = pneg %p71
        $region82: #{tpu_custom_call.1} parent=79 // pred_check_branch
          %612 = sbr.rel (%p610) target = $region84
        $region83: #{tpu_custom_call.1} parent=79 // pred_region
          %s613 = sand.u32 %s61, 1
          %s614 = scalar_lea.sflag [#allocation7], %s613
          %s615 = sand.u32 %s61, 1
          %s616 = smul.addr %s615, 128
          %s617 = scalar_lea.vmem [#allocation6], %s616
          %s618 = smul.u32 16, %s45
          %s620 = ssub.s32 2048, 2048
          %621 = vsyncadd %s614, %s620
          %s622 = smul.addr %s44, 32
          %s623 = sadd.s32 %s618, %s622
          %s624 = smul.addr %s623, 128
          %s625 = scalar_lea.hbm %s0, %s624
          %s626 = sshll.u32 %s617, 4
          %s627 = int_to_ptr.vmem [resolvable:$true] %s626
          %632 = dma.hbm_to_vmem [thread:$0]  %s625, 2048, %s627, %s614, 128, 128, 8
        $region84: #{tpu_custom_call.1} parent=79 // pred_fallthru
          _
        // Predicated region
        $region85: #{tpu_custom_call.1} parent=79 // pred_check
          %p633 = pneg %p97
        $region86: #{tpu_custom_call.1} parent=79 // pred_check_branch
          %635 = sbr.rel (%p633) target = $region88
        $region87: #{tpu_custom_call.1} parent=79 // pred_region
          %s636 = sand.u32 %s37, 1
          %s637 = scalar_lea.sflag [#allocation10], %s636
          %s638 = sand.u32 %s87, 1
          %s639 = smul.addr %s638, 128
          %s640 = scalar_lea.vmem [#allocation9], %s639
          %s642 = ssub.s32 2048, 2048
          %643 = vsyncadd %s637, %s642
          %s644 = smul.addr %s44, 32
          %s645 = smul.addr %s644, 64
          %s646 = scalar_lea.hbm %s1, %s645
          %s647 = sshll.u32 %s640, 4
          %s648 = int_to_ptr.vmem [resolvable:$true] %s647
          %653 = dma.hbm_to_vmem [thread:$0]  %s646, 2048, %s648, %s637, 64, 64, 4
        $region88: #{tpu_custom_call.1} parent=79 // pred_fallthru
          _
        // Predicated region
        $region89: #{tpu_custom_call.1} parent=79 // pred_check
          %p654 = pneg %p123
        $region90: #{tpu_custom_call.1} parent=79 // pred_check_branch
          %656 = sbr.rel (%p654) target = $region92
        $region91: #{tpu_custom_call.1} parent=79 // pred_region
          %s657 = sand.u32 %s37, 1
          %s658 = scalar_lea.sflag [#allocation10], %s657
          %s659 = sand.u32 %s113, 1
          %s660 = smul.addr %s659, 128
          %s661 = scalar_lea.vmem [#allocation11], %s660
          %s663 = ssub.s32 2048, 2048
          %664 = vsyncadd %s658, %s663
          %s665 = smul.addr %s44, 32
          %s666 = smul.addr %s665, 64
          %s667 = scalar_lea.hbm %s2, %s666
          %s668 = sshll.u32 %s661, 4
          %s669 = int_to_ptr.vmem [resolvable:$true] %s668
          %674 = dma.hbm_to_vmem [thread:$0]  %s667, 2048, %s669, %s658, 128, 128, 8
        $region92: #{tpu_custom_call.1} parent=79 // pred_fallthru
          _
      $region80: #{tpu_custom_call.1} parent=5 // pred_fallthru
        _
      %p675 = scmp.le.s32.totalorder 1, %s37
      %p676 = scmp.lt.s32.totalorder %s37, 5
      %p677 = pnand %p675, %p676
      %p678 = pneg %p677
      // Predicated region
      $region93: #{tpu_custom_call.1} parent=5 // pred_check
        _
      $region94: #{tpu_custom_call.1} parent=5 // pred_check_branch
        %680 = sbr.rel (%p677) target = $region96
      $region95: #{tpu_custom_call.1} parent=5 // pred_region
        %s681 = ssub.s32 %s37, 1
        %s682 = sand.u32 %s64, 1
        %s683 = scalar_lea.sflag [#allocation7], %s682
        %s684 = sand.u32 %s64, 1
        %s685 = smul.addr %s684, 128
        %s686 = scalar_lea.vmem [#allocation6], %s685
        // Predicated region
        $region97: #{tpu_custom_call.1} parent=95 // pred_check
          %p687 = pneg %p77
        $region98: #{tpu_custom_call.1} parent=95 // pred_check_branch
          %689 = sbr.rel (%p687) target = $region100
        $region99: #{tpu_custom_call.1} parent=95 // pred_region
          %690 = dma.done %s683, 2048
        $region100: #{tpu_custom_call.1} parent=95 // pred_fallthru
          _
        %s691 = sand.u32 %s42, 1
        %s692 = scalar_lea.sflag [#allocation10], %s691
        %s693 = sand.u32 %s90, 1
        %s694 = smul.addr %s693, 128
        %s695 = scalar_lea.vmem [#allocation9], %s694
        // Predicated region
        $region101: #{tpu_custom_call.1} parent=95 // pred_check
          %p696 = pneg %p103
        $region102: #{tpu_custom_call.1} parent=95 // pred_check_branch
          %698 = sbr.rel (%p696) target = $region104
        $region103: #{tpu_custom_call.1} parent=95 // pred_region
          %699 = dma.done %s692, 2048
        $region104: #{tpu_custom_call.1} parent=95 // pred_fallthru
          _
        %s700 = sand.u32 %s42, 1
        %s701 = scalar_lea.sflag [#allocation10], %s700
        %s702 = sand.u32 %s116, 1
        %s703 = smul.addr %s702, 128
        %s704 = scalar_lea.vmem [#allocation11], %s703
        // Predicated region
        $region105: #{tpu_custom_call.1} parent=95 // pred_check
          %p705 = pneg %p129
        $region106: #{tpu_custom_call.1} parent=95 // pred_check_branch
          %707 = sbr.rel (%p705) target = $region108
        $region107: #{tpu_custom_call.1} parent=95 // pred_region
          %708 = dma.done %s701, 2048
        $region108: #{tpu_custom_call.1} parent=95 // pred_fallthru
          _
        // Predicated region
        $region109: #{tpu_custom_call.1} parent=95 // pred_check
          %p709 = pneg %p150
        $region110: #{tpu_custom_call.1} parent=95 // pred_check_branch
          %711 = sbr.rel (%p709) target = $region112
        $region111: #{tpu_custom_call.1} parent=95 // pred_region
          %712 = dma.done [#allocation13], 1024
        $region112: #{tpu_custom_call.1} parent=95 // pred_fallthru
          _
        // Predicated region
        $region113: #{tpu_custom_call.1} parent=95 // pred_check
          %p713 = pneg %p192
        $region114: #{tpu_custom_call.1} parent=95 // pred_check_branch
          %715 = sbr.rel (%p713) target = $region116
        $region115: #{tpu_custom_call.1} parent=95 // pred_region
          %716 = dma.done [#allocation13], 1024
        $region116: #{tpu_custom_call.1} parent=95 // pred_fallthru
          _
        // Predicated region
        $region117: #{tpu_custom_call.1} parent=95 // pred_check
          %p717 = pneg %p234
        $region118: #{tpu_custom_call.1} parent=95 // pred_check_branch
          %719 = sbr.rel (%p717) target = $region120
        $region119: #{tpu_custom_call.1} parent=95 // pred_region
          %720 = dma.done [#allocation16], 1024
        $region120: #{tpu_custom_call.1} parent=95 // pred_fallthru
          _
        // Predicated region
        $region121: #{tpu_custom_call.1} parent=95 // pred_check
          %p721 = pneg %p276
        $region122: #{tpu_custom_call.1} parent=95 // pred_check_branch
          %723 = sbr.rel (%p721) target = $region124
        $region123: #{tpu_custom_call.1} parent=95 // pred_region
          %724 = dma.done [#allocation16], 1024
        $region124: #{tpu_custom_call.1} parent=95 // pred_fallthru
          _
        // Predicated region
        $region125: #{tpu_custom_call.1} parent=95 // pred_check
          %p725 = pneg %p360
        $region126: #{tpu_custom_call.1} parent=95 // pred_check_branch
          %727 = sbr.rel (%p725) target = $region128
        $region127: #{tpu_custom_call.1} parent=95 // pred_region
          %728 = dma.done [#allocation19], 2048
        $region128: #{tpu_custom_call.1} parent=95 // pred_fallthru
          _
        %s729 = sand.u32 %s64, 1
        %s730 = scalar_lea.sflag [#allocation7], %s729
        %s731 = sand.u32 %s64, 1
        %s732 = smul.addr %s731, 128
        %s733 = scalar_lea.vmem [#allocation6], %s732
        %p734 = pneg %p77
        %p735 = pneg %p74
        %s736 = sand.u32 %s42, 1
        %s737 = scalar_lea.sflag [#allocation10], %s736
        %s738 = sand.u32 %s90, 1
        %s739 = smul.addr %s738, 128
        %s740 = scalar_lea.vmem [#allocation9], %s739
        %p741 = pneg %p103
        %p742 = pneg %p100
        %s743 = sand.u32 %s42, 1
        %s744 = scalar_lea.sflag [#allocation10], %s743
        %s745 = sand.u32 %s116, 1
        %s746 = smul.addr %s745, 128
        %s747 = scalar_lea.vmem [#allocation11], %s746
        %p748 = pneg %p129
        %p749 = pneg %p126
        %p750 = pneg %p150
        %p751 = pneg %p147
        %p752 = pneg %p171
        %p753 = pneg %p168
        %p754 = pneg %p192
        %p755 = pneg %p189
        %p756 = pneg %p213
        %p757 = pneg %p210
        %p758 = pneg %p234
        %p759 = pneg %p231
        %p760 = pneg %p255
        %p761 = pneg %p252
        %p762 = pneg %p276
        %p763 = pneg %p273
        %p764 = pneg %p297
        %p765 = pneg %p294
        %p766 = pneg %p318
        %p767 = pneg %p315
        %p768 = pneg %p339
        %p769 = pneg %p336
        %p770 = pneg %p360
        %p771 = pneg %p357
        %p772 = pneg %p381
        %p773 = pneg %p378
        %p774 = pneg %p402
        %p775 = pneg %p399
        %p776 = pneg %p423
        %p777 = pneg %p420
        %p778 = pneg %p444
        %p779 = pneg %p441
        %p780 = pneg %p465
        %p781 = pneg %p462
        %p782 = pneg %p493
        %p783 = pneg %p490
        %s784 = sand.u32 %s480, 1
        %s785 = scalar_lea.sflag [#allocation8], %s784
        %s786 = sand.u32 %s480, 1
        %s787 = smul.addr %s786, 128
        %s788 = scalar_lea.vmem [#allocation20], %s787
        %s789 = smul.u32 16, %s47
        %s790 = smul.u32 16, %s47
        %p792 = scmp.eq.s32.totalorder %s47, 0
        // Predicated region
        $region129: #{tpu_custom_call.1} parent=95 // pred_check
          %p793 = pneg %p792
        $region130: #{tpu_custom_call.1} parent=95 // pred_check_branch
          %795 = sbr.rel (%p793) target = $region132
        $region131: #{tpu_custom_call.1} parent=95 // pred_region
          %v796 = vld [vmem:[#allocation14] sm:$0xf]
          %v797 = vld [vmem:[#allocation14 + $0x4] sm:$0xf]
          %v798 = vld [vmem:[#allocation14 + $0x8] sm:$0xf]
          %v799 = vld [vmem:[#allocation14 + $0xc] sm:$0xf]
          %v800 = vld [vmem:[#allocation14 + $0x10] sm:$0xf]
          %v801 = vld [vmem:[#allocation14 + $0x14] sm:$0xf]
          %v802 = vld [vmem:[#allocation14 + $0x18] sm:$0xf]
          %v803 = vld [vmem:[#allocation14 + $0x1c] sm:$0xf]
          %v804 = vld [vmem:[#allocation14 + $0x20] sm:$0xf]
          %v805 = vld [vmem:[#allocation14 + $0x24] sm:$0xf]
          %v806 = vld [vmem:[#allocation14 + $0x28] sm:$0xf]
          %v807 = vld [vmem:[#allocation14 + $0x2c] sm:$0xf]
          %v808 = vld [vmem:[#allocation14 + $0x30] sm:$0xf]
          %v809 = vld [vmem:[#allocation14 + $0x34] sm:$0xf]
          %v810 = vld [vmem:[#allocation14 + $0x38] sm:$0xf]
          %v811 = vld [vmem:[#allocation14 + $0x3c] sm:$0xf]
          %v812 = vld [vmem:[%s704] sm:$0xff]
          %v813 = vld [vmem:[%s704 + $0x8] sm:$0xff]
          %v814 = vld [vmem:[%s704 + $0x10] sm:$0xff]
          %v815 = vld [vmem:[%s704 + $0x18] sm:$0xff]
          %v816 = vld [vmem:[%s704 + $0x20] sm:$0xff]
          %v817 = vld [vmem:[%s704 + $0x28] sm:$0xff]
          %v818 = vld [vmem:[%s704 + $0x30] sm:$0xff]
          %v819 = vld [vmem:[%s704 + $0x38] sm:$0xff]
          %v820 = vld [vmem:[%s704 + $0x40] sm:$0xff]
          %v821 = vld [vmem:[%s704 + $0x48] sm:$0xff]
          %v822 = vld [vmem:[%s704 + $0x50] sm:$0xff]
          %v823 = vld [vmem:[%s704 + $0x58] sm:$0xff]
          %v824 = vld [vmem:[%s704 + $0x60] sm:$0xff]
          %v825 = vld [vmem:[%s704 + $0x68] sm:$0xff]
          %v826 = vld [vmem:[%s704 + $0x70] sm:$0xff]
          %v827 = vld [vmem:[%s704 + $0x78] sm:$0xff]
          %v828 = vld [vmem:[%s6] sm:$0xff]
          %v829 = vld [vmem:[%s6 + $0x8] sm:$0xff]
          %v830 = vld [vmem:[%s6 + $0x10] sm:$0xff]
          %v831 = vld [vmem:[%s6 + $0x18] sm:$0xff]
          %v832 = vld [vmem:[%s6 + $0x20] sm:$0xff]
          %v833 = vld [vmem:[%s6 + $0x28] sm:$0xff]
          %v834 = vld [vmem:[%s6 + $0x30] sm:$0xff]
          %v835 = vld [vmem:[%s6 + $0x38] sm:$0xff]
          %v836 = vld [vmem:[%s6 + $0x40] sm:$0xff]
          %v837 = vld [vmem:[%s6 + $0x48] sm:$0xff]
          %v838 = vld [vmem:[%s6 + $0x50] sm:$0xff]
          %v839 = vld [vmem:[%s6 + $0x58] sm:$0xff]
          %v840 = vld [vmem:[%s6 + $0x60] sm:$0xff]
          %v841 = vld [vmem:[%s6 + $0x68] sm:$0xff]
          %v842 = vld [vmem:[%s6 + $0x70] sm:$0xff]
          %v843 = vld [vmem:[%s6 + $0x78] sm:$0xff]
          %845 = vset.pattern.permute.xlu0 0
          %846 = vperm.xlu0 %845, %v828
          %v847 = vpop.permute.xlu0 %846
          %850 = vset.pattern.permute.xlu0 0
          %851 = vperm.xlu0 %850, %v829
          %v852 = vpop.permute.xlu0 %851
          %855 = vset.pattern.permute.xlu0 0
          %856 = vperm.xlu0 %855, %v830
          %v857 = vpop.permute.xlu0 %856
          %860 = vset.pattern.permute.xlu0 0
          %861 = vperm.xlu0 %860, %v831
          %v862 = vpop.permute.xlu0 %861
          %865 = vset.pattern.permute.xlu0 0
          %866 = vperm.xlu0 %865, %v832
          %v867 = vpop.permute.xlu0 %866
          %870 = vset.pattern.permute.xlu0 0
          %871 = vperm.xlu0 %870, %v833
          %v872 = vpop.permute.xlu0 %871
          %875 = vset.pattern.permute.xlu0 0
          %876 = vperm.xlu0 %875, %v834
          %v877 = vpop.permute.xlu0 %876
          %880 = vset.pattern.permute.xlu0 0
          %881 = vperm.xlu0 %880, %v835
          %v882 = vpop.permute.xlu0 %881
          %885 = vset.pattern.permute.xlu0 0
          %886 = vperm.xlu0 %885, %v836
          %v887 = vpop.permute.xlu0 %886
          %890 = vset.pattern.permute.xlu0 0
          %891 = vperm.xlu0 %890, %v837
          %v892 = vpop.permute.xlu0 %891
          %895 = vset.pattern.permute.xlu0 0
          %896 = vperm.xlu0 %895, %v838
          %v897 = vpop.permute.xlu0 %896
          %900 = vset.pattern.permute.xlu0 0
          %901 = vperm.xlu0 %900, %v839
          %v902 = vpop.permute.xlu0 %901
          %905 = vset.pattern.permute.xlu0 0
          %906 = vperm.xlu0 %905, %v840
          %v907 = vpop.permute.xlu0 %906
          %910 = vset.pattern.permute.xlu0 0
          %911 = vperm.xlu0 %910, %v841
          %v912 = vpop.permute.xlu0 %911
          %915 = vset.pattern.permute.xlu0 0
          %916 = vperm.xlu0 %915, %v842
          %v917 = vpop.permute.xlu0 %916
          %920 = vset.pattern.permute.xlu0 0
          %921 = vperm.xlu0 %920, %v843
          %v922 = vpop.permute.xlu0 %921
          %v940 = vunpack.c.l.b16 %v796
          %v941 = vunpack.c.l.b16 %v797
          %v942 = vunpack.c.l.b16 %v798
          %v943 = vunpack.c.l.b16 %v799
          %v944 = vunpack.c.l.b16 %v800
          %v945 = vunpack.c.l.b16 %v801
          %v946 = vunpack.c.l.b16 %v802
          %v947 = vunpack.c.l.b16 %v803
          %v948 = vunpack.c.l.b16 %v804
          %v949 = vunpack.c.l.b16 %v805
          %v950 = vunpack.c.l.b16 %v806
          %v951 = vunpack.c.l.b16 %v807
          %v952 = vunpack.c.l.b16 %v808
          %v953 = vunpack.c.l.b16 %v809
          %v954 = vunpack.c.l.b16 %v810
          %v955 = vunpack.c.l.b16 %v811
          %v956 = vpack.c.b16 %v941, %v940
          %v957 = vpack.c.b16 %v943, %v942
          %v958 = vpack.c.b16 %v945, %v944
          %v959 = vpack.c.b16 %v947, %v946
          %v960 = vpack.c.b16 %v949, %v948
          %v961 = vpack.c.b16 %v951, %v950
          %v962 = vpack.c.b16 %v953, %v952
          %v963 = vpack.c.b16 %v955, %v954
          %v988 = vunpack.c.l.b16 %v812
          %v989 = vunpack.c.h.b16 %v812
          %v990 = vunpack.c.l.b16 %v813
          %v991 = vunpack.c.h.b16 %v813
          %v992 = vunpack.c.l.b16 %v814
          %v993 = vunpack.c.h.b16 %v814
          %v994 = vunpack.c.l.b16 %v815
          %v995 = vunpack.c.h.b16 %v815
          %v996 = vunpack.c.l.b16 %v816
          %v997 = vunpack.c.h.b16 %v816
          %v998 = vunpack.c.l.b16 %v817
          %v999 = vunpack.c.h.b16 %v817
          %v1000 = vunpack.c.l.b16 %v818
          %v1001 = vunpack.c.h.b16 %v818
          %v1002 = vunpack.c.l.b16 %v819
          %v1003 = vunpack.c.h.b16 %v819
          %v1004 = vunpack.c.l.b16 %v820
          %v1005 = vunpack.c.h.b16 %v820
          %v1006 = vunpack.c.l.b16 %v821
          %v1007 = vunpack.c.h.b16 %v821
          %v1008 = vunpack.c.l.b16 %v822
          %v1009 = vunpack.c.h.b16 %v822
          %v1010 = vunpack.c.l.b16 %v823
          %v1011 = vunpack.c.h.b16 %v823
          %v1012 = vunpack.c.l.b16 %v824
          %v1013 = vunpack.c.h.b16 %v824
          %v1014 = vunpack.c.l.b16 %v825
          %v1015 = vunpack.c.h.b16 %v825
          %v1016 = vunpack.c.l.b16 %v826
          %v1017 = vunpack.c.h.b16 %v826
          %v1018 = vunpack.c.l.b16 %v827
          %v1019 = vunpack.c.h.b16 %v827
          %v1020 = vpack.c.b16 %v990, %v988
          %v1021 = vpack.c.b16 %v991, %v989
          %v1022 = vpack.c.b16 %v994, %v992
          %v1023 = vpack.c.b16 %v995, %v993
          %v1024 = vpack.c.b16 %v998, %v996
          %v1025 = vpack.c.b16 %v999, %v997
          %v1026 = vpack.c.b16 %v1002, %v1000
          %v1027 = vpack.c.b16 %v1003, %v1001
          %v1028 = vpack.c.b16 %v1006, %v1004
          %v1029 = vpack.c.b16 %v1007, %v1005
          %v1030 = vpack.c.b16 %v1010, %v1008
          %v1031 = vpack.c.b16 %v1011, %v1009
          %v1032 = vpack.c.b16 %v1014, %v1012
          %v1033 = vpack.c.b16 %v1015, %v1013
          %v1034 = vpack.c.b16 %v1018, %v1016
          %v1035 = vpack.c.b16 %v1019, %v1017
          %1052 = vmatprep.subr.bf16.mxu0 %v1021
          %1053 = vmatpush1.bf16.msra.mxu0 %v1020
          %1054 = vmatprep.subr.bf16.mxu0 %v1023
          %1055 = vmatpush1.bf16.msra.mxu0 %v1022
          %1056 = vmatprep.subr.bf16.mxu0 %v1025
          %1057 = vmatpush1.bf16.msra.mxu0 %v1024
          %1058 = vmatprep.subr.bf16.mxu0 %v1027
          %1059 = vmatpush1.bf16.msra.mxu0 %v1026
          %1060 = vmatprep.subr.bf16.mxu0 %v1029
          %1061 = vmatpush1.bf16.msra.mxu0 %v1028
          %1062 = vmatprep.subr.bf16.mxu0 %v1031
          %1063 = vmatpush1.bf16.msra.mxu0 %v1030
          %1064 = vmatprep.subr.bf16.mxu0 %v1033
          %1065 = vmatpush1.bf16.msra.mxu0 %v1032
          %1066 = vmatprep.subr.bf16.mxu0 %v1035
          %1067 = vmatpush1.bf16.msra.mxu0 %v1034
          %1068 = vmatprep.subr.bf16.mxu0 0
          %1069 = vmatpush1.bf16.msra.mxu0 0
          %1070 = vmatprep.subr.bf16.mxu0 0
          %1071 = vmatpush1.bf16.msra.mxu0 0
          %1072 = vmatprep.subr.bf16.mxu0 0
          %1073 = vmatpush1.bf16.msra.mxu0 0
          %1074 = vmatprep.subr.bf16.mxu0 0
          %1075 = vmatpush1.bf16.msra.mxu0 0
          %1076 = vmatprep.subr.bf16.mxu0 0
          %1077 = vmatpush1.bf16.msra.mxu0 0
          %1078 = vmatprep.subr.bf16.mxu0 0
          %1079 = vmatpush1.bf16.msra.mxu0 0
          %1080 = vmatprep.subr.bf16.mxu0 0
          %1081 = vmatpush1.bf16.msra.mxu0 0
          %1082 = vmatprep.subr.bf16.mxu0 0
          %1083 = vmatpush1.bf16.msra.mxu0 0
          %1084 = vmatprep.mubr.bf16.mxu0 0
          %1085 = vmatmul.mubr.bf16.gmra.mrb[0].mxu0 %v956
          %v1086 = vpop.f32.mrb[0].mxu0
          %v1087 = vadd.f32 %v847, %v1086
          %v1088 = vpop.f32.mrb[0].mxu0
          %v1089 = vadd.f32 %v847, %v1088
          %v1090 = vpop.f32.mrb[0].mxu0
          %v1091 = vadd.f32 %v852, %v1090
          %v1092 = vpop.f32.mrb[0].mxu0
          %v1093 = vadd.f32 %v852, %v1092
          %1094 = vmatprep.mubr.bf16.mxu0 0
          %1095 = vmatmul.mubr.bf16.gmra.mrb[0].mxu0 %v957
          %v1096 = vpop.f32.mrb[0].mxu0
          %v1097 = vadd.f32 %v857, %v1096
          %v1098 = vpop.f32.mrb[0].mxu0
          %v1099 = vadd.f32 %v857, %v1098
          %v1100 = vpop.f32.mrb[0].mxu0
          %v1101 = vadd.f32 %v862, %v1100
          %v1102 = vpop.f32.mrb[0].mxu0
          %v1103 = vadd.f32 %v862, %v1102
          %1104 = vmatprep.mubr.bf16.mxu0 0
          %1105 = vmatmul.mubr.bf16.gmra.mrb[0].mxu0 %v958
          %v1106 = vpop.f32.mrb[0].mxu0
          %v1107 = vadd.f32 %v867, %v1106
          %v1108 = vpop.f32.mrb[0].mxu0
          %v1109 = vadd.f32 %v867, %v1108
          %v1110 = vpop.f32.mrb[0].mxu0
          %v1111 = vadd.f32 %v872, %v1110
          %v1112 = vpop.f32.mrb[0].mxu0
          %v1113 = vadd.f32 %v872, %v1112
          %1114 = vmatprep.mubr.bf16.mxu0 0
          %1115 = vmatmul.mubr.bf16.gmra.mrb[0].mxu0 %v959
          %v1116 = vpop.f32.mrb[0].mxu0
          %v1117 = vadd.f32 %v877, %v1116
          %v1118 = vpop.f32.mrb[0].mxu0
          %v1119 = vadd.f32 %v877, %v1118
          %v1120 = vpop.f32.mrb[0].mxu0
          %v1121 = vadd.f32 %v882, %v1120
          %v1122 = vpop.f32.mrb[0].mxu0
          %v1123 = vadd.f32 %v882, %v1122
          %1124 = vmatprep.mubr.bf16.mxu0 0
          %1125 = vmatmul.mubr.bf16.gmra.mrb[0].mxu0 %v960
          %v1126 = vpop.f32.mrb[0].mxu0
          %v1127 = vadd.f32 %v887, %v1126
          %v1128 = vpop.f32.mrb[0].mxu0
          %v1129 = vadd.f32 %v887, %v1128
          %v1130 = vpop.f32.mrb[0].mxu0
          %v1131 = vadd.f32 %v892, %v1130
          %v1132 = vpop.f32.mrb[0].mxu0
          %v1133 = vadd.f32 %v892, %v1132
          %1134 = vmatprep.mubr.bf16.mxu0 0
          %1135 = vmatmul.mubr.bf16.gmra.mrb[0].mxu0 %v961
          %v1136 = vpop.f32.mrb[0].mxu0
          %v1137 = vadd.f32 %v897, %v1136
          %v1138 = vpop.f32.mrb[0].mxu0
          %v1139 = vadd.f32 %v897, %v1138
          %v1140 = vpop.f32.mrb[0].mxu0
          %v1141 = vadd.f32 %v902, %v1140
          %v1142 = vpop.f32.mrb[0].mxu0
          %v1143 = vadd.f32 %v902, %v1142
          %1144 = vmatprep.mubr.bf16.mxu0 0
          %1145 = vmatmul.mubr.bf16.gmra.mrb[0].mxu0 %v962
          %v1146 = vpop.f32.mrb[0].mxu0
          %v1147 = vadd.f32 %v907, %v1146
          %v1148 = vpop.f32.mrb[0].mxu0
          %v1149 = vadd.f32 %v907, %v1148
          %v1150 = vpop.f32.mrb[0].mxu0
          %v1151 = vadd.f32 %v912, %v1150
          %v1152 = vpop.f32.mrb[0].mxu0
          %v1153 = vadd.f32 %v912, %v1152
          %1154 = vmatprep.mubr.bf16.mxu0 0
          %1155 = vmatmul.mubr.bf16.gmra.mrb[0].mxu0 %v963
          %v1156 = vpop.f32.mrb[0].mxu0
          %v1157 = vadd.f32 %v917, %v1156
          %v1158 = vpop.f32.mrb[0].mxu0
          %v1159 = vadd.f32 %v917, %v1158
          %v1160 = vpop.f32.mrb[0].mxu0
          %v1161 = vadd.f32 %v922, %v1160
          %v1162 = vpop.f32.mrb[0].mxu0
          %v1163 = vadd.f32 %v922, %v1162
          %1164 = vdwg.mxu0
          %v1165 = vpack.c.bf16 %v1091, %v1087
          %v1166 = vpack.c.bf16 %v1093, %v1089
          %v1167 = vpack.c.bf16 %v1101, %v1097
          %v1168 = vpack.c.bf16 %v1103, %v1099
          %v1169 = vpack.c.bf16 %v1111, %v1107
          %v1170 = vpack.c.bf16 %v1113, %v1109
          %v1171 = vpack.c.bf16 %v1121, %v1117
          %v1172 = vpack.c.bf16 %v1123, %v1119
          %v1173 = vpack.c.bf16 %v1131, %v1127
          %v1174 = vpack.c.bf16 %v1133, %v1129
          %v1175 = vpack.c.bf16 %v1141, %v1137
          %v1176 = vpack.c.bf16 %v1143, %v1139
          %v1177 = vpack.c.bf16 %v1151, %v1147
          %v1178 = vpack.c.bf16 %v1153, %v1149
          %v1179 = vpack.c.bf16 %v1161, %v1157
          %v1180 = vpack.c.bf16 %v1163, %v1159
          %1181 = vst [vmem:[#allocation2] sm:$0xff] %v1165
          %1182 = vst [vmem:[#allocation2 + $0x8] sm:$0xff] %v1166
          %1183 = vst [vmem:[#allocation2 + $0x10] sm:$0xff] %v1167
          %1184 = vst [vmem:[#allocation2 + $0x18] sm:$0xff] %v1168
          %1185 = vst [vmem:[#allocation2 + $0x20] sm:$0xff] %v1169
          %1186 = vst [vmem:[#allocation2 + $0x28] sm:$0xff] %v1170
          %1187 = vst [vmem:[#allocation2 + $0x30] sm:$0xff] %v1171
          %1188 = vst [vmem:[#allocation2 + $0x38] sm:$0xff] %v1172
          %1189 = vst [vmem:[#allocation2 + $0x40] sm:$0xff] %v1173
          %1190 = vst [vmem:[#allocation2 + $0x48] sm:$0xff] %v1174
          %1191 = vst [vmem:[#allocation2 + $0x50] sm:$0xff] %v1175
          %1192 = vst [vmem:[#allocation2 + $0x58] sm:$0xff] %v1176
          %1193 = vst [vmem:[#allocation2 + $0x60] sm:$0xff] %v1177
          %1194 = vst [vmem:[#allocation2 + $0x68] sm:$0xff] %v1178
          %1195 = vst [vmem:[#allocation2 + $0x70] sm:$0xff] %v1179
          %1196 = vst [vmem:[#allocation2 + $0x78] sm:$0xff] %v1180
          %v1197 = vld [vmem:[%s695] sm:$0xf]
          %v1198 = vld [vmem:[%s695 + $0x4] sm:$0xf]
          %v1199 = vld [vmem:[%s695 + $0x8] sm:$0xf]
          %v1200 = vld [vmem:[%s695 + $0xc] sm:$0xf]
          %v1201 = vld [vmem:[%s695 + $0x10] sm:$0xf]
          %v1202 = vld [vmem:[%s695 + $0x14] sm:$0xf]
          %v1203 = vld [vmem:[%s695 + $0x18] sm:$0xf]
          %v1204 = vld [vmem:[%s695 + $0x1c] sm:$0xf]
          %v1205 = vld [vmem:[%s695 + $0x20] sm:$0xf]
          %v1206 = vld [vmem:[%s695 + $0x24] sm:$0xf]
          %v1207 = vld [vmem:[%s695 + $0x28] sm:$0xf]
          %v1208 = vld [vmem:[%s695 + $0x2c] sm:$0xf]
          %v1209 = vld [vmem:[%s695 + $0x30] sm:$0xf]
          %v1210 = vld [vmem:[%s695 + $0x34] sm:$0xf]
          %v1211 = vld [vmem:[%s695 + $0x38] sm:$0xf]
          %v1212 = vld [vmem:[%s695 + $0x3c] sm:$0xf]
          %v1213 = vld [vmem:[%s695 + $0x40] sm:$0xf]
          %v1214 = vld [vmem:[%s695 + $0x44] sm:$0xf]
          %v1215 = vld [vmem:[%s695 + $0x48] sm:$0xf]
          %v1216 = vld [vmem:[%s695 + $0x4c] sm:$0xf]
          %v1217 = vld [vmem:[%s695 + $0x50] sm:$0xf]
          %v1218 = vld [vmem:[%s695 + $0x54] sm:$0xf]
          %v1219 = vld [vmem:[%s695 + $0x58] sm:$0xf]
          %v1220 = vld [vmem:[%s695 + $0x5c] sm:$0xf]
          %v1221 = vld [vmem:[%s695 + $0x60] sm:$0xf]
          %v1222 = vld [vmem:[%s695 + $0x64] sm:$0xf]
          %v1223 = vld [vmem:[%s695 + $0x68] sm:$0xf]
          %v1224 = vld [vmem:[%s695 + $0x6c] sm:$0xf]
          %v1225 = vld [vmem:[%s695 + $0x70] sm:$0xf]
          %v1226 = vld [vmem:[%s695 + $0x74] sm:$0xf]
          %v1227 = vld [vmem:[%s695 + $0x78] sm:$0xf]
          %v1228 = vld [vmem:[%s695 + $0x7c] sm:$0xf]
          %v1229 = vld [vmem:[#allocation15] sm:$0xf]
          %v1230 = vld [vmem:[#allocation15 + $0x4] sm:$0xf]
          %v1231 = vld [vmem:[#allocation15 + $0x8] sm:$0xf]
          %v1232 = vld [vmem:[#allocation15 + $0xc] sm:$0xf]
          %v1233 = vld [vmem:[#allocation15 + $0x10] sm:$0xf]
          %v1234 = vld [vmem:[#allocation15 + $0x14] sm:$0xf]
          %v1235 = vld [vmem:[#allocation15 + $0x18] sm:$0xf]
          %v1236 = vld [vmem:[#allocation15 + $0x1c] sm:$0xf]
          %v1237 = vld [vmem:[#allocation15 + $0x20] sm:$0xf]
          %v1238 = vld [vmem:[#allocation15 + $0x24] sm:$0xf]
          %v1239 = vld [vmem:[#allocation15 + $0x28] sm:$0xf]
          %v1240 = vld [vmem:[#allocation15 + $0x2c] sm:$0xf]
          %v1241 = vld [vmem:[#allocation15 + $0x30] sm:$0xf]
          %v1242 = vld [vmem:[#allocation15 + $0x34] sm:$0xf]
          %v1243 = vld [vmem:[#allocation15 + $0x38] sm:$0xf]
          %v1244 = vld [vmem:[#allocation15 + $0x3c] sm:$0xf]
          %v1245 = vld [vmem:[%s8] sm:$0x1]
          %v1247 = vlaneseq
          %v1248 = vshrl.u32 %v1247, 7
          %v1249 = vsub.s32 0, %v1248
          %v1250 = vrot.slane %v1245, %v1249
          %v1284 = vunpack.c.l.b16 %v1197
          %v1285 = vunpack.c.l.b16 %v1198
          %v1286 = vunpack.c.l.b16 %v1199
          %v1287 = vunpack.c.l.b16 %v1200
          %v1288 = vunpack.c.l.b16 %v1201
          %v1289 = vunpack.c.l.b16 %v1202
          %v1290 = vunpack.c.l.b16 %v1203
          %v1291 = vunpack.c.l.b16 %v1204
          %v1292 = vunpack.c.l.b16 %v1205
          %v1293 = vunpack.c.l.b16 %v1206
          %v1294 = vunpack.c.l.b16 %v1207
          %v1295 = vunpack.c.l.b16 %v1208
          %v1296 = vunpack.c.l.b16 %v1209
          %v1297 = vunpack.c.l.b16 %v1210
          %v1298 = vunpack.c.l.b16 %v1211
          %v1299 = vunpack.c.l.b16 %v1212
          %v1300 = vunpack.c.l.b16 %v1213
          %v1301 = vunpack.c.l.b16 %v1214
          %v1302 = vunpack.c.l.b16 %v1215
          %v1303 = vunpack.c.l.b16 %v1216
          %v1304 = vunpack.c.l.b16 %v1217
          %v1305 = vunpack.c.l.b16 %v1218
          %v1306 = vunpack.c.l.b16 %v1219
          %v1307 = vunpack.c.l.b16 %v1220
          %v1308 = vunpack.c.l.b16 %v1221
          %v1309 = vunpack.c.l.b16 %v1222
          %v1310 = vunpack.c.l.b16 %v1223
          %v1311 = vunpack.c.l.b16 %v1224
          %v1312 = vunpack.c.l.b16 %v1225
          %v1313 = vunpack.c.l.b16 %v1226
          %v1314 = vunpack.c.l.b16 %v1227
          %v1315 = vunpack.c.l.b16 %v1228
          %v1316 = vpack.c.b16 %v1285, %v1284
          %v1317 = vpack.c.b16 %v1287, %v1286
          %v1318 = vpack.c.b16 %v1289, %v1288
          %v1319 = vpack.c.b16 %v1291, %v1290
          %v1320 = vpack.c.b16 %v1293, %v1292
          %v1321 = vpack.c.b16 %v1295, %v1294
          %v1322 = vpack.c.b16 %v1297, %v1296
          %v1323 = vpack.c.b16 %v1299, %v1298
          %v1324 = vpack.c.b16 %v1301, %v1300
          %v1325 = vpack.c.b16 %v1303, %v1302
          %v1326 = vpack.c.b16 %v1305, %v1304
          %v1327 = vpack.c.b16 %v1307, %v1306
          %v1328 = vpack.c.b16 %v1309, %v1308
          %v1329 = vpack.c.b16 %v1311, %v1310
          %v1330 = vpack.c.b16 %v1313, %v1312
          %v1331 = vpack.c.b16 %v1315, %v1314
          %v1364 = vunpack.c.l.b16 %v1229
          %v1365 = vunpack.c.l.b16 %v1230
          %v1366 = vunpack.c.l.b16 %v1231
          %v1367 = vunpack.c.l.b16 %v1232
          %v1368 = vunpack.c.l.b16 %v1233
          %v1369 = vunpack.c.l.b16 %v1234
          %v1370 = vunpack.c.l.b16 %v1235
          %v1371 = vunpack.c.l.b16 %v1236
          %v1372 = vunpack.c.l.b16 %v1237
          %v1373 = vunpack.c.l.b16 %v1238
          %v1374 = vunpack.c.l.b16 %v1239
          %v1375 = vunpack.c.l.b16 %v1240
          %v1376 = vunpack.c.l.b16 %v1241
          %v1377 = vunpack.c.l.b16 %v1242
          %v1378 = vunpack.c.l.b16 %v1243
          %v1379 = vunpack.c.l.b16 %v1244
          %v1380 = vpack.c.b16 %v1365, %v1364
          %v1381 = vpack.c.b16 %v1367, %v1366
          %v1382 = vpack.c.b16 %v1369, %v1368
          %v1383 = vpack.c.b16 %v1371, %v1370
          %v1384 = vpack.c.b16 %v1373, %v1372
          %v1385 = vpack.c.b16 %v1375, %v1374
          %v1386 = vpack.c.b16 %v1377, %v1376
          %v1387 = vpack.c.b16 %v1379, %v1378
          %1396 = vmatprep.subr.bf16.mxu0 0
          %1397 = vmatpush1.bf16.msra.mxu0 %v1380
          %1398 = vmatprep.subr.bf16.mxu0 0
          %1399 = vmatpush1.bf16.msra.mxu0 %v1381
          %1400 = vmatprep.subr.bf16.mxu0 0
          %1401 = vmatpush1.bf16.msra.mxu0 %v1382
          %1402 = vmatprep.subr.bf16.mxu0 0
          %1403 = vmatpush1.bf16.msra.mxu0 %v1383
          %1404 = vmatprep.subr.bf16.mxu0 0
          %1405 = vmatpush1.bf16.msra.mxu0 %v1384
          %1406 = vmatprep.subr.bf16.mxu0 0
          %1407 = vmatpush1.bf16.msra.mxu0 %v1385
          %1408 = vmatprep.subr.bf16.mxu0 0
          %1409 = vmatpush1.bf16.msra.mxu0 %v1386
          %1410 = vmatprep.subr.bf16.mxu0 0
          %1411 = vmatpush1.bf16.msra.mxu0 %v1387
          %1412 = vmatprep.subr.bf16.mxu0 0
          %1413 = vmatpush1.bf16.msra.mxu0 0
          %1414 = vmatprep.subr.bf16.mxu0 0
          %1415 = vmatpush1.bf16.msra.mxu0 0
          %1416 = vmatprep.subr.bf16.mxu0 0
          %1417 = vmatpush1.bf16.msra.mxu0 0
          %1418 = vmatprep.subr.bf16.mxu0 0
          %1419 = vmatpush1.bf16.msra.mxu0 0
          %1420 = vmatprep.subr.bf16.mxu0 0
          %1421 = vmatpush1.bf16.msra.mxu0 0
          %1422 = vmatprep.subr.bf16.mxu0 0
          %1423 = vmatpush1.bf16.msra.mxu0 0
          %1424 = vmatprep.subr.bf16.mxu0 0
          %1425 = vmatpush1.bf16.msra.mxu0 0
          %1426 = vmatprep.subr.bf16.mxu0 0
          %1427 = vmatpush1.bf16.msra.mxu0 0
          %1428 = vmatprep.mubr.bf16.mxu0 0
          %1429 = vmatmul.mubr.bf16.gmra.mrb[0].mxu0 %v1316
          %v1430 = vpop.f32.mrb[0].mxu0
          %v1431 = vadd.f32 %v1250, %v1430
          %v1432 = vpop.f32.mrb[0].mxu0
          %v1433 = vpop.f32.mrb[0].mxu0
          %v1434 = vadd.f32 %v1250, %v1433
          %v1435 = vpop.f32.mrb[0].mxu0
          %1436 = vmatprep.mubr.bf16.mxu0 0
          %1437 = vmatmul.mubr.bf16.gmra.mrb[0].mxu0 %v1317
          %v1438 = vpop.f32.mrb[0].mxu0
          %v1439 = vadd.f32 %v1250, %v1438
          %v1440 = vpop.f32.mrb[0].mxu0
          %v1441 = vpop.f32.mrb[0].mxu0
          %v1442 = vadd.f32 %v1250, %v1441
          %v1443 = vpop.f32.mrb[0].mxu0
          %1444 = vmatprep.mubr.bf16.mxu0 0
          %1445 = vmatmul.mubr.bf16.gmra.mrb[0].mxu0 %v1318
          %v1446 = vpop.f32.mrb[0].mxu0
          %v1447 = vadd.f32 %v1250, %v1446
          %v1448 = vpop.f32.mrb[0].mxu0
          %v1449 = vpop.f32.mrb[0].mxu0
          %v1450 = vadd.f32 %v1250, %v1449
          %v1451 = vpop.f32.mrb[0].mxu0
          %1452 = vmatprep.mubr.bf16.mxu0 0
          %1453 = vmatmul.mubr.bf16.gmra.mrb[0].mxu0 %v1319
          %v1454 = vpop.f32.mrb[0].mxu0
          %v1455 = vadd.f32 %v1250, %v1454
          %v1456 = vpop.f32.mrb[0].mxu0
          %v1457 = vpop.f32.mrb[0].mxu0
          %v1458 = vadd.f32 %v1250, %v1457
          %v1459 = vpop.f32.mrb[0].mxu0
          %1460 = vmatprep.mubr.bf16.mxu0 0
          %1461 = vmatmul.mubr.bf16.gmra.mrb[0].mxu0 %v1320
          %v1462 = vpop.f32.mrb[0].mxu0
          %v1463 = vadd.f32 %v1250, %v1462
          %v1464 = vpop.f32.mrb[0].mxu0
          %v1465 = vpop.f32.mrb[0].mxu0
          %v1466 = vadd.f32 %v1250, %v1465
          %v1467 = vpop.f32.mrb[0].mxu0
          %1468 = vmatprep.mubr.bf16.mxu0 0
          %1469 = vmatmul.mubr.bf16.gmra.mrb[0].mxu0 %v1321
          %v1470 = vpop.f32.mrb[0].mxu0
          %v1471 = vadd.f32 %v1250, %v1470
          %v1472 = vpop.f32.mrb[0].mxu0
          %v1473 = vpop.f32.mrb[0].mxu0
          %v1474 = vadd.f32 %v1250, %v1473
          %v1475 = vpop.f32.mrb[0].mxu0
          %1476 = vmatprep.mubr.bf16.mxu0 0
          %1477 = vmatmul.mubr.bf16.gmra.mrb[0].mxu0 %v1322
          %v1478 = vpop.f32.mrb[0].mxu0
          %v1479 = vadd.f32 %v1250, %v1478
          %v1480 = vpop.f32.mrb[0].mxu0
          %v1481 = vpop.f32.mrb[0].mxu0
          %v1482 = vadd.f32 %v1250, %v1481
          %v1483 = vpop.f32.mrb[0].mxu0
          %1484 = vmatprep.mubr.bf16.mxu0 0
          %1485 = vmatmul.mubr.bf16.gmra.mrb[0].mxu0 %v1323
          %v1486 = vpop.f32.mrb[0].mxu0
          %v1487 = vadd.f32 %v1250, %v1486
          %v1488 = vpop.f32.mrb[0].mxu0
          %v1489 = vpop.f32.mrb[0].mxu0
          %v1490 = vadd.f32 %v1250, %v1489
          %v1491 = vpop.f32.mrb[0].mxu0
          %1492 = vmatprep.mubr.bf16.mxu0 0
          %1493 = vmatmul.mubr.bf16.gmra.mrb[0].mxu0 %v1324
          %v1494 = vpop.f32.mrb[0].mxu0
          %v1495 = vadd.f32 %v1250, %v1494
          %v1496 = vpop.f32.mrb[0].mxu0
          %v1497 = vpop.f32.mrb[0].mxu0
          %v1498 = vadd.f32 %v1250, %v1497
          %v1499 = vpop.f32.mrb[0].mxu0
          %1500 = vmatprep.mubr.bf16.mxu0 0
          %1501 = vmatmul.mubr.bf16.gmra.mrb[0].mxu0 %v1325
          %v1502 = vpop.f32.mrb[0].mxu0
          %v1503 = vadd.f32 %v1250, %v1502
          %v1504 = vpop.f32.mrb[0].mxu0
          %v1505 = vpop.f32.mrb[0].mxu0
          %v1506 = vadd.f32 %v1250, %v1505
          %v1507 = vpop.f32.mrb[0].mxu0
          %1508 = vmatprep.mubr.bf16.mxu0 0
          %1509 = vmatmul.mubr.bf16.gmra.mrb[0].mxu0 %v1326
          %v1510 = vpop.f32.mrb[0].mxu0
          %v1511 = vadd.f32 %v1250, %v1510
          %v1512 = vpop.f32.mrb[0].mxu0
          %v1513 = vpop.f32.mrb[0].mxu0
          %v1514 = vadd.f32 %v1250, %v1513
          %v1515 = vpop.f32.mrb[0].mxu0
          %1516 = vmatprep.mubr.bf16.mxu0 0
          %1517 = vmatmul.mubr.bf16.gmra.mrb[0].mxu0 %v1327
          %v1518 = vpop.f32.mrb[0].mxu0
          %v1519 = vadd.f32 %v1250, %v1518
          %v1520 = vpop.f32.mrb[0].mxu0
          %v1521 = vpop.f32.mrb[0].mxu0
          %v1522 = vadd.f32 %v1250, %v1521
          %v1523 = vpop.f32.mrb[0].mxu0
          %1524 = vmatprep.mubr.bf16.mxu0 0
          %1525 = vmatmul.mubr.bf16.gmra.mrb[0].mxu0 %v1328
          %v1526 = vpop.f32.mrb[0].mxu0
          %v1527 = vadd.f32 %v1250, %v1526
          %v1528 = vpop.f32.mrb[0].mxu0
          %v1529 = vpop.f32.mrb[0].mxu0
          %v1530 = vadd.f32 %v1250, %v1529
          %v1531 = vpop.f32.mrb[0].mxu0
          %1532 = vmatprep.mubr.bf16.mxu0 0
          %1533 = vmatmul.mubr.bf16.gmra.mrb[0].mxu0 %v1329
          %v1534 = vpop.f32.mrb[0].mxu0
          %v1535 = vadd.f32 %v1250, %v1534
          %v1536 = vpop.f32.mrb[0].mxu0
          %v1537 = vpop.f32.mrb[0].mxu0
          %v1538 = vadd.f32 %v1250, %v1537
          %v1539 = vpop.f32.mrb[0].mxu0
          %1540 = vmatprep.mubr.bf16.mxu0 0
          %1541 = vmatmul.mubr.bf16.gmra.mrb[0].mxu0 %v1330
          %v1542 = vpop.f32.mrb[0].mxu0
          %v1543 = vadd.f32 %v1250, %v1542
          %v1544 = vpop.f32.mrb[0].mxu0
          %v1545 = vpop.f32.mrb[0].mxu0
          %v1546 = vadd.f32 %v1250, %v1545
          %v1547 = vpop.f32.mrb[0].mxu0
          %1548 = vmatprep.mubr.bf16.mxu0 0
          %1549 = vmatmul.mubr.bf16.gmra.mrb[0].mxu0 %v1331
          %v1550 = vpop.f32.mrb[0].mxu0
          %v1551 = vadd.f32 %v1250, %v1550
          %v1552 = vpop.f32.mrb[0].mxu0
          %v1553 = vpop.f32.mrb[0].mxu0
          %v1554 = vadd.f32 %v1250, %v1553
          %v1555 = vpop.f32.mrb[0].mxu0
          %1556 = vdwg.mxu0
          %v1557 = vpack.c.bf16 %v1434, %v1431
          %v1558 = vpack.c.bf16 %v1442, %v1439
          %v1559 = vpack.c.bf16 %v1450, %v1447
          %v1560 = vpack.c.bf16 %v1458, %v1455
          %v1561 = vpack.c.bf16 %v1466, %v1463
          %v1562 = vpack.c.bf16 %v1474, %v1471
          %v1563 = vpack.c.bf16 %v1482, %v1479
          %v1564 = vpack.c.bf16 %v1490, %v1487
          %v1565 = vpack.c.bf16 %v1498, %v1495
          %v1566 = vpack.c.bf16 %v1506, %v1503
          %v1567 = vpack.c.bf16 %v1514, %v1511
          %v1568 = vpack.c.bf16 %v1522, %v1519
          %v1569 = vpack.c.bf16 %v1530, %v1527
          %v1570 = vpack.c.bf16 %v1538, %v1535
          %v1571 = vpack.c.bf16 %v1546, %v1543
          %v1572 = vpack.c.bf16 %v1554, %v1551
          %1573 = vst [vmem:[#allocation3] sm:$0xff] %v1557
          %1574 = vst [vmem:[#allocation3 + $0x8] sm:$0xff] %v1558
          %1575 = vst [vmem:[#allocation3 + $0x10] sm:$0xff] %v1559
          %1576 = vst [vmem:[#allocation3 + $0x18] sm:$0xff] %v1560
          %1577 = vst [vmem:[#allocation3 + $0x20] sm:$0xff] %v1561
          %1578 = vst [vmem:[#allocation3 + $0x28] sm:$0xff] %v1562
          %1579 = vst [vmem:[#allocation3 + $0x30] sm:$0xff] %v1563
          %1580 = vst [vmem:[#allocation3 + $0x38] sm:$0xff] %v1564
          %1581 = vst [vmem:[#allocation3 + $0x40] sm:$0xff] %v1565
          %1582 = vst [vmem:[#allocation3 + $0x48] sm:$0xff] %v1566
          %1583 = vst [vmem:[#allocation3 + $0x50] sm:$0xff] %v1567
          %1584 = vst [vmem:[#allocation3 + $0x58] sm:$0xff] %v1568
          %1585 = vst [vmem:[#allocation3 + $0x60] sm:$0xff] %v1569
          %1586 = vst [vmem:[#allocation3 + $0x68] sm:$0xff] %v1570
          %1587 = vst [vmem:[#allocation3 + $0x70] sm:$0xff] %v1571
          %1588 = vst [vmem:[#allocation3 + $0x78] sm:$0xff] %v1572
        $region132: #{tpu_custom_call.1} parent=95 // pred_fallthru
          _
        %v1589 = vld [vmem:[%s686] sm:$0xff]
        %v1590 = vld [vmem:[%s686 + $0x8] sm:$0xff]
        %v1591 = vld [vmem:[%s686 + $0x10] sm:$0xff]
        %v1592 = vld [vmem:[%s686 + $0x18] sm:$0xff]
        %v1593 = vld [vmem:[%s686 + $0x20] sm:$0xff]
        %v1594 = vld [vmem:[%s686 + $0x28] sm:$0xff]
        %v1595 = vld [vmem:[%s686 + $0x30] sm:$0xff]
        %v1596 = vld [vmem:[%s686 + $0x38] sm:$0xff]
        %v1597 = vld [vmem:[%s686 + $0x40] sm:$0xff]
        %v1598 = vld [vmem:[%s686 + $0x48] sm:$0xff]
        %v1599 = vld [vmem:[%s686 + $0x50] sm:$0xff]
        %v1600 = vld [vmem:[%s686 + $0x58] sm:$0xff]
        %v1601 = vld [vmem:[%s686 + $0x60] sm:$0xff]
        %v1602 = vld [vmem:[%s686 + $0x68] sm:$0xff]
        %v1603 = vld [vmem:[%s686 + $0x70] sm:$0xff]
        %v1604 = vld [vmem:[%s686 + $0x78] sm:$0xff]
        %v1605 = vpack.c.bf16 %v1590, %v1589
        %v1606 = vpack.c.bf16 %v1592, %v1591
        %v1607 = vpack.c.bf16 %v1594, %v1593
        %v1608 = vpack.c.bf16 %v1596, %v1595
        %v1609 = vpack.c.bf16 %v1598, %v1597
        %v1610 = vpack.c.bf16 %v1600, %v1599
        %v1611 = vpack.c.bf16 %v1602, %v1601
        %v1612 = vpack.c.bf16 %v1604, %v1603
        %v1613 = vld [vmem:[#allocation12] sm:$0xf]
        %v1614 = vld [vmem:[#allocation12 + $0x4] sm:$0xf]
        %v1615 = vld [vmem:[#allocation12 + $0x8] sm:$0xf]
        %v1616 = vld [vmem:[#allocation12 + $0xc] sm:$0xf]
        %v1617 = vld [vmem:[#allocation12 + $0x10] sm:$0xf]
        %v1618 = vld [vmem:[#allocation12 + $0x14] sm:$0xf]
        %v1619 = vld [vmem:[#allocation12 + $0x18] sm:$0xf]
        %v1620 = vld [vmem:[#allocation12 + $0x1c] sm:$0xf]
        %v1621 = vld [vmem:[#allocation12 + $0x20] sm:$0xf]
        %v1622 = vld [vmem:[#allocation12 + $0x24] sm:$0xf]
        %v1623 = vld [vmem:[#allocation12 + $0x28] sm:$0xf]
        %v1624 = vld [vmem:[#allocation12 + $0x2c] sm:$0xf]
        %v1625 = vld [vmem:[#allocation12 + $0x30] sm:$0xf]
        %v1626 = vld [vmem:[#allocation12 + $0x34] sm:$0xf]
        %v1627 = vld [vmem:[#allocation12 + $0x38] sm:$0xf]
        %v1628 = vld [vmem:[#allocation12 + $0x3c] sm:$0xf]
        %v1629 = vld [vmem:[%s4] sm:$0x1]
        %v1631 = vlaneseq
        %v1632 = vshrl.u32 %v1631, 7
        %v1633 = vsub.s32 0, %v1632
        %v1634 = vrot.slane %v1629, %v1633
        %v1652 = vunpack.c.l.b16 %v1613
        %v1653 = vunpack.c.l.b16 %v1614
        %v1654 = vunpack.c.l.b16 %v1615
        %v1655 = vunpack.c.l.b16 %v1616
        %v1656 = vunpack.c.l.b16 %v1617
        %v1657 = vunpack.c.l.b16 %v1618
        %v1658 = vunpack.c.l.b16 %v1619
        %v1659 = vunpack.c.l.b16 %v1620
        %v1660 = vunpack.c.l.b16 %v1621
        %v1661 = vunpack.c.l.b16 %v1622
        %v1662 = vunpack.c.l.b16 %v1623
        %v1663 = vunpack.c.l.b16 %v1624
        %v1664 = vunpack.c.l.b16 %v1625
        %v1665 = vunpack.c.l.b16 %v1626
        %v1666 = vunpack.c.l.b16 %v1627
        %v1667 = vunpack.c.l.b16 %v1628
        %v1668 = vpack.c.b16 %v1653, %v1652
        %v1669 = vpack.c.b16 %v1655, %v1654
        %v1670 = vpack.c.b16 %v1657, %v1656
        %v1671 = vpack.c.b16 %v1659, %v1658
        %v1672 = vpack.c.b16 %v1661, %v1660
        %v1673 = vpack.c.b16 %v1663, %v1662
        %v1674 = vpack.c.b16 %v1665, %v1664
        %v1675 = vpack.c.b16 %v1667, %v1666
        %1684 = vmatprep.subr.bf16.mxu0 0
        %1685 = vmatpush1.bf16.msra.mxu0 %v1668
        %1686 = vmatprep.subr.bf16.mxu0 0
        %1687 = vmatpush1.bf16.msra.mxu0 %v1669
        %1688 = vmatprep.subr.bf16.mxu0 0
        %1689 = vmatpush1.bf16.msra.mxu0 %v1670
        %1690 = vmatprep.subr.bf16.mxu0 0
        %1691 = vmatpush1.bf16.msra.mxu0 %v1671
        %1692 = vmatprep.subr.bf16.mxu0 0
        %1693 = vmatpush1.bf16.msra.mxu0 %v1672
        %1694 = vmatprep.subr.bf16.mxu0 0
        %1695 = vmatpush1.bf16.msra.mxu0 %v1673
        %1696 = vmatprep.subr.bf16.mxu0 0
        %1697 = vmatpush1.bf16.msra.mxu0 %v1674
        %1698 = vmatprep.subr.bf16.mxu0 0
        %1699 = vmatpush1.bf16.msra.mxu0 %v1675
        %1700 = vmatprep.subr.bf16.mxu0 0
        %1701 = vmatpush1.bf16.msra.mxu0 0
        %1702 = vmatprep.subr.bf16.mxu0 0
        %1703 = vmatpush1.bf16.msra.mxu0 0
        %1704 = vmatprep.subr.bf16.mxu0 0
        %1705 = vmatpush1.bf16.msra.mxu0 0
        %1706 = vmatprep.subr.bf16.mxu0 0
        %1707 = vmatpush1.bf16.msra.mxu0 0
        %1708 = vmatprep.subr.bf16.mxu0 0
        %1709 = vmatpush1.bf16.msra.mxu0 0
        %1710 = vmatprep.subr.bf16.mxu0 0
        %1711 = vmatpush1.bf16.msra.mxu0 0
        %1712 = vmatprep.subr.bf16.mxu0 0
        %1713 = vmatpush1.bf16.msra.mxu0 0
        %1714 = vmatprep.subr.bf16.mxu0 0
        %1715 = vmatpush1.bf16.msra.mxu0 0
        %1716 = vmatprep.mubr.bf16.mxu0 0
        %1717 = vmatmul.mubr.bf16.gmra.mrb[0].mxu0 %v1605
        %v1718 = vpop.f32.mrb[0].mxu0
        %v1719 = vadd.f32 %v1634, %v1718
        %v1720 = vpop.f32.mrb[0].mxu0
        %v1721 = vpop.f32.mrb[0].mxu0
        %v1722 = vadd.f32 %v1634, %v1721
        %v1723 = vpop.f32.mrb[0].mxu0
        %1724 = vmatprep.mubr.bf16.mxu0 0
        %1725 = vmatmul.mubr.bf16.gmra.mrb[0].mxu0 %v1606
        %v1726 = vpop.f32.mrb[0].mxu0
        %v1727 = vadd.f32 %v1634, %v1726
        %v1728 = vpop.f32.mrb[0].mxu0
        %v1729 = vpop.f32.mrb[0].mxu0
        %v1730 = vadd.f32 %v1634, %v1729
        %v1731 = vpop.f32.mrb[0].mxu0
        %1732 = vmatprep.mubr.bf16.mxu0 0
        %1733 = vmatmul.mubr.bf16.gmra.mrb[0].mxu0 %v1607
        %v1734 = vpop.f32.mrb[0].mxu0
        %v1735 = vadd.f32 %v1634, %v1734
        %v1736 = vpop.f32.mrb[0].mxu0
        %v1737 = vpop.f32.mrb[0].mxu0
        %v1738 = vadd.f32 %v1634, %v1737
        %v1739 = vpop.f32.mrb[0].mxu0
        %1740 = vmatprep.mubr.bf16.mxu0 0
        %1741 = vmatmul.mubr.bf16.gmra.mrb[0].mxu0 %v1608
        %v1742 = vpop.f32.mrb[0].mxu0
        %v1743 = vadd.f32 %v1634, %v1742
        %v1744 = vpop.f32.mrb[0].mxu0
        %v1745 = vpop.f32.mrb[0].mxu0
        %v1746 = vadd.f32 %v1634, %v1745
        %v1747 = vpop.f32.mrb[0].mxu0
        %1748 = vmatprep.mubr.bf16.mxu0 0
        %1749 = vmatmul.mubr.bf16.gmra.mrb[0].mxu0 %v1609
        %v1750 = vpop.f32.mrb[0].mxu0
        %v1751 = vadd.f32 %v1634, %v1750
        %v1752 = vpop.f32.mrb[0].mxu0
        %v1753 = vpop.f32.mrb[0].mxu0
        %v1754 = vadd.f32 %v1634, %v1753
        %v1755 = vpop.f32.mrb[0].mxu0
        %1756 = vmatprep.mubr.bf16.mxu0 0
        %1757 = vmatmul.mubr.bf16.gmra.mrb[0].mxu0 %v1610
        %v1758 = vpop.f32.mrb[0].mxu0
        %v1759 = vadd.f32 %v1634, %v1758
        %v1760 = vpop.f32.mrb[0].mxu0
        %v1761 = vpop.f32.mrb[0].mxu0
        %v1762 = vadd.f32 %v1634, %v1761
        %v1763 = vpop.f32.mrb[0].mxu0
        %1764 = vmatprep.mubr.bf16.mxu0 0
        %1765 = vmatmul.mubr.bf16.gmra.mrb[0].mxu0 %v1611
        %v1766 = vpop.f32.mrb[0].mxu0
        %v1767 = vadd.f32 %v1634, %v1766
        %v1768 = vpop.f32.mrb[0].mxu0
        %v1769 = vpop.f32.mrb[0].mxu0
        %v1770 = vadd.f32 %v1634, %v1769
        %v1771 = vpop.f32.mrb[0].mxu0
        %1772 = vmatprep.mubr.bf16.mxu0 0
        %1773 = vmatmul.mubr.bf16.gmra.mrb[0].mxu0 %v1612
        %v1774 = vpop.f32.mrb[0].mxu0
        %v1775 = vadd.f32 %v1634, %v1774
        %v1776 = vpop.f32.mrb[0].mxu0
        %v1777 = vpop.f32.mrb[0].mxu0
        %v1778 = vadd.f32 %v1634, %v1777
        %v1779 = vpop.f32.mrb[0].mxu0
        %1780 = vdwg.mxu0
        %v1781 = vpack.c.bf16 %v1722, %v1719
        %v1782 = vpack.c.bf16 %v1730, %v1727
        %v1783 = vpack.c.bf16 %v1738, %v1735
        %v1784 = vpack.c.bf16 %v1746, %v1743
        %v1785 = vpack.c.bf16 %v1754, %v1751
        %v1786 = vpack.c.bf16 %v1762, %v1759
        %v1787 = vpack.c.bf16 %v1770, %v1767
        %v1788 = vpack.c.bf16 %v1778, %v1775
        %1789 = vst [vmem:[#allocation4] sm:$0xff] %v1781
        %1790 = vst [vmem:[#allocation4 + $0x8] sm:$0xff] %v1782
        %1791 = vst [vmem:[#allocation4 + $0x10] sm:$0xff] %v1783
        %1792 = vst [vmem:[#allocation4 + $0x18] sm:$0xff] %v1784
        %1793 = vst [vmem:[#allocation4 + $0x20] sm:$0xff] %v1785
        %1794 = vst [vmem:[#allocation4 + $0x28] sm:$0xff] %v1786
        %1795 = vst [vmem:[#allocation4 + $0x30] sm:$0xff] %v1787
        %1796 = vst [vmem:[#allocation4 + $0x38] sm:$0xff] %v1788
        %v1797 = vld [vmem:[#allocation4] sm:$0xff]
        %v1798 = vld [vmem:[#allocation4 + $0x8] sm:$0xff]
        %v1799 = vld [vmem:[#allocation4 + $0x10] sm:$0xff]
        %v1800 = vld [vmem:[#allocation4 + $0x18] sm:$0xff]
        %v1801 = vld [vmem:[#allocation4 + $0x20] sm:$0xff]
        %v1802 = vld [vmem:[#allocation4 + $0x28] sm:$0xff]
        %v1803 = vld [vmem:[#allocation4 + $0x30] sm:$0xff]
        %v1804 = vld [vmem:[#allocation4 + $0x38] sm:$0xff]
        %v1805 = vld [vmem:[#allocation2] sm:$0xff]
        %v1806 = vld [vmem:[#allocation2 + $0x8] sm:$0xff]
        %v1807 = vld [vmem:[#allocation2 + $0x10] sm:$0xff]
        %v1808 = vld [vmem:[#allocation2 + $0x18] sm:$0xff]
        %vm1809 = vcmask 261120
        %v1811 = vsel %vm1809, %v1797, 0
        %v1814 = vsel %vm1809, %v1798, 0
        %v1817 = vsel %vm1809, %v1799, 0
        %v1820 = vsel %vm1809, %v1800, 0
        %v1823 = vsel %vm1809, %v1801, 0
        %v1826 = vsel %vm1809, %v1802, 0
        %v1829 = vsel %vm1809, %v1803, 0
        %v1832 = vsel %vm1809, %v1804, 0
        %1834 = vmatprep.subr.bf16.mxu0 %v1806
        %1835 = vmatpush1.bf16.msra.mxu0 %v1805
        %1836 = vmatprep.subr.bf16.mxu0 %v1808
        %1837 = vmatpush1.bf16.msra.mxu0 %v1807
        %1838 = vmatprep.subr.bf16.mxu0 0
        %1839 = vmatpush1.bf16.msra.mxu0 0
        %1840 = vmatprep.subr.bf16.mxu0 0
        %1841 = vmatpush1.bf16.msra.mxu0 0
        %1842 = vmatprep.subr.bf16.mxu0 0
        %1843 = vmatpush1.bf16.msra.mxu0 0
        %1844 = vmatprep.subr.bf16.mxu0 0
        %1845 = vmatpush1.bf16.msra.mxu0 0
        %1846 = vmatprep.subr.bf16.mxu0 0
        %1847 = vmatpush1.bf16.msra.mxu0 0
        %1848 = vmatprep.subr.bf16.mxu0 0
        %1849 = vmatpush1.bf16.msra.mxu0 0
        %1850 = vmatprep.subr.bf16.mxu0 0
        %1851 = vmatpush1.bf16.msra.mxu0 0
        %1852 = vmatprep.subr.bf16.mxu0 0
        %1853 = vmatpush1.bf16.msra.mxu0 0
        %1854 = vmatprep.subr.bf16.mxu0 0
        %1855 = vmatpush1.bf16.msra.mxu0 0
        %1856 = vmatprep.subr.bf16.mxu0 0
        %1857 = vmatpush1.bf16.msra.mxu0 0
        %1858 = vmatprep.subr.bf16.mxu0 0
        %1859 = vmatpush1.bf16.msra.mxu0 0
        %1860 = vmatprep.subr.bf16.mxu0 0
        %1861 = vmatpush1.bf16.msra.mxu0 0
        %1862 = vmatprep.subr.bf16.mxu0 0
        %1863 = vmatpush1.bf16.msra.mxu0 0
        %1864 = vmatprep.subr.bf16.mxu0 0
        %1865 = vmatpush1.bf16.msra.mxu0 0
        %1866 = vmatprep.mubr.bf16.mxu0 0
        %1867 = vmatmul.mubr.bf16.gmra.mrb[0].mxu0 %v1811
        %v1868 = vpop.f32.mrb[0].mxu0
        %v1869 = vadd.f32 0.0, %v1868
        %v1870 = vpop.f32.mrb[0].mxu0
        %v1871 = vadd.f32 0.0, %v1870
        %v1872 = vpop.f32.mrb[0].mxu0
        %v1873 = vadd.f32 0.0, %v1872
        %v1874 = vpop.f32.mrb[0].mxu0
        %v1875 = vadd.f32 0.0, %v1874
        %1876 = vmatprep.mubr.bf16.mxu0 0
        %1877 = vmatmul.mubr.bf16.gmra.mrb[0].mxu0 %v1814
        %v1878 = vpop.f32.mrb[0].mxu0
        %v1879 = vadd.f32 0.0, %v1878
        %v1880 = vpop.f32.mrb[0].mxu0
        %v1881 = vadd.f32 0.0, %v1880
        %v1882 = vpop.f32.mrb[0].mxu0
        %v1883 = vadd.f32 0.0, %v1882
        %v1884 = vpop.f32.mrb[0].mxu0
        %v1885 = vadd.f32 0.0, %v1884
        %1886 = vmatprep.mubr.bf16.mxu0 0
        %1887 = vmatmul.mubr.bf16.gmra.mrb[0].mxu0 %v1817
        %v1888 = vpop.f32.mrb[0].mxu0
        %v1889 = vadd.f32 0.0, %v1888
        %v1890 = vpop.f32.mrb[0].mxu0
        %v1891 = vadd.f32 0.0, %v1890
        %v1892 = vpop.f32.mrb[0].mxu0
        %v1893 = vadd.f32 0.0, %v1892
        %v1894 = vpop.f32.mrb[0].mxu0
        %v1895 = vadd.f32 0.0, %v1894
        %1896 = vmatprep.mubr.bf16.mxu0 0
        %1897 = vmatmul.mubr.bf16.gmra.mrb[0].mxu0 %v1820
        %v1898 = vpop.f32.mrb[0].mxu0
        %v1899 = vadd.f32 0.0, %v1898
        %v1900 = vpop.f32.mrb[0].mxu0
        %v1901 = vadd.f32 0.0, %v1900
        %v1902 = vpop.f32.mrb[0].mxu0
        %v1903 = vadd.f32 0.0, %v1902
        %v1904 = vpop.f32.mrb[0].mxu0
        %v1905 = vadd.f32 0.0, %v1904
        %1906 = vmatprep.mubr.bf16.mxu0 0
        %1907 = vmatmul.mubr.bf16.gmra.mrb[0].mxu0 %v1823
        %v1908 = vpop.f32.mrb[0].mxu0
        %v1909 = vadd.f32 0.0, %v1908
        %v1910 = vpop.f32.mrb[0].mxu0
        %v1911 = vadd.f32 0.0, %v1910
        %v1912 = vpop.f32.mrb[0].mxu0
        %v1913 = vadd.f32 0.0, %v1912
        %v1914 = vpop.f32.mrb[0].mxu0
        %v1915 = vadd.f32 0.0, %v1914
        %1916 = vmatprep.mubr.bf16.mxu0 0
        %1917 = vmatmul.mubr.bf16.gmra.mrb[0].mxu0 %v1826
        %v1918 = vpop.f32.mrb[0].mxu0
        %v1919 = vadd.f32 0.0, %v1918
        %v1920 = vpop.f32.mrb[0].mxu0
        %v1921 = vadd.f32 0.0, %v1920
        %v1922 = vpop.f32.mrb[0].mxu0
        %v1923 = vadd.f32 0.0, %v1922
        %v1924 = vpop.f32.mrb[0].mxu0
        %v1925 = vadd.f32 0.0, %v1924
        %1926 = vmatprep.mubr.bf16.mxu0 0
        %1927 = vmatmul.mubr.bf16.gmra.mrb[0].mxu0 %v1829
        %v1928 = vpop.f32.mrb[0].mxu0
        %v1929 = vadd.f32 0.0, %v1928
        %v1930 = vpop.f32.mrb[0].mxu0
        %v1931 = vadd.f32 0.0, %v1930
        %v1932 = vpop.f32.mrb[0].mxu0
        %v1933 = vadd.f32 0.0, %v1932
        %v1934 = vpop.f32.mrb[0].mxu0
        %v1935 = vadd.f32 0.0, %v1934
        %1936 = vmatprep.mubr.bf16.mxu0 0
        %1937 = vmatmul.mubr.bf16.gmra.mrb[0].mxu0 %v1832
        %v1938 = vpop.f32.mrb[0].mxu0
        %v1939 = vadd.f32 0.0, %v1938
        %v1940 = vpop.f32.mrb[0].mxu0
        %v1941 = vadd.f32 0.0, %v1940
        %v1942 = vpop.f32.mrb[0].mxu0
        %v1943 = vadd.f32 0.0, %v1942
        %v1944 = vpop.f32.mrb[0].mxu0
        %v1945 = vadd.f32 0.0, %v1944
        %1946 = vdwg.mxu0
        %v1947 = vmax.f32 %v1869, %v1871
        %1948 = vmax.xlane.f32.xlu0 %v1947
        %v1949 = vpop.xlane.xlu0 %1948
        %v1950 = vmax.f32 %v1873, %v1875
        %1951 = vmax.xlane.f32.xlu0 %v1950
        %v1952 = vpop.xlane.xlu0 %1951
        %v1953 = vmax.f32 %v1879, %v1881
        %1954 = vmax.xlane.f32.xlu0 %v1953
        %v1955 = vpop.xlane.xlu0 %1954
        %v1956 = vmax.f32 %v1883, %v1885
        %1957 = vmax.xlane.f32.xlu0 %v1956
        %v1958 = vpop.xlane.xlu0 %1957
        %v1959 = vmax.f32 %v1889, %v1891
        %1960 = vmax.xlane.f32.xlu0 %v1959
        %v1961 = vpop.xlane.xlu0 %1960
        %v1962 = vmax.f32 %v1893, %v1895
        %1963 = vmax.xlane.f32.xlu0 %v1962
        %v1964 = vpop.xlane.xlu0 %1963
        %v1965 = vmax.f32 %v1899, %v1901
        %1966 = vmax.xlane.f32.xlu0 %v1965
        %v1967 = vpop.xlane.xlu0 %1966
        %v1968 = vmax.f32 %v1903, %v1905
        %1969 = vmax.xlane.f32.xlu0 %v1968
        %v1970 = vpop.xlane.xlu0 %1969
        %v1971 = vmax.f32 %v1909, %v1911
        %1972 = vmax.xlane.f32.xlu0 %v1971
        %v1973 = vpop.xlane.xlu0 %1972
        %v1974 = vmax.f32 %v1913, %v1915
        %1975 = vmax.xlane.f32.xlu0 %v1974
        %v1976 = vpop.xlane.xlu0 %1975
        %v1977 = vmax.f32 %v1919, %v1921
        %1978 = vmax.xlane.f32.xlu0 %v1977
        %v1979 = vpop.xlane.xlu0 %1978
        %v1980 = vmax.f32 %v1923, %v1925
        %1981 = vmax.xlane.f32.xlu0 %v1980
        %v1982 = vpop.xlane.xlu0 %1981
        %v1983 = vmax.f32 %v1929, %v1931
        %1984 = vmax.xlane.f32.xlu0 %v1983
        %v1985 = vpop.xlane.xlu0 %1984
        %v1986 = vmax.f32 %v1933, %v1935
        %1987 = vmax.xlane.f32.xlu0 %v1986
        %v1988 = vpop.xlane.xlu0 %1987
        %v1989 = vmax.f32 %v1939, %v1941
        %1990 = vmax.xlane.f32.xlu0 %v1989
        %v1991 = vpop.xlane.xlu0 %1990
        %v1992 = vmax.f32 %v1943, %v1945
        %1993 = vmax.xlane.f32.xlu0 %v1992
        %v1994 = vpop.xlane.xlu0 %1993
        %v1995 = vsub.f32 %v1869, %v1949
        %v1996 = vsub.f32 %v1871, %v1949
        %v1997 = vsub.f32 %v1873, %v1952
        %v1998 = vsub.f32 %v1875, %v1952
        %v1999 = vsub.f32 %v1879, %v1955
        %v2000 = vsub.f32 %v1881, %v1955
        %v2001 = vsub.f32 %v1883, %v1958
        %v2002 = vsub.f32 %v1885, %v1958
        %v2003 = vsub.f32 %v1889, %v1961
        %v2004 = vsub.f32 %v1891, %v1961
        %v2005 = vsub.f32 %v1893, %v1964
        %v2006 = vsub.f32 %v1895, %v1964
        %v2007 = vsub.f32 %v1899, %v1967
        %v2008 = vsub.f32 %v1901, %v1967
        %v2009 = vsub.f32 %v1903, %v1970
        %v2010 = vsub.f32 %v1905, %v1970
        %v2011 = vsub.f32 %v1909, %v1973
        %v2012 = vsub.f32 %v1911, %v1973
        %v2013 = vsub.f32 %v1913, %v1976
        %v2014 = vsub.f32 %v1915, %v1976
        %v2015 = vsub.f32 %v1919, %v1979
        %v2016 = vsub.f32 %v1921, %v1979
        %v2017 = vsub.f32 %v1923, %v1982
        %v2018 = vsub.f32 %v1925, %v1982
        %v2019 = vsub.f32 %v1929, %v1985
        %v2020 = vsub.f32 %v1931, %v1985
        %v2021 = vsub.f32 %v1933, %v1988
        %v2022 = vsub.f32 %v1935, %v1988
        %v2023 = vsub.f32 %v1939, %v1991
        %v2024 = vsub.f32 %v1941, %v1991
        %v2025 = vsub.f32 %v1943, %v1994
        %v2026 = vsub.f32 %v1945, %v1994
        %v2027 = vpack.c.bf16 %v1997, %v1995
        %v2028 = vpack.c.bf16 %v1998, %v1996
        %v2029 = vpack.c.bf16 %v2001, %v1999
        %v2030 = vpack.c.bf16 %v2002, %v2000
        %v2031 = vpack.c.bf16 %v2005, %v2003
        %v2032 = vpack.c.bf16 %v2006, %v2004
        %v2033 = vpack.c.bf16 %v2009, %v2007
        %v2034 = vpack.c.bf16 %v2010, %v2008
        %v2035 = vpack.c.bf16 %v2013, %v2011
        %v2036 = vpack.c.bf16 %v2014, %v2012
        %v2037 = vpack.c.bf16 %v2017, %v2015
        %v2038 = vpack.c.bf16 %v2018, %v2016
        %v2039 = vpack.c.bf16 %v2021, %v2019
        %v2040 = vpack.c.bf16 %v2022, %v2020
        %v2041 = vpack.c.bf16 %v2025, %v2023
        %v2042 = vpack.c.bf16 %v2026, %v2024
        %v2044 = vmul.bf16 %v2027, 1069105081
        %v2045 = vpow.bf16.pop %v2044
        %v2047 = vmul.bf16 %v2028, 1069105081
        %v2048 = vpow.bf16.pop %v2047
        %v2050 = vmul.bf16 %v2029, 1069105081
        %v2051 = vpow.bf16.pop %v2050
        %v2053 = vmul.bf16 %v2030, 1069105081
        %v2054 = vpow.bf16.pop %v2053
        %v2056 = vmul.bf16 %v2031, 1069105081
        %v2057 = vpow.bf16.pop %v2056
        %v2059 = vmul.bf16 %v2032, 1069105081
        %v2060 = vpow.bf16.pop %v2059
        %v2062 = vmul.bf16 %v2033, 1069105081
        %v2063 = vpow.bf16.pop %v2062
        %v2065 = vmul.bf16 %v2034, 1069105081
        %v2066 = vpow.bf16.pop %v2065
        %v2068 = vmul.bf16 %v2035, 1069105081
        %v2069 = vpow.bf16.pop %v2068
        %v2071 = vmul.bf16 %v2036, 1069105081
        %v2072 = vpow.bf16.pop %v2071
        %v2074 = vmul.bf16 %v2037, 1069105081
        %v2075 = vpow.bf16.pop %v2074
        %v2077 = vmul.bf16 %v2038, 1069105081
        %v2078 = vpow.bf16.pop %v2077
        %v2080 = vmul.bf16 %v2039, 1069105081
        %v2081 = vpow.bf16.pop %v2080
        %v2083 = vmul.bf16 %v2040, 1069105081
        %v2084 = vpow.bf16.pop %v2083
        %v2086 = vmul.bf16 %v2041, 1069105081
        %v2087 = vpow.bf16.pop %v2086
        %v2089 = vmul.bf16 %v2042, 1069105081
        %v2090 = vpow.bf16.pop %v2089
        %v2091 = vunpack.c.l.bf16 %v2045
        %v2092 = vunpack.c.l.bf16 %v2048
        %v2093 = vunpack.c.h.bf16 %v2045
        %v2094 = vunpack.c.h.bf16 %v2048
        %v2095 = vunpack.c.l.bf16 %v2051
        %v2096 = vunpack.c.l.bf16 %v2054
        %v2097 = vunpack.c.h.bf16 %v2051
        %v2098 = vunpack.c.h.bf16 %v2054
        %v2099 = vunpack.c.l.bf16 %v2057
        %v2100 = vunpack.c.l.bf16 %v2060
        %v2101 = vunpack.c.h.bf16 %v2057
        %v2102 = vunpack.c.h.bf16 %v2060
        %v2103 = vunpack.c.l.bf16 %v2063
        %v2104 = vunpack.c.l.bf16 %v2066
        %v2105 = vunpack.c.h.bf16 %v2063
        %v2106 = vunpack.c.h.bf16 %v2066
        %v2107 = vunpack.c.l.bf16 %v2069
        %v2108 = vunpack.c.l.bf16 %v2072
        %v2109 = vunpack.c.h.bf16 %v2069
        %v2110 = vunpack.c.h.bf16 %v2072
        %v2111 = vunpack.c.l.bf16 %v2075
        %v2112 = vunpack.c.l.bf16 %v2078
        %v2113 = vunpack.c.h.bf16 %v2075
        %v2114 = vunpack.c.h.bf16 %v2078
        %v2115 = vunpack.c.l.bf16 %v2081
        %v2116 = vunpack.c.l.bf16 %v2084
        %v2117 = vunpack.c.h.bf16 %v2081
        %v2118 = vunpack.c.h.bf16 %v2084
        %v2119 = vunpack.c.l.bf16 %v2087
        %v2120 = vunpack.c.l.bf16 %v2090
        %v2121 = vunpack.c.h.bf16 %v2087
        %v2122 = vunpack.c.h.bf16 %v2090
        %v2123 = vadd.f32 %v2091, %v2092
        %2124 = vadd.xlane.f32.xlu0 %v2123
        %v2125 = vpop.xlane.xlu0 %2124
        %v2126 = vadd.f32 %v2093, %v2094
        %2127 = vadd.xlane.f32.xlu0 %v2126
        %v2128 = vpop.xlane.xlu0 %2127
        %v2129 = vadd.f32 %v2095, %v2096
        %2130 = vadd.xlane.f32.xlu0 %v2129
        %v2131 = vpop.xlane.xlu0 %2130
        %v2132 = vadd.f32 %v2097, %v2098
        %2133 = vadd.xlane.f32.xlu0 %v2132
        %v2134 = vpop.xlane.xlu0 %2133
        %v2135 = vadd.f32 %v2099, %v2100
        %2136 = vadd.xlane.f32.xlu0 %v2135
        %v2137 = vpop.xlane.xlu0 %2136
        %v2138 = vadd.f32 %v2101, %v2102
        %2139 = vadd.xlane.f32.xlu0 %v2138
        %v2140 = vpop.xlane.xlu0 %2139
        %v2141 = vadd.f32 %v2103, %v2104
        %2142 = vadd.xlane.f32.xlu0 %v2141
        %v2143 = vpop.xlane.xlu0 %2142
        %v2144 = vadd.f32 %v2105, %v2106
        %2145 = vadd.xlane.f32.xlu0 %v2144
        %v2146 = vpop.xlane.xlu0 %2145
        %v2147 = vadd.f32 %v2107, %v2108
        %2148 = vadd.xlane.f32.xlu0 %v2147
        %v2149 = vpop.xlane.xlu0 %2148
        %v2150 = vadd.f32 %v2109, %v2110
        %2151 = vadd.xlane.f32.xlu0 %v2150
        %v2152 = vpop.xlane.xlu0 %2151
        %v2153 = vadd.f32 %v2111, %v2112
        %2154 = vadd.xlane.f32.xlu0 %v2153
        %v2155 = vpop.xlane.xlu0 %2154
        %v2156 = vadd.f32 %v2113, %v2114
        %2157 = vadd.xlane.f32.xlu0 %v2156
        %v2158 = vpop.xlane.xlu0 %2157
        %v2159 = vadd.f32 %v2115, %v2116
        %2160 = vadd.xlane.f32.xlu0 %v2159
        %v2161 = vpop.xlane.xlu0 %2160
        %v2162 = vadd.f32 %v2117, %v2118
        %2163 = vadd.xlane.f32.xlu0 %v2162
        %v2164 = vpop.xlane.xlu0 %2163
        %v2165 = vadd.f32 %v2119, %v2120
        %2166 = vadd.xlane.f32.xlu0 %v2165
        %v2167 = vpop.xlane.xlu0 %2166
        %v2168 = vadd.f32 %v2121, %v2122
        %2169 = vadd.xlane.f32.xlu0 %v2168
        %v2170 = vpop.xlane.xlu0 %2169
        %v2171 = vrcp.pop %v2125
        %v2172 = vrcp.pop %v2128
        %v2173 = vrcp.pop %v2131
        %v2174 = vrcp.pop %v2134
        %v2175 = vrcp.pop %v2137
        %v2176 = vrcp.pop %v2140
        %v2177 = vrcp.pop %v2143
        %v2178 = vrcp.pop %v2146
        %v2179 = vrcp.pop %v2149
        %v2180 = vrcp.pop %v2152
        %v2181 = vrcp.pop %v2155
        %v2182 = vrcp.pop %v2158
        %v2183 = vrcp.pop %v2161
        %v2184 = vrcp.pop %v2164
        %v2185 = vrcp.pop %v2167
        %v2186 = vrcp.pop %v2170
        %v2187 = vpack.c.bf16 %v2172, %v2171
        %v2188 = vpack.c.bf16 %v2174, %v2173
        %v2189 = vpack.c.bf16 %v2176, %v2175
        %v2190 = vpack.c.bf16 %v2178, %v2177
        %v2191 = vpack.c.bf16 %v2180, %v2179
        %v2192 = vpack.c.bf16 %v2182, %v2181
        %v2193 = vpack.c.bf16 %v2184, %v2183
        %v2194 = vpack.c.bf16 %v2186, %v2185
        %v2195 = vmul.bf16 %v2045, %v2187
        %v2196 = vmul.bf16 %v2048, %v2187
        %v2197 = vmul.bf16 %v2051, %v2188
        %v2198 = vmul.bf16 %v2054, %v2188
        %v2199 = vmul.bf16 %v2057, %v2189
        %v2200 = vmul.bf16 %v2060, %v2189
        %v2201 = vmul.bf16 %v2063, %v2190
        %v2202 = vmul.bf16 %v2066, %v2190
        %v2203 = vmul.bf16 %v2069, %v2191
        %v2204 = vmul.bf16 %v2072, %v2191
        %v2205 = vmul.bf16 %v2075, %v2192
        %v2206 = vmul.bf16 %v2078, %v2192
        %v2207 = vmul.bf16 %v2081, %v2193
        %v2208 = vmul.bf16 %v2084, %v2193
        %v2209 = vmul.bf16 %v2087, %v2194
        %v2210 = vmul.bf16 %v2090, %v2194
        %v2211 = vld [vmem:[#allocation3] sm:$0xff]
        %v2212 = vld [vmem:[#allocation3 + $0x8] sm:$0xff]
        %v2213 = vld [vmem:[#allocation3 + $0x10] sm:$0xff]
        %v2214 = vld [vmem:[#allocation3 + $0x18] sm:$0xff]
        %v2215 = vld [vmem:[#allocation3 + $0x20] sm:$0xff]
        %v2216 = vld [vmem:[#allocation3 + $0x28] sm:$0xff]
        %v2217 = vld [vmem:[#allocation3 + $0x30] sm:$0xff]
        %v2218 = vld [vmem:[#allocation3 + $0x38] sm:$0xff]
        %v2219 = vld [vmem:[#allocation3 + $0x40] sm:$0xff]
        %v2220 = vld [vmem:[#allocation3 + $0x48] sm:$0xff]
        %v2221 = vld [vmem:[#allocation3 + $0x50] sm:$0xff]
        %v2222 = vld [vmem:[#allocation3 + $0x58] sm:$0xff]
        %v2223 = vld [vmem:[#allocation3 + $0x60] sm:$0xff]
        %v2224 = vld [vmem:[#allocation3 + $0x68] sm:$0xff]
        %v2225 = vld [vmem:[#allocation3 + $0x70] sm:$0xff]
        %v2226 = vld [vmem:[#allocation3 + $0x78] sm:$0xff]
        %2227 = vmatprep.subr.bf16.mxu0 0
        %2228 = vmatpush1.bf16.msra.mxu0 %v2211
        %2229 = vmatprep.subr.bf16.mxu0 0
        %2230 = vmatpush1.bf16.msra.mxu0 %v2212
        %2231 = vmatprep.subr.bf16.mxu0 0
        %2232 = vmatpush1.bf16.msra.mxu0 %v2213
        %2233 = vmatprep.subr.bf16.mxu0 0
        %2234 = vmatpush1.bf16.msra.mxu0 %v2214
        %2235 = vmatprep.subr.bf16.mxu0 0
        %2236 = vmatpush1.bf16.msra.mxu0 %v2215
        %2237 = vmatprep.subr.bf16.mxu0 0
        %2238 = vmatpush1.bf16.msra.mxu0 %v2216
        %2239 = vmatprep.subr.bf16.mxu0 0
        %2240 = vmatpush1.bf16.msra.mxu0 %v2217
        %2241 = vmatprep.subr.bf16.mxu0 0
        %2242 = vmatpush1.bf16.msra.mxu0 %v2218
        %2243 = vmatprep.subr.bf16.mxu0 0
        %2244 = vmatpush1.bf16.msra.mxu0 %v2219
        %2245 = vmatprep.subr.bf16.mxu0 0
        %2246 = vmatpush1.bf16.msra.mxu0 %v2220
        %2247 = vmatprep.subr.bf16.mxu0 0
        %2248 = vmatpush1.bf16.msra.mxu0 %v2221
        %2249 = vmatprep.subr.bf16.mxu0 0
        %2250 = vmatpush1.bf16.msra.mxu0 %v2222
        %2251 = vmatprep.subr.bf16.mxu0 0
        %2252 = vmatpush1.bf16.msra.mxu0 %v2223
        %2253 = vmatprep.subr.bf16.mxu0 0
        %2254 = vmatpush1.bf16.msra.mxu0 %v2224
        %2255 = vmatprep.subr.bf16.mxu0 0
        %2256 = vmatpush1.bf16.msra.mxu0 %v2225
        %2257 = vmatprep.subr.bf16.mxu0 0
        %2258 = vmatpush1.bf16.msra.mxu0 %v2226
        %2259 = vmatprep.mubr.bf16.mxu0 %v2196
        %2260 = vmatmul.mubr.bf16.gmra.mrb[0].mxu0 %v2195
        %v2261 = vpop.f32.mrb[0].mxu0
        %v2262 = vadd.f32 0.0, %v2261
        %v2263 = vpop.f32.mrb[0].mxu0
        %v2264 = vpop.f32.mrb[0].mxu0
        %v2265 = vadd.f32 0.0, %v2264
        %v2266 = vpop.f32.mrb[0].mxu0
        %2267 = vmatprep.mubr.bf16.mxu0 %v2198
        %2268 = vmatmul.mubr.bf16.gmra.mrb[0].mxu0 %v2197
        %v2269 = vpop.f32.mrb[0].mxu0
        %v2270 = vadd.f32 0.0, %v2269
        %v2271 = vpop.f32.mrb[0].mxu0
        %v2272 = vpop.f32.mrb[0].mxu0
        %v2273 = vadd.f32 0.0, %v2272
        %v2274 = vpop.f32.mrb[0].mxu0
        %2275 = vmatprep.mubr.bf16.mxu0 %v2200
        %2276 = vmatmul.mubr.bf16.gmra.mrb[0].mxu0 %v2199
        %v2277 = vpop.f32.mrb[0].mxu0
        %v2278 = vadd.f32 0.0, %v2277
        %v2279 = vpop.f32.mrb[0].mxu0
        %v2280 = vpop.f32.mrb[0].mxu0
        %v2281 = vadd.f32 0.0, %v2280
        %v2282 = vpop.f32.mrb[0].mxu0
        %2283 = vmatprep.mubr.bf16.mxu0 %v2202
        %2284 = vmatmul.mubr.bf16.gmra.mrb[0].mxu0 %v2201
        %v2285 = vpop.f32.mrb[0].mxu0
        %v2286 = vadd.f32 0.0, %v2285
        %v2287 = vpop.f32.mrb[0].mxu0
        %v2288 = vpop.f32.mrb[0].mxu0
        %v2289 = vadd.f32 0.0, %v2288
        %v2290 = vpop.f32.mrb[0].mxu0
        %2291 = vmatprep.mubr.bf16.mxu0 %v2204
        %2292 = vmatmul.mubr.bf16.gmra.mrb[0].mxu0 %v2203
        %v2293 = vpop.f32.mrb[0].mxu0
        %v2294 = vadd.f32 0.0, %v2293
        %v2295 = vpop.f32.mrb[0].mxu0
        %v2296 = vpop.f32.mrb[0].mxu0
        %v2297 = vadd.f32 0.0, %v2296
        %v2298 = vpop.f32.mrb[0].mxu0
        %2299 = vmatprep.mubr.bf16.mxu0 %v2206
        %2300 = vmatmul.mubr.bf16.gmra.mrb[0].mxu0 %v2205
        %v2301 = vpop.f32.mrb[0].mxu0
        %v2302 = vadd.f32 0.0, %v2301
        %v2303 = vpop.f32.mrb[0].mxu0
        %v2304 = vpop.f32.mrb[0].mxu0
        %v2305 = vadd.f32 0.0, %v2304
        %v2306 = vpop.f32.mrb[0].mxu0
        %2307 = vmatprep.mubr.bf16.mxu0 %v2208
        %2308 = vmatmul.mubr.bf16.gmra.mrb[0].mxu0 %v2207
        %v2309 = vpop.f32.mrb[0].mxu0
        %v2310 = vadd.f32 0.0, %v2309
        %v2311 = vpop.f32.mrb[0].mxu0
        %v2312 = vpop.f32.mrb[0].mxu0
        %v2313 = vadd.f32 0.0, %v2312
        %v2314 = vpop.f32.mrb[0].mxu0
        %2315 = vmatprep.mubr.bf16.mxu0 %v2210
        %2316 = vmatmul.mubr.bf16.gmra.mrb[0].mxu0 %v2209
        %v2317 = vpop.f32.mrb[0].mxu0
        %v2318 = vadd.f32 0.0, %v2317
        %v2319 = vpop.f32.mrb[0].mxu0
        %v2320 = vpop.f32.mrb[0].mxu0
        %v2321 = vadd.f32 0.0, %v2320
        %v2322 = vpop.f32.mrb[0].mxu0
        %2323 = vdwg.mxu0
        %v2324 = vpack.c.bf16 %v2265, %v2262
        %v2325 = vpack.c.bf16 %v2273, %v2270
        %v2326 = vpack.c.bf16 %v2281, %v2278
        %v2327 = vpack.c.bf16 %v2289, %v2286
        %v2328 = vpack.c.bf16 %v2297, %v2294
        %v2329 = vpack.c.bf16 %v2305, %v2302
        %v2330 = vpack.c.bf16 %v2313, %v2310
        %v2331 = vpack.c.bf16 %v2321, %v2318
        %2332 = vst.msk [vmem:[#allocation5] sm:$0xff] %vm1809, %v2324
        %2333 = vst.msk [vmem:[#allocation5 + $0x8] sm:$0xff] %vm1809, %v2325
        %2334 = vst.msk [vmem:[#allocation5 + $0x10] sm:$0xff] %vm1809, %v2326
        %2335 = vst.msk [vmem:[#allocation5 + $0x18] sm:$0xff] %vm1809, %v2327
        %2336 = vst.msk [vmem:[#allocation5 + $0x20] sm:$0xff] %vm1809, %v2328
        %2337 = vst.msk [vmem:[#allocation5 + $0x28] sm:$0xff] %vm1809, %v2329
        %2338 = vst.msk [vmem:[#allocation5 + $0x30] sm:$0xff] %vm1809, %v2330
        %2339 = vst.msk [vmem:[#allocation5 + $0x38] sm:$0xff] %vm1809, %v2331
        %v2340 = vld [vmem:[#allocation4] sm:$0xff]
        %v2341 = vld [vmem:[#allocation4 + $0x8] sm:$0xff]
        %v2342 = vld [vmem:[#allocation4 + $0x10] sm:$0xff]
        %v2343 = vld [vmem:[#allocation4 + $0x18] sm:$0xff]
        %v2344 = vld [vmem:[#allocation4 + $0x20] sm:$0xff]
        %v2345 = vld [vmem:[#allocation4 + $0x28] sm:$0xff]
        %v2346 = vld [vmem:[#allocation4 + $0x30] sm:$0xff]
        %v2347 = vld [vmem:[#allocation4 + $0x38] sm:$0xff]
        %v2348 = vld [vmem:[#allocation2 + $0x20] sm:$0xff]
        %v2349 = vld [vmem:[#allocation2 + $0x28] sm:$0xff]
        %v2350 = vld [vmem:[#allocation2 + $0x30] sm:$0xff]
        %v2351 = vld [vmem:[#allocation2 + $0x38] sm:$0xff]
        %2360 = vrot.lane.b32.xlu0 %v2340, 96
        %v2361 = vpop.permute.xlu0 %2360
        %2362 = vrot.lane.b32.xlu0 %v2341, 96
        %v2363 = vpop.permute.xlu0 %2362
        %2364 = vrot.lane.b32.xlu0 %v2342, 96
        %v2365 = vpop.permute.xlu0 %2364
        %2366 = vrot.lane.b32.xlu0 %v2343, 96
        %v2367 = vpop.permute.xlu0 %2366
        %2368 = vrot.lane.b32.xlu0 %v2344, 96
        %v2369 = vpop.permute.xlu0 %2368
        %2370 = vrot.lane.b32.xlu0 %v2345, 96
        %v2371 = vpop.permute.xlu0 %2370
        %2372 = vrot.lane.b32.xlu0 %v2346, 96
        %v2373 = vpop.permute.xlu0 %2372
        %2374 = vrot.lane.b32.xlu0 %v2347, 96
        %v2375 = vpop.permute.xlu0 %2374
        %v2377 = vsel %vm1809, %v2361, 0
        %v2380 = vsel %vm1809, %v2363, 0
        %v2383 = vsel %vm1809, %v2365, 0
        %v2386 = vsel %vm1809, %v2367, 0
        %v2389 = vsel %vm1809, %v2369, 0
        %v2392 = vsel %vm1809, %v2371, 0
        %v2395 = vsel %vm1809, %v2373, 0
        %v2398 = vsel %vm1809, %v2375, 0
        %2400 = vmatprep.subr.bf16.mxu0 %v2349
        %2401 = vmatpush1.bf16.msra.mxu0 %v2348
        %2402 = vmatprep.subr.bf16.mxu0 %v2351
        %2403 = vmatpush1.bf16.msra.mxu0 %v2350
        %2404 = vmatprep.subr.bf16.mxu0 0
        %2405 = vmatpush1.bf16.msra.mxu0 0
        %2406 = vmatprep.subr.bf16.mxu0 0
        %2407 = vmatpush1.bf16.msra.mxu0 0
        %2408 = vmatprep.subr.bf16.mxu0 0
        %2409 = vmatpush1.bf16.msra.mxu0 0
        %2410 = vmatprep.subr.bf16.mxu0 0
        %2411 = vmatpush1.bf16.msra.mxu0 0
        %2412 = vmatprep.subr.bf16.mxu0 0
        %2413 = vmatpush1.bf16.msra.mxu0 0
        %2414 = vmatprep.subr.bf16.mxu0 0
        %2415 = vmatpush1.bf16.msra.mxu0 0
        %2416 = vmatprep.subr.bf16.mxu0 0
        %2417 = vmatpush1.bf16.msra.mxu0 0
        %2418 = vmatprep.subr.bf16.mxu0 0
        %2419 = vmatpush1.bf16.msra.mxu0 0
        %2420 = vmatprep.subr.bf16.mxu0 0
        %2421 = vmatpush1.bf16.msra.mxu0 0
        %2422 = vmatprep.subr.bf16.mxu0 0
        %2423 = vmatpush1.bf16.msra.mxu0 0
        %2424 = vmatprep.subr.bf16.mxu0 0
        %2425 = vmatpush1.bf16.msra.mxu0 0
        %2426 = vmatprep.subr.bf16.mxu0 0
        %2427 = vmatpush1.bf16.msra.mxu0 0
        %2428 = vmatprep.subr.bf16.mxu0 0
        %2429 = vmatpush1.bf16.msra.mxu0 0
        %2430 = vmatprep.subr.bf16.mxu0 0
        %2431 = vmatpush1.bf16.msra.mxu0 0
        %2432 = vmatprep.mubr.bf16.mxu0 0
        %2433 = vmatmul.mubr.bf16.gmra.mrb[0].mxu0 %v2377
        %v2434 = vpop.f32.mrb[0].mxu0
        %v2435 = vadd.f32 0.0, %v2434
        %v2436 = vpop.f32.mrb[0].mxu0
        %v2437 = vadd.f32 0.0, %v2436
        %v2438 = vpop.f32.mrb[0].mxu0
        %v2439 = vadd.f32 0.0, %v2438
        %v2440 = vpop.f32.mrb[0].mxu0
        %v2441 = vadd.f32 0.0, %v2440
        %2442 = vmatprep.mubr.bf16.mxu0 0
        %2443 = vmatmul.mubr.bf16.gmra.mrb[0].mxu0 %v2380
        %v2444 = vpop.f32.mrb[0].mxu0
        %v2445 = vadd.f32 0.0, %v2444
        %v2446 = vpop.f32.mrb[0].mxu0
        %v2447 = vadd.f32 0.0, %v2446
        %v2448 = vpop.f32.mrb[0].mxu0
        %v2449 = vadd.f32 0.0, %v2448
        %v2450 = vpop.f32.mrb[0].mxu0
        %v2451 = vadd.f32 0.0, %v2450
        %2452 = vmatprep.mubr.bf16.mxu0 0
        %2453 = vmatmul.mubr.bf16.gmra.mrb[0].mxu0 %v2383
        %v2454 = vpop.f32.mrb[0].mxu0
        %v2455 = vadd.f32 0.0, %v2454
        %v2456 = vpop.f32.mrb[0].mxu0
        %v2457 = vadd.f32 0.0, %v2456
        %v2458 = vpop.f32.mrb[0].mxu0
        %v2459 = vadd.f32 0.0, %v2458
        %v2460 = vpop.f32.mrb[0].mxu0
        %v2461 = vadd.f32 0.0, %v2460
        %2462 = vmatprep.mubr.bf16.mxu0 0
        %2463 = vmatmul.mubr.bf16.gmra.mrb[0].mxu0 %v2386
        %v2464 = vpop.f32.mrb[0].mxu0
        %v2465 = vadd.f32 0.0, %v2464
        %v2466 = vpop.f32.mrb[0].mxu0
        %v2467 = vadd.f32 0.0, %v2466
        %v2468 = vpop.f32.mrb[0].mxu0
        %v2469 = vadd.f32 0.0, %v2468
        %v2470 = vpop.f32.mrb[0].mxu0
        %v2471 = vadd.f32 0.0, %v2470
        %2472 = vmatprep.mubr.bf16.mxu0 0
        %2473 = vmatmul.mubr.bf16.gmra.mrb[0].mxu0 %v2389
        %v2474 = vpop.f32.mrb[0].mxu0
        %v2475 = vadd.f32 0.0, %v2474
        %v2476 = vpop.f32.mrb[0].mxu0
        %v2477 = vadd.f32 0.0, %v2476
        %v2478 = vpop.f32.mrb[0].mxu0
        %v2479 = vadd.f32 0.0, %v2478
        %v2480 = vpop.f32.mrb[0].mxu0
        %v2481 = vadd.f32 0.0, %v2480
        %2482 = vmatprep.mubr.bf16.mxu0 0
        %2483 = vmatmul.mubr.bf16.gmra.mrb[0].mxu0 %v2392
        %v2484 = vpop.f32.mrb[0].mxu0
        %v2485 = vadd.f32 0.0, %v2484
        %v2486 = vpop.f32.mrb[0].mxu0
        %v2487 = vadd.f32 0.0, %v2486
        %v2488 = vpop.f32.mrb[0].mxu0
        %v2489 = vadd.f32 0.0, %v2488
        %v2490 = vpop.f32.mrb[0].mxu0
        %v2491 = vadd.f32 0.0, %v2490
        %2492 = vmatprep.mubr.bf16.mxu0 0
        %2493 = vmatmul.mubr.bf16.gmra.mrb[0].mxu0 %v2395
        %v2494 = vpop.f32.mrb[0].mxu0
        %v2495 = vadd.f32 0.0, %v2494
        %v2496 = vpop.f32.mrb[0].mxu0
        %v2497 = vadd.f32 0.0, %v2496
        %v2498 = vpop.f32.mrb[0].mxu0
        %v2499 = vadd.f32 0.0, %v2498
        %v2500 = vpop.f32.mrb[0].mxu0
        %v2501 = vadd.f32 0.0, %v2500
        %2502 = vmatprep.mubr.bf16.mxu0 0
        %2503 = vmatmul.mubr.bf16.gmra.mrb[0].mxu0 %v2398
        %v2504 = vpop.f32.mrb[0].mxu0
        %v2505 = vadd.f32 0.0, %v2504
        %v2506 = vpop.f32.mrb[0].mxu0
        %v2507 = vadd.f32 0.0, %v2506
        %v2508 = vpop.f32.mrb[0].mxu0
        %v2509 = vadd.f32 0.0, %v2508
        %v2510 = vpop.f32.mrb[0].mxu0
        %v2511 = vadd.f32 0.0, %v2510
        %2512 = vdwg.mxu0
        %v2513 = vmax.f32 %v2435, %v2437
        %2514 = vmax.xlane.f32.xlu0 %v2513
        %v2515 = vpop.xlane.xlu0 %2514
        %v2516 = vmax.f32 %v2439, %v2441
        %2517 = vmax.xlane.f32.xlu0 %v2516
        %v2518 = vpop.xlane.xlu0 %2517
        %v2519 = vmax.f32 %v2445, %v2447
        %2520 = vmax.xlane.f32.xlu0 %v2519
        %v2521 = vpop.xlane.xlu0 %2520
        %v2522 = vmax.f32 %v2449, %v2451
        %2523 = vmax.xlane.f32.xlu0 %v2522
        %v2524 = vpop.xlane.xlu0 %2523
        %v2525 = vmax.f32 %v2455, %v2457
        %2526 = vmax.xlane.f32.xlu0 %v2525
        %v2527 = vpop.xlane.xlu0 %2526
        %v2528 = vmax.f32 %v2459, %v2461
        %2529 = vmax.xlane.f32.xlu0 %v2528
        %v2530 = vpop.xlane.xlu0 %2529
        %v2531 = vmax.f32 %v2465, %v2467
        %2532 = vmax.xlane.f32.xlu0 %v2531
        %v2533 = vpop.xlane.xlu0 %2532
        %v2534 = vmax.f32 %v2469, %v2471
        %2535 = vmax.xlane.f32.xlu0 %v2534
        %v2536 = vpop.xlane.xlu0 %2535
        %v2537 = vmax.f32 %v2475, %v2477
        %2538 = vmax.xlane.f32.xlu0 %v2537
        %v2539 = vpop.xlane.xlu0 %2538
        %v2540 = vmax.f32 %v2479, %v2481
        %2541 = vmax.xlane.f32.xlu0 %v2540
        %v2542 = vpop.xlane.xlu0 %2541
        %v2543 = vmax.f32 %v2485, %v2487
        %2544 = vmax.xlane.f32.xlu0 %v2543
        %v2545 = vpop.xlane.xlu0 %2544
        %v2546 = vmax.f32 %v2489, %v2491
        %2547 = vmax.xlane.f32.xlu0 %v2546
        %v2548 = vpop.xlane.xlu0 %2547
        %v2549 = vmax.f32 %v2495, %v2497
        %2550 = vmax.xlane.f32.xlu0 %v2549
        %v2551 = vpop.xlane.xlu0 %2550
        %v2552 = vmax.f32 %v2499, %v2501
        %2553 = vmax.xlane.f32.xlu0 %v2552
        %v2554 = vpop.xlane.xlu0 %2553
        %v2555 = vmax.f32 %v2505, %v2507
        %2556 = vmax.xlane.f32.xlu0 %v2555
        %v2557 = vpop.xlane.xlu0 %2556
        %v2558 = vmax.f32 %v2509, %v2511
        %2559 = vmax.xlane.f32.xlu0 %v2558
        %v2560 = vpop.xlane.xlu0 %2559
        %v2561 = vsub.f32 %v2435, %v2515
        %v2562 = vsub.f32 %v2437, %v2515
        %v2563 = vsub.f32 %v2439, %v2518
        %v2564 = vsub.f32 %v2441, %v2518
        %v2565 = vsub.f32 %v2445, %v2521
        %v2566 = vsub.f32 %v2447, %v2521
        %v2567 = vsub.f32 %v2449, %v2524
        %v2568 = vsub.f32 %v2451, %v2524
        %v2569 = vsub.f32 %v2455, %v2527
        %v2570 = vsub.f32 %v2457, %v2527
        %v2571 = vsub.f32 %v2459, %v2530
        %v2572 = vsub.f32 %v2461, %v2530
        %v2573 = vsub.f32 %v2465, %v2533
        %v2574 = vsub.f32 %v2467, %v2533
        %v2575 = vsub.f32 %v2469, %v2536
        %v2576 = vsub.f32 %v2471, %v2536
        %v2577 = vsub.f32 %v2475, %v2539
        %v2578 = vsub.f32 %v2477, %v2539
        %v2579 = vsub.f32 %v2479, %v2542
        %v2580 = vsub.f32 %v2481, %v2542
        %v2581 = vsub.f32 %v2485, %v2545
        %v2582 = vsub.f32 %v2487, %v2545
        %v2583 = vsub.f32 %v2489, %v2548
        %v2584 = vsub.f32 %v2491, %v2548
        %v2585 = vsub.f32 %v2495, %v2551
        %v2586 = vsub.f32 %v2497, %v2551
        %v2587 = vsub.f32 %v2499, %v2554
        %v2588 = vsub.f32 %v2501, %v2554
        %v2589 = vsub.f32 %v2505, %v2557
        %v2590 = vsub.f32 %v2507, %v2557
        %v2591 = vsub.f32 %v2509, %v2560
        %v2592 = vsub.f32 %v2511, %v2560
        %v2593 = vpack.c.bf16 %v2563, %v2561
        %v2594 = vpack.c.bf16 %v2564, %v2562
        %v2595 = vpack.c.bf16 %v2567, %v2565
        %v2596 = vpack.c.bf16 %v2568, %v2566
        %v2597 = vpack.c.bf16 %v2571, %v2569
        %v2598 = vpack.c.bf16 %v2572, %v2570
        %v2599 = vpack.c.bf16 %v2575, %v2573
        %v2600 = vpack.c.bf16 %v2576, %v2574
        %v2601 = vpack.c.bf16 %v2579, %v2577
        %v2602 = vpack.c.bf16 %v2580, %v2578
        %v2603 = vpack.c.bf16 %v2583, %v2581
        %v2604 = vpack.c.bf16 %v2584, %v2582
        %v2605 = vpack.c.bf16 %v2587, %v2585
        %v2606 = vpack.c.bf16 %v2588, %v2586
        %v2607 = vpack.c.bf16 %v2591, %v2589
        %v2608 = vpack.c.bf16 %v2592, %v2590
        %v2610 = vmul.bf16 %v2593, 1069105081
        %v2611 = vpow.bf16.pop %v2610
        %v2613 = vmul.bf16 %v2594, 1069105081
        %v2614 = vpow.bf16.pop %v2613
        %v2616 = vmul.bf16 %v2595, 1069105081
        %v2617 = vpow.bf16.pop %v2616
        %v2619 = vmul.bf16 %v2596, 1069105081
        %v2620 = vpow.bf16.pop %v2619
        %v2622 = vmul.bf16 %v2597, 1069105081
        %v2623 = vpow.bf16.pop %v2622
        %v2625 = vmul.bf16 %v2598, 1069105081
        %v2626 = vpow.bf16.pop %v2625
        %v2628 = vmul.bf16 %v2599, 1069105081
        %v2629 = vpow.bf16.pop %v2628
        %v2631 = vmul.bf16 %v2600, 1069105081
        %v2632 = vpow.bf16.pop %v2631
        %v2634 = vmul.bf16 %v2601, 1069105081
        %v2635 = vpow.bf16.pop %v2634
        %v2637 = vmul.bf16 %v2602, 1069105081
        %v2638 = vpow.bf16.pop %v2637
        %v2640 = vmul.bf16 %v2603, 1069105081
        %v2641 = vpow.bf16.pop %v2640
        %v2643 = vmul.bf16 %v2604, 1069105081
        %v2644 = vpow.bf16.pop %v2643
        %v2646 = vmul.bf16 %v2605, 1069105081
        %v2647 = vpow.bf16.pop %v2646
        %v2649 = vmul.bf16 %v2606, 1069105081
        %v2650 = vpow.bf16.pop %v2649
        %v2652 = vmul.bf16 %v2607, 1069105081
        %v2653 = vpow.bf16.pop %v2652
        %v2655 = vmul.bf16 %v2608, 1069105081
        %v2656 = vpow.bf16.pop %v2655
        %v2657 = vunpack.c.l.bf16 %v2611
        %v2658 = vunpack.c.l.bf16 %v2614
        %v2659 = vunpack.c.h.bf16 %v2611
        %v2660 = vunpack.c.h.bf16 %v2614
        %v2661 = vunpack.c.l.bf16 %v2617
        %v2662 = vunpack.c.l.bf16 %v2620
        %v2663 = vunpack.c.h.bf16 %v2617
        %v2664 = vunpack.c.h.bf16 %v2620
        %v2665 = vunpack.c.l.bf16 %v2623
        %v2666 = vunpack.c.l.bf16 %v2626
        %v2667 = vunpack.c.h.bf16 %v2623
        %v2668 = vunpack.c.h.bf16 %v2626
        %v2669 = vunpack.c.l.bf16 %v2629
        %v2670 = vunpack.c.l.bf16 %v2632
        %v2671 = vunpack.c.h.bf16 %v2629
        %v2672 = vunpack.c.h.bf16 %v2632
        %v2673 = vunpack.c.l.bf16 %v2635
        %v2674 = vunpack.c.l.bf16 %v2638
        %v2675 = vunpack.c.h.bf16 %v2635
        %v2676 = vunpack.c.h.bf16 %v2638
        %v2677 = vunpack.c.l.bf16 %v2641
        %v2678 = vunpack.c.l.bf16 %v2644
        %v2679 = vunpack.c.h.bf16 %v2641
        %v2680 = vunpack.c.h.bf16 %v2644
        %v2681 = vunpack.c.l.bf16 %v2647
        %v2682 = vunpack.c.l.bf16 %v2650
        %v2683 = vunpack.c.h.bf16 %v2647
        %v2684 = vunpack.c.h.bf16 %v2650
        %v2685 = vunpack.c.l.bf16 %v2653
        %v2686 = vunpack.c.l.bf16 %v2656
        %v2687 = vunpack.c.h.bf16 %v2653
        %v2688 = vunpack.c.h.bf16 %v2656
        %v2689 = vadd.f32 %v2657, %v2658
        %2690 = vadd.xlane.f32.xlu0 %v2689
        %v2691 = vpop.xlane.xlu0 %2690
        %v2692 = vadd.f32 %v2659, %v2660
        %2693 = vadd.xlane.f32.xlu0 %v2692
        %v2694 = vpop.xlane.xlu0 %2693
        %v2695 = vadd.f32 %v2661, %v2662
        %2696 = vadd.xlane.f32.xlu0 %v2695
        %v2697 = vpop.xlane.xlu0 %2696
        %v2698 = vadd.f32 %v2663, %v2664
        %2699 = vadd.xlane.f32.xlu0 %v2698
        %v2700 = vpop.xlane.xlu0 %2699
        %v2701 = vadd.f32 %v2665, %v2666
        %2702 = vadd.xlane.f32.xlu0 %v2701
        %v2703 = vpop.xlane.xlu0 %2702
        %v2704 = vadd.f32 %v2667, %v2668
        %2705 = vadd.xlane.f32.xlu0 %v2704
        %v2706 = vpop.xlane.xlu0 %2705
        %v2707 = vadd.f32 %v2669, %v2670
        %2708 = vadd.xlane.f32.xlu0 %v2707
        %v2709 = vpop.xlane.xlu0 %2708
        %v2710 = vadd.f32 %v2671, %v2672
        %2711 = vadd.xlane.f32.xlu0 %v2710
        %v2712 = vpop.xlane.xlu0 %2711
        %v2713 = vadd.f32 %v2673, %v2674
        %2714 = vadd.xlane.f32.xlu0 %v2713
        %v2715 = vpop.xlane.xlu0 %2714
        %v2716 = vadd.f32 %v2675, %v2676
        %2717 = vadd.xlane.f32.xlu0 %v2716
        %v2718 = vpop.xlane.xlu0 %2717
        %v2719 = vadd.f32 %v2677, %v2678
        %2720 = vadd.xlane.f32.xlu0 %v2719
        %v2721 = vpop.xlane.xlu0 %2720
        %v2722 = vadd.f32 %v2679, %v2680
        %2723 = vadd.xlane.f32.xlu0 %v2722
        %v2724 = vpop.xlane.xlu0 %2723
        %v2725 = vadd.f32 %v2681, %v2682
        %2726 = vadd.xlane.f32.xlu0 %v2725
        %v2727 = vpop.xlane.xlu0 %2726
        %v2728 = vadd.f32 %v2683, %v2684
        %2729 = vadd.xlane.f32.xlu0 %v2728
        %v2730 = vpop.xlane.xlu0 %2729
        %v2731 = vadd.f32 %v2685, %v2686
        %2732 = vadd.xlane.f32.xlu0 %v2731
        %v2733 = vpop.xlane.xlu0 %2732
        %v2734 = vadd.f32 %v2687, %v2688
        %2735 = vadd.xlane.f32.xlu0 %v2734
        %v2736 = vpop.xlane.xlu0 %2735
        %v2737 = vrcp.pop %v2691
        %v2738 = vrcp.pop %v2694
        %v2739 = vrcp.pop %v2697
        %v2740 = vrcp.pop %v2700
        %v2741 = vrcp.pop %v2703
        %v2742 = vrcp.pop %v2706
        %v2743 = vrcp.pop %v2709
        %v2744 = vrcp.pop %v2712
        %v2745 = vrcp.pop %v2715
        %v2746 = vrcp.pop %v2718
        %v2747 = vrcp.pop %v2721
        %v2748 = vrcp.pop %v2724
        %v2749 = vrcp.pop %v2727
        %v2750 = vrcp.pop %v2730
        %v2751 = vrcp.pop %v2733
        %v2752 = vrcp.pop %v2736
        %v2753 = vpack.c.bf16 %v2738, %v2737
        %v2754 = vpack.c.bf16 %v2740, %v2739
        %v2755 = vpack.c.bf16 %v2742, %v2741
        %v2756 = vpack.c.bf16 %v2744, %v2743
        %v2757 = vpack.c.bf16 %v2746, %v2745
        %v2758 = vpack.c.bf16 %v2748, %v2747
        %v2759 = vpack.c.bf16 %v2750, %v2749
        %v2760 = vpack.c.bf16 %v2752, %v2751
        %v2761 = vmul.bf16 %v2611, %v2753
        %v2762 = vmul.bf16 %v2614, %v2753
        %v2763 = vmul.bf16 %v2617, %v2754
        %v2764 = vmul.bf16 %v2620, %v2754
        %v2765 = vmul.bf16 %v2623, %v2755
        %v2766 = vmul.bf16 %v2626, %v2755
        %v2767 = vmul.bf16 %v2629, %v2756
        %v2768 = vmul.bf16 %v2632, %v2756
        %v2769 = vmul.bf16 %v2635, %v2757
        %v2770 = vmul.bf16 %v2638, %v2757
        %v2771 = vmul.bf16 %v2641, %v2758
        %v2772 = vmul.bf16 %v2644, %v2758
        %v2773 = vmul.bf16 %v2647, %v2759
        %v2774 = vmul.bf16 %v2650, %v2759
        %v2775 = vmul.bf16 %v2653, %v2760
        %v2776 = vmul.bf16 %v2656, %v2760
        %v2777 = vld [vmem:[#allocation3] sm:$0xff]
        %v2778 = vld [vmem:[#allocation3 + $0x8] sm:$0xff]
        %v2779 = vld [vmem:[#allocation3 + $0x10] sm:$0xff]
        %v2780 = vld [vmem:[#allocation3 + $0x18] sm:$0xff]
        %v2781 = vld [vmem:[#allocation3 + $0x20] sm:$0xff]
        %v2782 = vld [vmem:[#allocation3 + $0x28] sm:$0xff]
        %v2783 = vld [vmem:[#allocation3 + $0x30] sm:$0xff]
        %v2784 = vld [vmem:[#allocation3 + $0x38] sm:$0xff]
        %v2785 = vld [vmem:[#allocation3 + $0x40] sm:$0xff]
        %v2786 = vld [vmem:[#allocation3 + $0x48] sm:$0xff]
        %v2787 = vld [vmem:[#allocation3 + $0x50] sm:$0xff]
        %v2788 = vld [vmem:[#allocation3 + $0x58] sm:$0xff]
        %v2789 = vld [vmem:[#allocation3 + $0x60] sm:$0xff]
        %v2790 = vld [vmem:[#allocation3 + $0x68] sm:$0xff]
        %v2791 = vld [vmem:[#allocation3 + $0x70] sm:$0xff]
        %v2792 = vld [vmem:[#allocation3 + $0x78] sm:$0xff]
        %2809 = vrot.lane.b32.xlu0 %v2777, 96
        %v2810 = vpop.permute.xlu0 %2809
        %2811 = vrot.lane.b32.xlu0 %v2778, 96
        %v2812 = vpop.permute.xlu0 %2811
        %2813 = vrot.lane.b32.xlu0 %v2779, 96
        %v2814 = vpop.permute.xlu0 %2813
        %2815 = vrot.lane.b32.xlu0 %v2780, 96
        %v2816 = vpop.permute.xlu0 %2815
        %2817 = vrot.lane.b32.xlu0 %v2781, 96
        %v2818 = vpop.permute.xlu0 %2817
        %2819 = vrot.lane.b32.xlu0 %v2782, 96
        %v2820 = vpop.permute.xlu0 %2819
        %2821 = vrot.lane.b32.xlu0 %v2783, 96
        %v2822 = vpop.permute.xlu0 %2821
        %2823 = vrot.lane.b32.xlu0 %v2784, 96
        %v2824 = vpop.permute.xlu0 %2823
        %2825 = vrot.lane.b32.xlu0 %v2785, 96
        %v2826 = vpop.permute.xlu0 %2825
        %2827 = vrot.lane.b32.xlu0 %v2786, 96
        %v2828 = vpop.permute.xlu0 %2827
        %2829 = vrot.lane.b32.xlu0 %v2787, 96
        %v2830 = vpop.permute.xlu0 %2829
        %2831 = vrot.lane.b32.xlu0 %v2788, 96
        %v2832 = vpop.permute.xlu0 %2831
        %2833 = vrot.lane.b32.xlu0 %v2789, 96
        %v2834 = vpop.permute.xlu0 %2833
        %2835 = vrot.lane.b32.xlu0 %v2790, 96
        %v2836 = vpop.permute.xlu0 %2835
        %2837 = vrot.lane.b32.xlu0 %v2791, 96
        %v2838 = vpop.permute.xlu0 %2837
        %2839 = vrot.lane.b32.xlu0 %v2792, 96
        %v2840 = vpop.permute.xlu0 %2839
        %2857 = vmatprep.subr.bf16.mxu0 0
        %2858 = vmatpush1.bf16.msra.mxu0 %v2810
        %2859 = vmatprep.subr.bf16.mxu0 0
        %2860 = vmatpush1.bf16.msra.mxu0 %v2812
        %2861 = vmatprep.subr.bf16.mxu0 0
        %2862 = vmatpush1.bf16.msra.mxu0 %v2814
        %2863 = vmatprep.subr.bf16.mxu0 0
        %2864 = vmatpush1.bf16.msra.mxu0 %v2816
        %2865 = vmatprep.subr.bf16.mxu0 0
        %2866 = vmatpush1.bf16.msra.mxu0 %v2818
        %2867 = vmatprep.subr.bf16.mxu0 0
        %2868 = vmatpush1.bf16.msra.mxu0 %v2820
        %2869 = vmatprep.subr.bf16.mxu0 0
        %2870 = vmatpush1.bf16.msra.mxu0 %v2822
        %2871 = vmatprep.subr.bf16.mxu0 0
        %2872 = vmatpush1.bf16.msra.mxu0 %v2824
        %2873 = vmatprep.subr.bf16.mxu0 0
        %2874 = vmatpush1.bf16.msra.mxu0 %v2826
        %2875 = vmatprep.subr.bf16.mxu0 0
        %2876 = vmatpush1.bf16.msra.mxu0 %v2828
        %2877 = vmatprep.subr.bf16.mxu0 0
        %2878 = vmatpush1.bf16.msra.mxu0 %v2830
        %2879 = vmatprep.subr.bf16.mxu0 0
        %2880 = vmatpush1.bf16.msra.mxu0 %v2832
        %2881 = vmatprep.subr.bf16.mxu0 0
        %2882 = vmatpush1.bf16.msra.mxu0 %v2834
        %2883 = vmatprep.subr.bf16.mxu0 0
        %2884 = vmatpush1.bf16.msra.mxu0 %v2836
        %2885 = vmatprep.subr.bf16.mxu0 0
        %2886 = vmatpush1.bf16.msra.mxu0 %v2838
        %2887 = vmatprep.subr.bf16.mxu0 0
        %2888 = vmatpush1.bf16.msra.mxu0 %v2840
        %2889 = vmatprep.mubr.bf16.mxu0 %v2762
        %2890 = vmatmul.mubr.bf16.gmra.mrb[0].mxu0 %v2761
        %v2891 = vpop.f32.mrb[0].mxu0
        %v2892 = vadd.f32 0.0, %v2891
        %v2893 = vpop.f32.mrb[0].mxu0
        %v2894 = vpop.f32.mrb[0].mxu0
        %v2895 = vadd.f32 0.0, %v2894
        %v2896 = vpop.f32.mrb[0].mxu0
        %2897 = vmatprep.mubr.bf16.mxu0 %v2764
        %2898 = vmatmul.mubr.bf16.gmra.mrb[0].mxu0 %v2763
        %v2899 = vpop.f32.mrb[0].mxu0
        %v2900 = vadd.f32 0.0, %v2899
        %v2901 = vpop.f32.mrb[0].mxu0
        %v2902 = vpop.f32.mrb[0].mxu0
        %v2903 = vadd.f32 0.0, %v2902
        %v2904 = vpop.f32.mrb[0].mxu0
        %2905 = vmatprep.mubr.bf16.mxu0 %v2766
        %2906 = vmatmul.mubr.bf16.gmra.mrb[0].mxu0 %v2765
        %v2907 = vpop.f32.mrb[0].mxu0
        %v2908 = vadd.f32 0.0, %v2907
        %v2909 = vpop.f32.mrb[0].mxu0
        %v2910 = vpop.f32.mrb[0].mxu0
        %v2911 = vadd.f32 0.0, %v2910
        %v2912 = vpop.f32.mrb[0].mxu0
        %2913 = vmatprep.mubr.bf16.mxu0 %v2768
        %2914 = vmatmul.mubr.bf16.gmra.mrb[0].mxu0 %v2767
        %v2915 = vpop.f32.mrb[0].mxu0
        %v2916 = vadd.f32 0.0, %v2915
        %v2917 = vpop.f32.mrb[0].mxu0
        %v2918 = vpop.f32.mrb[0].mxu0
        %v2919 = vadd.f32 0.0, %v2918
        %v2920 = vpop.f32.mrb[0].mxu0
        %2921 = vmatprep.mubr.bf16.mxu0 %v2770
        %2922 = vmatmul.mubr.bf16.gmra.mrb[0].mxu0 %v2769
        %v2923 = vpop.f32.mrb[0].mxu0
        %v2924 = vadd.f32 0.0, %v2923
        %v2925 = vpop.f32.mrb[0].mxu0
        %v2926 = vpop.f32.mrb[0].mxu0
        %v2927 = vadd.f32 0.0, %v2926
        %v2928 = vpop.f32.mrb[0].mxu0
        %2929 = vmatprep.mubr.bf16.mxu0 %v2772
        %2930 = vmatmul.mubr.bf16.gmra.mrb[0].mxu0 %v2771
        %v2931 = vpop.f32.mrb[0].mxu0
        %v2932 = vadd.f32 0.0, %v2931
        %v2933 = vpop.f32.mrb[0].mxu0
        %v2934 = vpop.f32.mrb[0].mxu0
        %v2935 = vadd.f32 0.0, %v2934
        %v2936 = vpop.f32.mrb[0].mxu0
        %2937 = vmatprep.mubr.bf16.mxu0 %v2774
        %2938 = vmatmul.mubr.bf16.gmra.mrb[0].mxu0 %v2773
        %v2939 = vpop.f32.mrb[0].mxu0
        %v2940 = vadd.f32 0.0, %v2939
        %v2941 = vpop.f32.mrb[0].mxu0
        %v2942 = vpop.f32.mrb[0].mxu0
        %v2943 = vadd.f32 0.0, %v2942
        %v2944 = vpop.f32.mrb[0].mxu0
        %2945 = vmatprep.mubr.bf16.mxu0 %v2776
        %2946 = vmatmul.mubr.bf16.gmra.mrb[0].mxu0 %v2775
        %v2947 = vpop.f32.mrb[0].mxu0
        %v2948 = vadd.f32 0.0, %v2947
        %v2949 = vpop.f32.mrb[0].mxu0
        %v2950 = vpop.f32.mrb[0].mxu0
        %v2951 = vadd.f32 0.0, %v2950
        %v2952 = vpop.f32.mrb[0].mxu0
        %2953 = vdwg.mxu0
        %v2954 = vpack.c.bf16 %v2895, %v2892
        %v2955 = vpack.c.bf16 %v2903, %v2900
        %v2956 = vpack.c.bf16 %v2911, %v2908
        %v2957 = vpack.c.bf16 %v2919, %v2916
        %v2958 = vpack.c.bf16 %v2927, %v2924
        %v2959 = vpack.c.bf16 %v2935, %v2932
        %v2960 = vpack.c.bf16 %v2943, %v2940
        %v2961 = vpack.c.bf16 %v2951, %v2948
        %2970 = vrot.lane.b32.xlu0 %v2954, 32
        %v2971 = vpop.permute.xlu0 %2970
        %2972 = vrot.lane.b32.xlu0 %v2955, 32
        %v2973 = vpop.permute.xlu0 %2972
        %2974 = vrot.lane.b32.xlu0 %v2956, 32
        %v2975 = vpop.permute.xlu0 %2974
        %2976 = vrot.lane.b32.xlu0 %v2957, 32
        %v2977 = vpop.permute.xlu0 %2976
        %2978 = vrot.lane.b32.xlu0 %v2958, 32
        %v2979 = vpop.permute.xlu0 %2978
        %2980 = vrot.lane.b32.xlu0 %v2959, 32
        %v2981 = vpop.permute.xlu0 %2980
        %2982 = vrot.lane.b32.xlu0 %v2960, 32
        %v2983 = vpop.permute.xlu0 %2982
        %2984 = vrot.lane.b32.xlu0 %v2961, 32
        %v2985 = vpop.permute.xlu0 %2984
        %vm2994 = vcmask 523520
        %2995 = vst.msk [vmem:[#allocation5] sm:$0xff] %vm2994, %v2971
        %2996 = vst.msk [vmem:[#allocation5 + $0x8] sm:$0xff] %vm2994, %v2973
        %2997 = vst.msk [vmem:[#allocation5 + $0x10] sm:$0xff] %vm2994, %v2975
        %2998 = vst.msk [vmem:[#allocation5 + $0x18] sm:$0xff] %vm2994, %v2977
        %2999 = vst.msk [vmem:[#allocation5 + $0x20] sm:$0xff] %vm2994, %v2979
        %3000 = vst.msk [vmem:[#allocation5 + $0x28] sm:$0xff] %vm2994, %v2981
        %3001 = vst.msk [vmem:[#allocation5 + $0x30] sm:$0xff] %vm2994, %v2983
        %3002 = vst.msk [vmem:[#allocation5 + $0x38] sm:$0xff] %vm2994, %v2985
        %v3003 = vld [vmem:[#allocation4] sm:$0xff]
        %v3004 = vld [vmem:[#allocation4 + $0x8] sm:$0xff]
        %v3005 = vld [vmem:[#allocation4 + $0x10] sm:$0xff]
        %v3006 = vld [vmem:[#allocation4 + $0x18] sm:$0xff]
        %v3007 = vld [vmem:[#allocation4 + $0x20] sm:$0xff]
        %v3008 = vld [vmem:[#allocation4 + $0x28] sm:$0xff]
        %v3009 = vld [vmem:[#allocation4 + $0x30] sm:$0xff]
        %v3010 = vld [vmem:[#allocation4 + $0x38] sm:$0xff]
        %v3011 = vld [vmem:[#allocation2 + $0x40] sm:$0xff]
        %v3012 = vld [vmem:[#allocation2 + $0x48] sm:$0xff]
        %v3013 = vld [vmem:[#allocation2 + $0x50] sm:$0xff]
        %v3014 = vld [vmem:[#allocation2 + $0x58] sm:$0xff]
        %3023 = vrot.lane.b32.xlu0 %v3003, 64
        %v3024 = vpop.permute.xlu0 %3023
        %3025 = vrot.lane.b32.xlu0 %v3004, 64
        %v3026 = vpop.permute.xlu0 %3025
        %3027 = vrot.lane.b32.xlu0 %v3005, 64
        %v3028 = vpop.permute.xlu0 %3027
        %3029 = vrot.lane.b32.xlu0 %v3006, 64
        %v3030 = vpop.permute.xlu0 %3029
        %3031 = vrot.lane.b32.xlu0 %v3007, 64
        %v3032 = vpop.permute.xlu0 %3031
        %3033 = vrot.lane.b32.xlu0 %v3008, 64
        %v3034 = vpop.permute.xlu0 %3033
        %3035 = vrot.lane.b32.xlu0 %v3009, 64
        %v3036 = vpop.permute.xlu0 %3035
        %3037 = vrot.lane.b32.xlu0 %v3010, 64
        %v3038 = vpop.permute.xlu0 %3037
        %v3040 = vsel %vm1809, %v3024, 0
        %v3043 = vsel %vm1809, %v3026, 0
        %v3046 = vsel %vm1809, %v3028, 0
        %v3049 = vsel %vm1809, %v3030, 0
        %v3052 = vsel %vm1809, %v3032, 0
        %v3055 = vsel %vm1809, %v3034, 0
        %v3058 = vsel %vm1809, %v3036, 0
        %v3061 = vsel %vm1809, %v3038, 0
        %3063 = vmatprep.subr.bf16.mxu0 %v3012
        %3064 = vmatpush1.bf16.msra.mxu0 %v3011
        %3065 = vmatprep.subr.bf16.mxu0 %v3014
        %3066 = vmatpush1.bf16.msra.mxu0 %v3013
        %3067 = vmatprep.subr.bf16.mxu0 0
        %3068 = vmatpush1.bf16.msra.mxu0 0
        %3069 = vmatprep.subr.bf16.mxu0 0
        %3070 = vmatpush1.bf16.msra.mxu0 0
        %3071 = vmatprep.subr.bf16.mxu0 0
        %3072 = vmatpush1.bf16.msra.mxu0 0
        %3073 = vmatprep.subr.bf16.mxu0 0
        %3074 = vmatpush1.bf16.msra.mxu0 0
        %3075 = vmatprep.subr.bf16.mxu0 0
        %3076 = vmatpush1.bf16.msra.mxu0 0
        %3077 = vmatprep.subr.bf16.mxu0 0
        %3078 = vmatpush1.bf16.msra.mxu0 0
        %3079 = vmatprep.subr.bf16.mxu0 0
        %3080 = vmatpush1.bf16.msra.mxu0 0
        %3081 = vmatprep.subr.bf16.mxu0 0
        %3082 = vmatpush1.bf16.msra.mxu0 0
        %3083 = vmatprep.subr.bf16.mxu0 0
        %3084 = vmatpush1.bf16.msra.mxu0 0
        %3085 = vmatprep.subr.bf16.mxu0 0
        %3086 = vmatpush1.bf16.msra.mxu0 0
        %3087 = vmatprep.subr.bf16.mxu0 0
        %3088 = vmatpush1.bf16.msra.mxu0 0
        %3089 = vmatprep.subr.bf16.mxu0 0
        %3090 = vmatpush1.bf16.msra.mxu0 0
        %3091 = vmatprep.subr.bf16.mxu0 0
        %3092 = vmatpush1.bf16.msra.mxu0 0
        %3093 = vmatprep.subr.bf16.mxu0 0
        %3094 = vmatpush1.bf16.msra.mxu0 0
        %3095 = vmatprep.mubr.bf16.mxu0 0
        %3096 = vmatmul.mubr.bf16.gmra.mrb[0].mxu0 %v3040
        %v3097 = vpop.f32.mrb[0].mxu0
        %v3098 = vadd.f32 0.0, %v3097
        %v3099 = vpop.f32.mrb[0].mxu0
        %v3100 = vadd.f32 0.0, %v3099
        %v3101 = vpop.f32.mrb[0].mxu0
        %v3102 = vadd.f32 0.0, %v3101
        %v3103 = vpop.f32.mrb[0].mxu0
        %v3104 = vadd.f32 0.0, %v3103
        %3105 = vmatprep.mubr.bf16.mxu0 0
        %3106 = vmatmul.mubr.bf16.gmra.mrb[0].mxu0 %v3043
        %v3107 = vpop.f32.mrb[0].mxu0
        %v3108 = vadd.f32 0.0, %v3107
        %v3109 = vpop.f32.mrb[0].mxu0
        %v3110 = vadd.f32 0.0, %v3109
        %v3111 = vpop.f32.mrb[0].mxu0
        %v3112 = vadd.f32 0.0, %v3111
        %v3113 = vpop.f32.mrb[0].mxu0
        %v3114 = vadd.f32 0.0, %v3113
        %3115 = vmatprep.mubr.bf16.mxu0 0
        %3116 = vmatmul.mubr.bf16.gmra.mrb[0].mxu0 %v3046
        %v3117 = vpop.f32.mrb[0].mxu0
        %v3118 = vadd.f32 0.0, %v3117
        %v3119 = vpop.f32.mrb[0].mxu0
        %v3120 = vadd.f32 0.0, %v3119
        %v3121 = vpop.f32.mrb[0].mxu0
        %v3122 = vadd.f32 0.0, %v3121
        %v3123 = vpop.f32.mrb[0].mxu0
        %v3124 = vadd.f32 0.0, %v3123
        %3125 = vmatprep.mubr.bf16.mxu0 0
        %3126 = vmatmul.mubr.bf16.gmra.mrb[0].mxu0 %v3049
        %v3127 = vpop.f32.mrb[0].mxu0
        %v3128 = vadd.f32 0.0, %v3127
        %v3129 = vpop.f32.mrb[0].mxu0
        %v3130 = vadd.f32 0.0, %v3129
        %v3131 = vpop.f32.mrb[0].mxu0
        %v3132 = vadd.f32 0.0, %v3131
        %v3133 = vpop.f32.mrb[0].mxu0
        %v3134 = vadd.f32 0.0, %v3133
        %3135 = vmatprep.mubr.bf16.mxu0 0
        %3136 = vmatmul.mubr.bf16.gmra.mrb[0].mxu0 %v3052
        %v3137 = vpop.f32.mrb[0].mxu0
        %v3138 = vadd.f32 0.0, %v3137
        %v3139 = vpop.f32.mrb[0].mxu0
        %v3140 = vadd.f32 0.0, %v3139
        %v3141 = vpop.f32.mrb[0].mxu0
        %v3142 = vadd.f32 0.0, %v3141
        %v3143 = vpop.f32.mrb[0].mxu0
        %v3144 = vadd.f32 0.0, %v3143
        %3145 = vmatprep.mubr.bf16.mxu0 0
        %3146 = vmatmul.mubr.bf16.gmra.mrb[0].mxu0 %v3055
        %v3147 = vpop.f32.mrb[0].mxu0
        %v3148 = vadd.f32 0.0, %v3147
        %v3149 = vpop.f32.mrb[0].mxu0
        %v3150 = vadd.f32 0.0, %v3149
        %v3151 = vpop.f32.mrb[0].mxu0
        %v3152 = vadd.f32 0.0, %v3151
        %v3153 = vpop.f32.mrb[0].mxu0
        %v3154 = vadd.f32 0.0, %v3153
        %3155 = vmatprep.mubr.bf16.mxu0 0
        %3156 = vmatmul.mubr.bf16.gmra.mrb[0].mxu0 %v3058
        %v3157 = vpop.f32.mrb[0].mxu0
        %v3158 = vadd.f32 0.0, %v3157
        %v3159 = vpop.f32.mrb[0].mxu0
        %v3160 = vadd.f32 0.0, %v3159
        %v3161 = vpop.f32.mrb[0].mxu0
        %v3162 = vadd.f32 0.0, %v3161
        %v3163 = vpop.f32.mrb[0].mxu0
        %v3164 = vadd.f32 0.0, %v3163
        %3165 = vmatprep.mubr.bf16.mxu0 0
        %3166 = vmatmul.mubr.bf16.gmra.mrb[0].mxu0 %v3061
        %v3167 = vpop.f32.mrb[0].mxu0
        %v3168 = vadd.f32 0.0, %v3167
        %v3169 = vpop.f32.mrb[0].mxu0
        %v3170 = vadd.f32 0.0, %v3169
        %v3171 = vpop.f32.mrb[0].mxu0
        %v3172 = vadd.f32 0.0, %v3171
        %v3173 = vpop.f32.mrb[0].mxu0
        %v3174 = vadd.f32 0.0, %v3173
        %3175 = vdwg.mxu0
        %v3176 = vmax.f32 %v3098, %v3100
        %3177 = vmax.xlane.f32.xlu0 %v3176
        %v3178 = vpop.xlane.xlu0 %3177
        %v3179 = vmax.f32 %v3102, %v3104
        %3180 = vmax.xlane.f32.xlu0 %v3179
        %v3181 = vpop.xlane.xlu0 %3180
        %v3182 = vmax.f32 %v3108, %v3110
        %3183 = vmax.xlane.f32.xlu0 %v3182
        %v3184 = vpop.xlane.xlu0 %3183
        %v3185 = vmax.f32 %v3112, %v3114
        %3186 = vmax.xlane.f32.xlu0 %v3185
        %v3187 = vpop.xlane.xlu0 %3186
        %v3188 = vmax.f32 %v3118, %v3120
        %3189 = vmax.xlane.f32.xlu0 %v3188
        %v3190 = vpop.xlane.xlu0 %3189
        %v3191 = vmax.f32 %v3122, %v3124
        %3192 = vmax.xlane.f32.xlu0 %v3191
        %v3193 = vpop.xlane.xlu0 %3192
        %v3194 = vmax.f32 %v3128, %v3130
        %3195 = vmax.xlane.f32.xlu0 %v3194
        %v3196 = vpop.xlane.xlu0 %3195
        %v3197 = vmax.f32 %v3132, %v3134
        %3198 = vmax.xlane.f32.xlu0 %v3197
        %v3199 = vpop.xlane.xlu0 %3198
        %v3200 = vmax.f32 %v3138, %v3140
        %3201 = vmax.xlane.f32.xlu0 %v3200
        %v3202 = vpop.xlane.xlu0 %3201
        %v3203 = vmax.f32 %v3142, %v3144
        %3204 = vmax.xlane.f32.xlu0 %v3203
        %v3205 = vpop.xlane.xlu0 %3204
        %v3206 = vmax.f32 %v3148, %v3150
        %3207 = vmax.xlane.f32.xlu0 %v3206
        %v3208 = vpop.xlane.xlu0 %3207
        %v3209 = vmax.f32 %v3152, %v3154
        %3210 = vmax.xlane.f32.xlu0 %v3209
        %v3211 = vpop.xlane.xlu0 %3210
        %v3212 = vmax.f32 %v3158, %v3160
        %3213 = vmax.xlane.f32.xlu0 %v3212
        %v3214 = vpop.xlane.xlu0 %3213
        %v3215 = vmax.f32 %v3162, %v3164
        %3216 = vmax.xlane.f32.xlu0 %v3215
        %v3217 = vpop.xlane.xlu0 %3216
        %v3218 = vmax.f32 %v3168, %v3170
        %3219 = vmax.xlane.f32.xlu0 %v3218
        %v3220 = vpop.xlane.xlu0 %3219
        %v3221 = vmax.f32 %v3172, %v3174
        %3222 = vmax.xlane.f32.xlu0 %v3221
        %v3223 = vpop.xlane.xlu0 %3222
        %v3224 = vsub.f32 %v3098, %v3178
        %v3225 = vsub.f32 %v3100, %v3178
        %v3226 = vsub.f32 %v3102, %v3181
        %v3227 = vsub.f32 %v3104, %v3181
        %v3228 = vsub.f32 %v3108, %v3184
        %v3229 = vsub.f32 %v3110, %v3184
        %v3230 = vsub.f32 %v3112, %v3187
        %v3231 = vsub.f32 %v3114, %v3187
        %v3232 = vsub.f32 %v3118, %v3190
        %v3233 = vsub.f32 %v3120, %v3190
        %v3234 = vsub.f32 %v3122, %v3193
        %v3235 = vsub.f32 %v3124, %v3193
        %v3236 = vsub.f32 %v3128, %v3196
        %v3237 = vsub.f32 %v3130, %v3196
        %v3238 = vsub.f32 %v3132, %v3199
        %v3239 = vsub.f32 %v3134, %v3199
        %v3240 = vsub.f32 %v3138, %v3202
        %v3241 = vsub.f32 %v3140, %v3202
        %v3242 = vsub.f32 %v3142, %v3205
        %v3243 = vsub.f32 %v3144, %v3205
        %v3244 = vsub.f32 %v3148, %v3208
        %v3245 = vsub.f32 %v3150, %v3208
        %v3246 = vsub.f32 %v3152, %v3211
        %v3247 = vsub.f32 %v3154, %v3211
        %v3248 = vsub.f32 %v3158, %v3214
        %v3249 = vsub.f32 %v3160, %v3214
        %v3250 = vsub.f32 %v3162, %v3217
        %v3251 = vsub.f32 %v3164, %v3217
        %v3252 = vsub.f32 %v3168, %v3220
        %v3253 = vsub.f32 %v3170, %v3220
        %v3254 = vsub.f32 %v3172, %v3223
        %v3255 = vsub.f32 %v3174, %v3223
        %v3256 = vpack.c.bf16 %v3226, %v3224
        %v3257 = vpack.c.bf16 %v3227, %v3225
        %v3258 = vpack.c.bf16 %v3230, %v3228
        %v3259 = vpack.c.bf16 %v3231, %v3229
        %v3260 = vpack.c.bf16 %v3234, %v3232
        %v3261 = vpack.c.bf16 %v3235, %v3233
        %v3262 = vpack.c.bf16 %v3238, %v3236
        %v3263 = vpack.c.bf16 %v3239, %v3237
        %v3264 = vpack.c.bf16 %v3242, %v3240
        %v3265 = vpack.c.bf16 %v3243, %v3241
        %v3266 = vpack.c.bf16 %v3246, %v3244
        %v3267 = vpack.c.bf16 %v3247, %v3245
        %v3268 = vpack.c.bf16 %v3250, %v3248
        %v3269 = vpack.c.bf16 %v3251, %v3249
        %v3270 = vpack.c.bf16 %v3254, %v3252
        %v3271 = vpack.c.bf16 %v3255, %v3253
        %v3273 = vmul.bf16 %v3256, 1069105081
        %v3274 = vpow.bf16.pop %v3273
        %v3276 = vmul.bf16 %v3257, 1069105081
        %v3277 = vpow.bf16.pop %v3276
        %v3279 = vmul.bf16 %v3258, 1069105081
        %v3280 = vpow.bf16.pop %v3279
        %v3282 = vmul.bf16 %v3259, 1069105081
        %v3283 = vpow.bf16.pop %v3282
        %v3285 = vmul.bf16 %v3260, 1069105081
        %v3286 = vpow.bf16.pop %v3285
        %v3288 = vmul.bf16 %v3261, 1069105081
        %v3289 = vpow.bf16.pop %v3288
        %v3291 = vmul.bf16 %v3262, 1069105081
        %v3292 = vpow.bf16.pop %v3291
        %v3294 = vmul.bf16 %v3263, 1069105081
        %v3295 = vpow.bf16.pop %v3294
        %v3297 = vmul.bf16 %v3264, 1069105081
        %v3298 = vpow.bf16.pop %v3297
        %v3300 = vmul.bf16 %v3265, 1069105081
        %v3301 = vpow.bf16.pop %v3300
        %v3303 = vmul.bf16 %v3266, 1069105081
        %v3304 = vpow.bf16.pop %v3303
        %v3306 = vmul.bf16 %v3267, 1069105081
        %v3307 = vpow.bf16.pop %v3306
        %v3309 = vmul.bf16 %v3268, 1069105081
        %v3310 = vpow.bf16.pop %v3309
        %v3312 = vmul.bf16 %v3269, 1069105081
        %v3313 = vpow.bf16.pop %v3312
        %v3315 = vmul.bf16 %v3270, 1069105081
        %v3316 = vpow.bf16.pop %v3315
        %v3318 = vmul.bf16 %v3271, 1069105081
        %v3319 = vpow.bf16.pop %v3318
        %v3320 = vunpack.c.l.bf16 %v3274
        %v3321 = vunpack.c.l.bf16 %v3277
        %v3322 = vunpack.c.h.bf16 %v3274
        %v3323 = vunpack.c.h.bf16 %v3277
        %v3324 = vunpack.c.l.bf16 %v3280
        %v3325 = vunpack.c.l.bf16 %v3283
        %v3326 = vunpack.c.h.bf16 %v3280
        %v3327 = vunpack.c.h.bf16 %v3283
        %v3328 = vunpack.c.l.bf16 %v3286
        %v3329 = vunpack.c.l.bf16 %v3289
        %v3330 = vunpack.c.h.bf16 %v3286
        %v3331 = vunpack.c.h.bf16 %v3289
        %v3332 = vunpack.c.l.bf16 %v3292
        %v3333 = vunpack.c.l.bf16 %v3295
        %v3334 = vunpack.c.h.bf16 %v3292
        %v3335 = vunpack.c.h.bf16 %v3295
        %v3336 = vunpack.c.l.bf16 %v3298
        %v3337 = vunpack.c.l.bf16 %v3301
        %v3338 = vunpack.c.h.bf16 %v3298
        %v3339 = vunpack.c.h.bf16 %v3301
        %v3340 = vunpack.c.l.bf16 %v3304
        %v3341 = vunpack.c.l.bf16 %v3307
        %v3342 = vunpack.c.h.bf16 %v3304
        %v3343 = vunpack.c.h.bf16 %v3307
        %v3344 = vunpack.c.l.bf16 %v3310
        %v3345 = vunpack.c.l.bf16 %v3313
        %v3346 = vunpack.c.h.bf16 %v3310
        %v3347 = vunpack.c.h.bf16 %v3313
        %v3348 = vunpack.c.l.bf16 %v3316
        %v3349 = vunpack.c.l.bf16 %v3319
        %v3350 = vunpack.c.h.bf16 %v3316
        %v3351 = vunpack.c.h.bf16 %v3319
        %v3352 = vadd.f32 %v3320, %v3321
        %3353 = vadd.xlane.f32.xlu0 %v3352
        %v3354 = vpop.xlane.xlu0 %3353
        %v3355 = vadd.f32 %v3322, %v3323
        %3356 = vadd.xlane.f32.xlu0 %v3355
        %v3357 = vpop.xlane.xlu0 %3356
        %v3358 = vadd.f32 %v3324, %v3325
        %3359 = vadd.xlane.f32.xlu0 %v3358
        %v3360 = vpop.xlane.xlu0 %3359
        %v3361 = vadd.f32 %v3326, %v3327
        %3362 = vadd.xlane.f32.xlu0 %v3361
        %v3363 = vpop.xlane.xlu0 %3362
        %v3364 = vadd.f32 %v3328, %v3329
        %3365 = vadd.xlane.f32.xlu0 %v3364
        %v3366 = vpop.xlane.xlu0 %3365
        %v3367 = vadd.f32 %v3330, %v3331
        %3368 = vadd.xlane.f32.xlu0 %v3367
        %v3369 = vpop.xlane.xlu0 %3368
        %v3370 = vadd.f32 %v3332, %v3333
        %3371 = vadd.xlane.f32.xlu0 %v3370
        %v3372 = vpop.xlane.xlu0 %3371
        %v3373 = vadd.f32 %v3334, %v3335
        %3374 = vadd.xlane.f32.xlu0 %v3373
        %v3375 = vpop.xlane.xlu0 %3374
        %v3376 = vadd.f32 %v3336, %v3337
        %3377 = vadd.xlane.f32.xlu0 %v3376
        %v3378 = vpop.xlane.xlu0 %3377
        %v3379 = vadd.f32 %v3338, %v3339
        %3380 = vadd.xlane.f32.xlu0 %v3379
        %v3381 = vpop.xlane.xlu0 %3380
        %v3382 = vadd.f32 %v3340, %v3341
        %3383 = vadd.xlane.f32.xlu0 %v3382
        %v3384 = vpop.xlane.xlu0 %3383
        %v3385 = vadd.f32 %v3342, %v3343
        %3386 = vadd.xlane.f32.xlu0 %v3385
        %v3387 = vpop.xlane.xlu0 %3386
        %v3388 = vadd.f32 %v3344, %v3345
        %3389 = vadd.xlane.f32.xlu0 %v3388
        %v3390 = vpop.xlane.xlu0 %3389
        %v3391 = vadd.f32 %v3346, %v3347
        %3392 = vadd.xlane.f32.xlu0 %v3391
        %v3393 = vpop.xlane.xlu0 %3392
        %v3394 = vadd.f32 %v3348, %v3349
        %3395 = vadd.xlane.f32.xlu0 %v3394
        %v3396 = vpop.xlane.xlu0 %3395
        %v3397 = vadd.f32 %v3350, %v3351
        %3398 = vadd.xlane.f32.xlu0 %v3397
        %v3399 = vpop.xlane.xlu0 %3398
        %v3400 = vrcp.pop %v3354
        %v3401 = vrcp.pop %v3357
        %v3402 = vrcp.pop %v3360
        %v3403 = vrcp.pop %v3363
        %v3404 = vrcp.pop %v3366
        %v3405 = vrcp.pop %v3369
        %v3406 = vrcp.pop %v3372
        %v3407 = vrcp.pop %v3375
        %v3408 = vrcp.pop %v3378
        %v3409 = vrcp.pop %v3381
        %v3410 = vrcp.pop %v3384
        %v3411 = vrcp.pop %v3387
        %v3412 = vrcp.pop %v3390
        %v3413 = vrcp.pop %v3393
        %v3414 = vrcp.pop %v3396
        %v3415 = vrcp.pop %v3399
        %v3416 = vpack.c.bf16 %v3401, %v3400
        %v3417 = vpack.c.bf16 %v3403, %v3402
        %v3418 = vpack.c.bf16 %v3405, %v3404
        %v3419 = vpack.c.bf16 %v3407, %v3406
        %v3420 = vpack.c.bf16 %v3409, %v3408
        %v3421 = vpack.c.bf16 %v3411, %v3410
        %v3422 = vpack.c.bf16 %v3413, %v3412
        %v3423 = vpack.c.bf16 %v3415, %v3414
        %v3424 = vmul.bf16 %v3274, %v3416
        %v3425 = vmul.bf16 %v3277, %v3416
        %v3426 = vmul.bf16 %v3280, %v3417
        %v3427 = vmul.bf16 %v3283, %v3417
        %v3428 = vmul.bf16 %v3286, %v3418
        %v3429 = vmul.bf16 %v3289, %v3418
        %v3430 = vmul.bf16 %v3292, %v3419
        %v3431 = vmul.bf16 %v3295, %v3419
        %v3432 = vmul.bf16 %v3298, %v3420
        %v3433 = vmul.bf16 %v3301, %v3420
        %v3434 = vmul.bf16 %v3304, %v3421
        %v3435 = vmul.bf16 %v3307, %v3421
        %v3436 = vmul.bf16 %v3310, %v3422
        %v3437 = vmul.bf16 %v3313, %v3422
        %v3438 = vmul.bf16 %v3316, %v3423
        %v3439 = vmul.bf16 %v3319, %v3423
        %v3440 = vld [vmem:[#allocation3] sm:$0xff]
        %v3441 = vld [vmem:[#allocation3 + $0x8] sm:$0xff]
        %v3442 = vld [vmem:[#allocation3 + $0x10] sm:$0xff]
        %v3443 = vld [vmem:[#allocation3 + $0x18] sm:$0xff]
        %v3444 = vld [vmem:[#allocation3 + $0x20] sm:$0xff]
        %v3445 = vld [vmem:[#allocation3 + $0x28] sm:$0xff]
        %v3446 = vld [vmem:[#allocation3 + $0x30] sm:$0xff]
        %v3447 = vld [vmem:[#allocation3 + $0x38] sm:$0xff]
        %v3448 = vld [vmem:[#allocation3 + $0x40] sm:$0xff]
        %v3449 = vld [vmem:[#allocation3 + $0x48] sm:$0xff]
        %v3450 = vld [vmem:[#allocation3 + $0x50] sm:$0xff]
        %v3451 = vld [vmem:[#allocation3 + $0x58] sm:$0xff]
        %v3452 = vld [vmem:[#allocation3 + $0x60] sm:$0xff]
        %v3453 = vld [vmem:[#allocation3 + $0x68] sm:$0xff]
        %v3454 = vld [vmem:[#allocation3 + $0x70] sm:$0xff]
        %v3455 = vld [vmem:[#allocation3 + $0x78] sm:$0xff]
        %3472 = vrot.lane.b32.xlu0 %v3440, 64
        %v3473 = vpop.permute.xlu0 %3472
        %3474 = vrot.lane.b32.xlu0 %v3441, 64
        %v3475 = vpop.permute.xlu0 %3474
        %3476 = vrot.lane.b32.xlu0 %v3442, 64
        %v3477 = vpop.permute.xlu0 %3476
        %3478 = vrot.lane.b32.xlu0 %v3443, 64
        %v3479 = vpop.permute.xlu0 %3478
        %3480 = vrot.lane.b32.xlu0 %v3444, 64
        %v3481 = vpop.permute.xlu0 %3480
        %3482 = vrot.lane.b32.xlu0 %v3445, 64
        %v3483 = vpop.permute.xlu0 %3482
        %3484 = vrot.lane.b32.xlu0 %v3446, 64
        %v3485 = vpop.permute.xlu0 %3484
        %3486 = vrot.lane.b32.xlu0 %v3447, 64
        %v3487 = vpop.permute.xlu0 %3486
        %3488 = vrot.lane.b32.xlu0 %v3448, 64
        %v3489 = vpop.permute.xlu0 %3488
        %3490 = vrot.lane.b32.xlu0 %v3449, 64
        %v3491 = vpop.permute.xlu0 %3490
        %3492 = vrot.lane.b32.xlu0 %v3450, 64
        %v3493 = vpop.permute.xlu0 %3492
        %3494 = vrot.lane.b32.xlu0 %v3451, 64
        %v3495 = vpop.permute.xlu0 %3494
        %3496 = vrot.lane.b32.xlu0 %v3452, 64
        %v3497 = vpop.permute.xlu0 %3496
        %3498 = vrot.lane.b32.xlu0 %v3453, 64
        %v3499 = vpop.permute.xlu0 %3498
        %3500 = vrot.lane.b32.xlu0 %v3454, 64
        %v3501 = vpop.permute.xlu0 %3500
        %3502 = vrot.lane.b32.xlu0 %v3455, 64
        %v3503 = vpop.permute.xlu0 %3502
        %3520 = vmatprep.subr.bf16.mxu0 0
        %3521 = vmatpush1.bf16.msra.mxu0 %v3473
        %3522 = vmatprep.subr.bf16.mxu0 0
        %3523 = vmatpush1.bf16.msra.mxu0 %v3475
        %3524 = vmatprep.subr.bf16.mxu0 0
        %3525 = vmatpush1.bf16.msra.mxu0 %v3477
        %3526 = vmatprep.subr.bf16.mxu0 0
        %3527 = vmatpush1.bf16.msra.mxu0 %v3479
        %3528 = vmatprep.subr.bf16.mxu0 0
        %3529 = vmatpush1.bf16.msra.mxu0 %v3481
        %3530 = vmatprep.subr.bf16.mxu0 0
        %3531 = vmatpush1.bf16.msra.mxu0 %v3483
        %3532 = vmatprep.subr.bf16.mxu0 0
        %3533 = vmatpush1.bf16.msra.mxu0 %v3485
        %3534 = vmatprep.subr.bf16.mxu0 0
        %3535 = vmatpush1.bf16.msra.mxu0 %v3487
        %3536 = vmatprep.subr.bf16.mxu0 0
        %3537 = vmatpush1.bf16.msra.mxu0 %v3489
        %3538 = vmatprep.subr.bf16.mxu0 0
        %3539 = vmatpush1.bf16.msra.mxu0 %v3491
        %3540 = vmatprep.subr.bf16.mxu0 0
        %3541 = vmatpush1.bf16.msra.mxu0 %v3493
        %3542 = vmatprep.subr.bf16.mxu0 0
        %3543 = vmatpush1.bf16.msra.mxu0 %v3495
        %3544 = vmatprep.subr.bf16.mxu0 0
        %3545 = vmatpush1.bf16.msra.mxu0 %v3497
        %3546 = vmatprep.subr.bf16.mxu0 0
        %3547 = vmatpush1.bf16.msra.mxu0 %v3499
        %3548 = vmatprep.subr.bf16.mxu0 0
        %3549 = vmatpush1.bf16.msra.mxu0 %v3501
        %3550 = vmatprep.subr.bf16.mxu0 0
        %3551 = vmatpush1.bf16.msra.mxu0 %v3503
        %3552 = vmatprep.mubr.bf16.mxu0 %v3425
        %3553 = vmatmul.mubr.bf16.gmra.mrb[0].mxu0 %v3424
        %v3554 = vpop.f32.mrb[0].mxu0
        %v3555 = vadd.f32 0.0, %v3554
        %v3556 = vpop.f32.mrb[0].mxu0
        %v3557 = vpop.f32.mrb[0].mxu0
        %v3558 = vadd.f32 0.0, %v3557
        %v3559 = vpop.f32.mrb[0].mxu0
        %3560 = vmatprep.mubr.bf16.mxu0 %v3427
        %3561 = vmatmul.mubr.bf16.gmra.mrb[0].mxu0 %v3426
        %v3562 = vpop.f32.mrb[0].mxu0
        %v3563 = vadd.f32 0.0, %v3562
        %v3564 = vpop.f32.mrb[0].mxu0
        %v3565 = vpop.f32.mrb[0].mxu0
        %v3566 = vadd.f32 0.0, %v3565
        %v3567 = vpop.f32.mrb[0].mxu0
        %3568 = vmatprep.mubr.bf16.mxu0 %v3429
        %3569 = vmatmul.mubr.bf16.gmra.mrb[0].mxu0 %v3428
        %v3570 = vpop.f32.mrb[0].mxu0
        %v3571 = vadd.f32 0.0, %v3570
        %v3572 = vpop.f32.mrb[0].mxu0
        %v3573 = vpop.f32.mrb[0].mxu0
        %v3574 = vadd.f32 0.0, %v3573
        %v3575 = vpop.f32.mrb[0].mxu0
        %3576 = vmatprep.mubr.bf16.mxu0 %v3431
        %3577 = vmatmul.mubr.bf16.gmra.mrb[0].mxu0 %v3430
        %v3578 = vpop.f32.mrb[0].mxu0
        %v3579 = vadd.f32 0.0, %v3578
        %v3580 = vpop.f32.mrb[0].mxu0
        %v3581 = vpop.f32.mrb[0].mxu0
        %v3582 = vadd.f32 0.0, %v3581
        %v3583 = vpop.f32.mrb[0].mxu0
        %3584 = vmatprep.mubr.bf16.mxu0 %v3433
        %3585 = vmatmul.mubr.bf16.gmra.mrb[0].mxu0 %v3432
        %v3586 = vpop.f32.mrb[0].mxu0
        %v3587 = vadd.f32 0.0, %v3586
        %v3588 = vpop.f32.mrb[0].mxu0
        %v3589 = vpop.f32.mrb[0].mxu0
        %v3590 = vadd.f32 0.0, %v3589
        %v3591 = vpop.f32.mrb[0].mxu0
        %3592 = vmatprep.mubr.bf16.mxu0 %v3435
        %3593 = vmatmul.mubr.bf16.gmra.mrb[0].mxu0 %v3434
        %v3594 = vpop.f32.mrb[0].mxu0
        %v3595 = vadd.f32 0.0, %v3594
        %v3596 = vpop.f32.mrb[0].mxu0
        %v3597 = vpop.f32.mrb[0].mxu0
        %v3598 = vadd.f32 0.0, %v3597
        %v3599 = vpop.f32.mrb[0].mxu0
        %3600 = vmatprep.mubr.bf16.mxu0 %v3437
        %3601 = vmatmul.mubr.bf16.gmra.mrb[0].mxu0 %v3436
        %v3602 = vpop.f32.mrb[0].mxu0
        %v3603 = vadd.f32 0.0, %v3602
        %v3604 = vpop.f32.mrb[0].mxu0
        %v3605 = vpop.f32.mrb[0].mxu0
        %v3606 = vadd.f32 0.0, %v3605
        %v3607 = vpop.f32.mrb[0].mxu0
        %3608 = vmatprep.mubr.bf16.mxu0 %v3439
        %3609 = vmatmul.mubr.bf16.gmra.mrb[0].mxu0 %v3438
        %v3610 = vpop.f32.mrb[0].mxu0
        %v3611 = vadd.f32 0.0, %v3610
        %v3612 = vpop.f32.mrb[0].mxu0
        %v3613 = vpop.f32.mrb[0].mxu0
        %v3614 = vadd.f32 0.0, %v3613
        %v3615 = vpop.f32.mrb[0].mxu0
        %3616 = vdwg.mxu0
        %v3617 = vpack.c.bf16 %v3558, %v3555
        %v3618 = vpack.c.bf16 %v3566, %v3563
        %v3619 = vpack.c.bf16 %v3574, %v3571
        %v3620 = vpack.c.bf16 %v3582, %v3579
        %v3621 = vpack.c.bf16 %v3590, %v3587
        %v3622 = vpack.c.bf16 %v3598, %v3595
        %v3623 = vpack.c.bf16 %v3606, %v3603
        %v3624 = vpack.c.bf16 %v3614, %v3611
        %3633 = vrot.lane.b32.xlu0 %v3617, 64
        %v3634 = vpop.permute.xlu0 %3633
        %3635 = vrot.lane.b32.xlu0 %v3618, 64
        %v3636 = vpop.permute.xlu0 %3635
        %3637 = vrot.lane.b32.xlu0 %v3619, 64
        %v3638 = vpop.permute.xlu0 %3637
        %3639 = vrot.lane.b32.xlu0 %v3620, 64
        %v3640 = vpop.permute.xlu0 %3639
        %3641 = vrot.lane.b32.xlu0 %v3621, 64
        %v3642 = vpop.permute.xlu0 %3641
        %3643 = vrot.lane.b32.xlu0 %v3622, 64
        %v3644 = vpop.permute.xlu0 %3643
        %3645 = vrot.lane.b32.xlu0 %v3623, 64
        %v3646 = vpop.permute.xlu0 %3645
        %3647 = vrot.lane.b32.xlu0 %v3624, 64
        %v3648 = vpop.permute.xlu0 %3647
        %vm3657 = vcmask 785920
        %3658 = vst.msk [vmem:[#allocation5] sm:$0xff] %vm3657, %v3634
        %3659 = vst.msk [vmem:[#allocation5 + $0x8] sm:$0xff] %vm3657, %v3636
        %3660 = vst.msk [vmem:[#allocation5 + $0x10] sm:$0xff] %vm3657, %v3638
        %3661 = vst.msk [vmem:[#allocation5 + $0x18] sm:$0xff] %vm3657, %v3640
        %3662 = vst.msk [vmem:[#allocation5 + $0x20] sm:$0xff] %vm3657, %v3642
        %3663 = vst.msk [vmem:[#allocation5 + $0x28] sm:$0xff] %vm3657, %v3644
        %3664 = vst.msk [vmem:[#allocation5 + $0x30] sm:$0xff] %vm3657, %v3646
        %3665 = vst.msk [vmem:[#allocation5 + $0x38] sm:$0xff] %vm3657, %v3648
        %v3666 = vld [vmem:[#allocation4] sm:$0xff]
        %v3667 = vld [vmem:[#allocation4 + $0x8] sm:$0xff]
        %v3668 = vld [vmem:[#allocation4 + $0x10] sm:$0xff]
        %v3669 = vld [vmem:[#allocation4 + $0x18] sm:$0xff]
        %v3670 = vld [vmem:[#allocation4 + $0x20] sm:$0xff]
        %v3671 = vld [vmem:[#allocation4 + $0x28] sm:$0xff]
        %v3672 = vld [vmem:[#allocation4 + $0x30] sm:$0xff]
        %v3673 = vld [vmem:[#allocation4 + $0x38] sm:$0xff]
        %v3674 = vld [vmem:[#allocation2 + $0x60] sm:$0xff]
        %v3675 = vld [vmem:[#allocation2 + $0x68] sm:$0xff]
        %v3676 = vld [vmem:[#allocation2 + $0x70] sm:$0xff]
        %v3677 = vld [vmem:[#allocation2 + $0x78] sm:$0xff]
        %3686 = vrot.lane.b32.xlu0 %v3666, 32
        %v3687 = vpop.permute.xlu0 %3686
        %3688 = vrot.lane.b32.xlu0 %v3667, 32
        %v3689 = vpop.permute.xlu0 %3688
        %3690 = vrot.lane.b32.xlu0 %v3668, 32
        %v3691 = vpop.permute.xlu0 %3690
        %3692 = vrot.lane.b32.xlu0 %v3669, 32
        %v3693 = vpop.permute.xlu0 %3692
        %3694 = vrot.lane.b32.xlu0 %v3670, 32
        %v3695 = vpop.permute.xlu0 %3694
        %3696 = vrot.lane.b32.xlu0 %v3671, 32
        %v3697 = vpop.permute.xlu0 %3696
        %3698 = vrot.lane.b32.xlu0 %v3672, 32
        %v3699 = vpop.permute.xlu0 %3698
        %3700 = vrot.lane.b32.xlu0 %v3673, 32
        %v3701 = vpop.permute.xlu0 %3700
        %v3703 = vsel %vm1809, %v3687, 0
        %v3706 = vsel %vm1809, %v3689, 0
        %v3709 = vsel %vm1809, %v3691, 0
        %v3712 = vsel %vm1809, %v3693, 0
        %v3715 = vsel %vm1809, %v3695, 0
        %v3718 = vsel %vm1809, %v3697, 0
        %v3721 = vsel %vm1809, %v3699, 0
        %v3724 = vsel %vm1809, %v3701, 0
        %3726 = vmatprep.subr.bf16.mxu0 %v3675
        %3727 = vmatpush1.bf16.msra.mxu0 %v3674
        %3728 = vmatprep.subr.bf16.mxu0 %v3677
        %3729 = vmatpush1.bf16.msra.mxu0 %v3676
        %3730 = vmatprep.subr.bf16.mxu0 0
        %3731 = vmatpush1.bf16.msra.mxu0 0
        %3732 = vmatprep.subr.bf16.mxu0 0
        %3733 = vmatpush1.bf16.msra.mxu0 0
        %3734 = vmatprep.subr.bf16.mxu0 0
        %3735 = vmatpush1.bf16.msra.mxu0 0
        %3736 = vmatprep.subr.bf16.mxu0 0
        %3737 = vmatpush1.bf16.msra.mxu0 0
        %3738 = vmatprep.subr.bf16.mxu0 0
        %3739 = vmatpush1.bf16.msra.mxu0 0
        %3740 = vmatprep.subr.bf16.mxu0 0
        %3741 = vmatpush1.bf16.msra.mxu0 0
        %3742 = vmatprep.subr.bf16.mxu0 0
        %3743 = vmatpush1.bf16.msra.mxu0 0
        %3744 = vmatprep.subr.bf16.mxu0 0
        %3745 = vmatpush1.bf16.msra.mxu0 0
        %3746 = vmatprep.subr.bf16.mxu0 0
        %3747 = vmatpush1.bf16.msra.mxu0 0
        %3748 = vmatprep.subr.bf16.mxu0 0
        %3749 = vmatpush1.bf16.msra.mxu0 0
        %3750 = vmatprep.subr.bf16.mxu0 0
        %3751 = vmatpush1.bf16.msra.mxu0 0
        %3752 = vmatprep.subr.bf16.mxu0 0
        %3753 = vmatpush1.bf16.msra.mxu0 0
        %3754 = vmatprep.subr.bf16.mxu0 0
        %3755 = vmatpush1.bf16.msra.mxu0 0
        %3756 = vmatprep.subr.bf16.mxu0 0
        %3757 = vmatpush1.bf16.msra.mxu0 0
        %3758 = vmatprep.mubr.bf16.mxu0 0
        %3759 = vmatmul.mubr.bf16.gmra.mrb[0].mxu0 %v3703
        %v3760 = vpop.f32.mrb[0].mxu0
        %v3761 = vadd.f32 0.0, %v3760
        %v3762 = vpop.f32.mrb[0].mxu0
        %v3763 = vadd.f32 0.0, %v3762
        %v3764 = vpop.f32.mrb[0].mxu0
        %v3765 = vadd.f32 0.0, %v3764
        %v3766 = vpop.f32.mrb[0].mxu0
        %v3767 = vadd.f32 0.0, %v3766
        %3768 = vmatprep.mubr.bf16.mxu0 0
        %3769 = vmatmul.mubr.bf16.gmra.mrb[0].mxu0 %v3706
        %v3770 = vpop.f32.mrb[0].mxu0
        %v3771 = vadd.f32 0.0, %v3770
        %v3772 = vpop.f32.mrb[0].mxu0
        %v3773 = vadd.f32 0.0, %v3772
        %v3774 = vpop.f32.mrb[0].mxu0
        %v3775 = vadd.f32 0.0, %v3774
        %v3776 = vpop.f32.mrb[0].mxu0
        %v3777 = vadd.f32 0.0, %v3776
        %3778 = vmatprep.mubr.bf16.mxu0 0
        %3779 = vmatmul.mubr.bf16.gmra.mrb[0].mxu0 %v3709
        %v3780 = vpop.f32.mrb[0].mxu0
        %v3781 = vadd.f32 0.0, %v3780
        %v3782 = vpop.f32.mrb[0].mxu0
        %v3783 = vadd.f32 0.0, %v3782
        %v3784 = vpop.f32.mrb[0].mxu0
        %v3785 = vadd.f32 0.0, %v3784
        %v3786 = vpop.f32.mrb[0].mxu0
        %v3787 = vadd.f32 0.0, %v3786
        %3788 = vmatprep.mubr.bf16.mxu0 0
        %3789 = vmatmul.mubr.bf16.gmra.mrb[0].mxu0 %v3712
        %v3790 = vpop.f32.mrb[0].mxu0
        %v3791 = vadd.f32 0.0, %v3790
        %v3792 = vpop.f32.mrb[0].mxu0
        %v3793 = vadd.f32 0.0, %v3792
        %v3794 = vpop.f32.mrb[0].mxu0
        %v3795 = vadd.f32 0.0, %v3794
        %v3796 = vpop.f32.mrb[0].mxu0
        %v3797 = vadd.f32 0.0, %v3796
        %3798 = vmatprep.mubr.bf16.mxu0 0
        %3799 = vmatmul.mubr.bf16.gmra.mrb[0].mxu0 %v3715
        %v3800 = vpop.f32.mrb[0].mxu0
        %v3801 = vadd.f32 0.0, %v3800
        %v3802 = vpop.f32.mrb[0].mxu0
        %v3803 = vadd.f32 0.0, %v3802
        %v3804 = vpop.f32.mrb[0].mxu0
        %v3805 = vadd.f32 0.0, %v3804
        %v3806 = vpop.f32.mrb[0].mxu0
        %v3807 = vadd.f32 0.0, %v3806
        %3808 = vmatprep.mubr.bf16.mxu0 0
        %3809 = vmatmul.mubr.bf16.gmra.mrb[0].mxu0 %v3718
        %v3810 = vpop.f32.mrb[0].mxu0
        %v3811 = vadd.f32 0.0, %v3810
        %v3812 = vpop.f32.mrb[0].mxu0
        %v3813 = vadd.f32 0.0, %v3812
        %v3814 = vpop.f32.mrb[0].mxu0
        %v3815 = vadd.f32 0.0, %v3814
        %v3816 = vpop.f32.mrb[0].mxu0
        %v3817 = vadd.f32 0.0, %v3816
        %3818 = vmatprep.mubr.bf16.mxu0 0
        %3819 = vmatmul.mubr.bf16.gmra.mrb[0].mxu0 %v3721
        %v3820 = vpop.f32.mrb[0].mxu0
        %v3821 = vadd.f32 0.0, %v3820
        %v3822 = vpop.f32.mrb[0].mxu0
        %v3823 = vadd.f32 0.0, %v3822
        %v3824 = vpop.f32.mrb[0].mxu0
        %v3825 = vadd.f32 0.0, %v3824
        %v3826 = vpop.f32.mrb[0].mxu0
        %v3827 = vadd.f32 0.0, %v3826
        %3828 = vmatprep.mubr.bf16.mxu0 0
        %3829 = vmatmul.mubr.bf16.gmra.mrb[0].mxu0 %v3724
        %v3830 = vpop.f32.mrb[0].mxu0
        %v3831 = vadd.f32 0.0, %v3830
        %v3832 = vpop.f32.mrb[0].mxu0
        %v3833 = vadd.f32 0.0, %v3832
        %v3834 = vpop.f32.mrb[0].mxu0
        %v3835 = vadd.f32 0.0, %v3834
        %v3836 = vpop.f32.mrb[0].mxu0
        %v3837 = vadd.f32 0.0, %v3836
        %3838 = vdwg.mxu0
        %v3839 = vmax.f32 %v3761, %v3763
        %3840 = vmax.xlane.f32.xlu0 %v3839
        %v3841 = vpop.xlane.xlu0 %3840
        %v3842 = vmax.f32 %v3765, %v3767
        %3843 = vmax.xlane.f32.xlu0 %v3842
        %v3844 = vpop.xlane.xlu0 %3843
        %v3845 = vmax.f32 %v3771, %v3773
        %3846 = vmax.xlane.f32.xlu0 %v3845
        %v3847 = vpop.xlane.xlu0 %3846
        %v3848 = vmax.f32 %v3775, %v3777
        %3849 = vmax.xlane.f32.xlu0 %v3848
        %v3850 = vpop.xlane.xlu0 %3849
        %v3851 = vmax.f32 %v3781, %v3783
        %3852 = vmax.xlane.f32.xlu0 %v3851
        %v3853 = vpop.xlane.xlu0 %3852
        %v3854 = vmax.f32 %v3785, %v3787
        %3855 = vmax.xlane.f32.xlu0 %v3854
        %v3856 = vpop.xlane.xlu0 %3855
        %v3857 = vmax.f32 %v3791, %v3793
        %3858 = vmax.xlane.f32.xlu0 %v3857
        %v3859 = vpop.xlane.xlu0 %3858
        %v3860 = vmax.f32 %v3795, %v3797
        %3861 = vmax.xlane.f32.xlu0 %v3860
        %v3862 = vpop.xlane.xlu0 %3861
        %v3863 = vmax.f32 %v3801, %v3803
        %3864 = vmax.xlane.f32.xlu0 %v3863
        %v3865 = vpop.xlane.xlu0 %3864
        %v3866 = vmax.f32 %v3805, %v3807
        %3867 = vmax.xlane.f32.xlu0 %v3866
        %v3868 = vpop.xlane.xlu0 %3867
        %v3869 = vmax.f32 %v3811, %v3813
        %3870 = vmax.xlane.f32.xlu0 %v3869
        %v3871 = vpop.xlane.xlu0 %3870
        %v3872 = vmax.f32 %v3815, %v3817
        %3873 = vmax.xlane.f32.xlu0 %v3872
        %v3874 = vpop.xlane.xlu0 %3873
        %v3875 = vmax.f32 %v3821, %v3823
        %3876 = vmax.xlane.f32.xlu0 %v3875
        %v3877 = vpop.xlane.xlu0 %3876
        %v3878 = vmax.f32 %v3825, %v3827
        %3879 = vmax.xlane.f32.xlu0 %v3878
        %v3880 = vpop.xlane.xlu0 %3879
        %v3881 = vmax.f32 %v3831, %v3833
        %3882 = vmax.xlane.f32.xlu0 %v3881
        %v3883 = vpop.xlane.xlu0 %3882
        %v3884 = vmax.f32 %v3835, %v3837
        %3885 = vmax.xlane.f32.xlu0 %v3884
        %v3886 = vpop.xlane.xlu0 %3885
        %v3887 = vsub.f32 %v3761, %v3841
        %v3888 = vsub.f32 %v3763, %v3841
        %v3889 = vsub.f32 %v3765, %v3844
        %v3890 = vsub.f32 %v3767, %v3844
        %v3891 = vsub.f32 %v3771, %v3847
        %v3892 = vsub.f32 %v3773, %v3847
        %v3893 = vsub.f32 %v3775, %v3850
        %v3894 = vsub.f32 %v3777, %v3850
        %v3895 = vsub.f32 %v3781, %v3853
        %v3896 = vsub.f32 %v3783, %v3853
        %v3897 = vsub.f32 %v3785, %v3856
        %v3898 = vsub.f32 %v3787, %v3856
        %v3899 = vsub.f32 %v3791, %v3859
        %v3900 = vsub.f32 %v3793, %v3859
        %v3901 = vsub.f32 %v3795, %v3862
        %v3902 = vsub.f32 %v3797, %v3862
        %v3903 = vsub.f32 %v3801, %v3865
        %v3904 = vsub.f32 %v3803, %v3865
        %v3905 = vsub.f32 %v3805, %v3868
        %v3906 = vsub.f32 %v3807, %v3868
        %v3907 = vsub.f32 %v3811, %v3871
        %v3908 = vsub.f32 %v3813, %v3871
        %v3909 = vsub.f32 %v3815, %v3874
        %v3910 = vsub.f32 %v3817, %v3874
        %v3911 = vsub.f32 %v3821, %v3877
        %v3912 = vsub.f32 %v3823, %v3877
        %v3913 = vsub.f32 %v3825, %v3880
        %v3914 = vsub.f32 %v3827, %v3880
        %v3915 = vsub.f32 %v3831, %v3883
        %v3916 = vsub.f32 %v3833, %v3883
        %v3917 = vsub.f32 %v3835, %v3886
        %v3918 = vsub.f32 %v3837, %v3886
        %v3919 = vpack.c.bf16 %v3889, %v3887
        %v3920 = vpack.c.bf16 %v3890, %v3888
        %v3921 = vpack.c.bf16 %v3893, %v3891
        %v3922 = vpack.c.bf16 %v3894, %v3892
        %v3923 = vpack.c.bf16 %v3897, %v3895
        %v3924 = vpack.c.bf16 %v3898, %v3896
        %v3925 = vpack.c.bf16 %v3901, %v3899
        %v3926 = vpack.c.bf16 %v3902, %v3900
        %v3927 = vpack.c.bf16 %v3905, %v3903
        %v3928 = vpack.c.bf16 %v3906, %v3904
        %v3929 = vpack.c.bf16 %v3909, %v3907
        %v3930 = vpack.c.bf16 %v3910, %v3908
        %v3931 = vpack.c.bf16 %v3913, %v3911
        %v3932 = vpack.c.bf16 %v3914, %v3912
        %v3933 = vpack.c.bf16 %v3917, %v3915
        %v3934 = vpack.c.bf16 %v3918, %v3916
        %v3936 = vmul.bf16 %v3919, 1069105081
        %v3937 = vpow.bf16.pop %v3936
        %v3939 = vmul.bf16 %v3920, 1069105081
        %v3940 = vpow.bf16.pop %v3939
        %v3942 = vmul.bf16 %v3921, 1069105081
        %v3943 = vpow.bf16.pop %v3942
        %v3945 = vmul.bf16 %v3922, 1069105081
        %v3946 = vpow.bf16.pop %v3945
        %v3948 = vmul.bf16 %v3923, 1069105081
        %v3949 = vpow.bf16.pop %v3948
        %v3951 = vmul.bf16 %v3924, 1069105081
        %v3952 = vpow.bf16.pop %v3951
        %v3954 = vmul.bf16 %v3925, 1069105081
        %v3955 = vpow.bf16.pop %v3954
        %v3957 = vmul.bf16 %v3926, 1069105081
        %v3958 = vpow.bf16.pop %v3957
        %v3960 = vmul.bf16 %v3927, 1069105081
        %v3961 = vpow.bf16.pop %v3960
        %v3963 = vmul.bf16 %v3928, 1069105081
        %v3964 = vpow.bf16.pop %v3963
        %v3966 = vmul.bf16 %v3929, 1069105081
        %v3967 = vpow.bf16.pop %v3966
        %v3969 = vmul.bf16 %v3930, 1069105081
        %v3970 = vpow.bf16.pop %v3969
        %v3972 = vmul.bf16 %v3931, 1069105081
        %v3973 = vpow.bf16.pop %v3972
        %v3975 = vmul.bf16 %v3932, 1069105081
        %v3976 = vpow.bf16.pop %v3975
        %v3978 = vmul.bf16 %v3933, 1069105081
        %v3979 = vpow.bf16.pop %v3978
        %v3981 = vmul.bf16 %v3934, 1069105081
        %v3982 = vpow.bf16.pop %v3981
        %v3983 = vunpack.c.l.bf16 %v3937
        %v3984 = vunpack.c.l.bf16 %v3940
        %v3985 = vunpack.c.h.bf16 %v3937
        %v3986 = vunpack.c.h.bf16 %v3940
        %v3987 = vunpack.c.l.bf16 %v3943
        %v3988 = vunpack.c.l.bf16 %v3946
        %v3989 = vunpack.c.h.bf16 %v3943
        %v3990 = vunpack.c.h.bf16 %v3946
        %v3991 = vunpack.c.l.bf16 %v3949
        %v3992 = vunpack.c.l.bf16 %v3952
        %v3993 = vunpack.c.h.bf16 %v3949
        %v3994 = vunpack.c.h.bf16 %v3952
        %v3995 = vunpack.c.l.bf16 %v3955
        %v3996 = vunpack.c.l.bf16 %v3958
        %v3997 = vunpack.c.h.bf16 %v3955
        %v3998 = vunpack.c.h.bf16 %v3958
        %v3999 = vunpack.c.l.bf16 %v3961
        %v4000 = vunpack.c.l.bf16 %v3964
        %v4001 = vunpack.c.h.bf16 %v3961
        %v4002 = vunpack.c.h.bf16 %v3964
        %v4003 = vunpack.c.l.bf16 %v3967
        %v4004 = vunpack.c.l.bf16 %v3970
        %v4005 = vunpack.c.h.bf16 %v3967
        %v4006 = vunpack.c.h.bf16 %v3970
        %v4007 = vunpack.c.l.bf16 %v3973
        %v4008 = vunpack.c.l.bf16 %v3976
        %v4009 = vunpack.c.h.bf16 %v3973
        %v4010 = vunpack.c.h.bf16 %v3976
        %v4011 = vunpack.c.l.bf16 %v3979
        %v4012 = vunpack.c.l.bf16 %v3982
        %v4013 = vunpack.c.h.bf16 %v3979
        %v4014 = vunpack.c.h.bf16 %v3982
        %v4015 = vadd.f32 %v3983, %v3984
        %4016 = vadd.xlane.f32.xlu0 %v4015
        %v4017 = vpop.xlane.xlu0 %4016
        %v4018 = vadd.f32 %v3985, %v3986
        %4019 = vadd.xlane.f32.xlu0 %v4018
        %v4020 = vpop.xlane.xlu0 %4019
        %v4021 = vadd.f32 %v3987, %v3988
        %4022 = vadd.xlane.f32.xlu0 %v4021
        %v4023 = vpop.xlane.xlu0 %4022
        %v4024 = vadd.f32 %v3989, %v3990
        %4025 = vadd.xlane.f32.xlu0 %v4024
        %v4026 = vpop.xlane.xlu0 %4025
        %v4027 = vadd.f32 %v3991, %v3992
        %4028 = vadd.xlane.f32.xlu0 %v4027
        %v4029 = vpop.xlane.xlu0 %4028
        %v4030 = vadd.f32 %v3993, %v3994
        %4031 = vadd.xlane.f32.xlu0 %v4030
        %v4032 = vpop.xlane.xlu0 %4031
        %v4033 = vadd.f32 %v3995, %v3996
        %4034 = vadd.xlane.f32.xlu0 %v4033
        %v4035 = vpop.xlane.xlu0 %4034
        %v4036 = vadd.f32 %v3997, %v3998
        %4037 = vadd.xlane.f32.xlu0 %v4036
        %v4038 = vpop.xlane.xlu0 %4037
        %v4039 = vadd.f32 %v3999, %v4000
        %4040 = vadd.xlane.f32.xlu0 %v4039
        %v4041 = vpop.xlane.xlu0 %4040
        %v4042 = vadd.f32 %v4001, %v4002
        %4043 = vadd.xlane.f32.xlu0 %v4042
        %v4044 = vpop.xlane.xlu0 %4043
        %v4045 = vadd.f32 %v4003, %v4004
        %4046 = vadd.xlane.f32.xlu0 %v4045
        %v4047 = vpop.xlane.xlu0 %4046
        %v4048 = vadd.f32 %v4005, %v4006
        %4049 = vadd.xlane.f32.xlu0 %v4048
        %v4050 = vpop.xlane.xlu0 %4049
        %v4051 = vadd.f32 %v4007, %v4008
        %4052 = vadd.xlane.f32.xlu0 %v4051
        %v4053 = vpop.xlane.xlu0 %4052
        %v4054 = vadd.f32 %v4009, %v4010
        %4055 = vadd.xlane.f32.xlu0 %v4054
        %v4056 = vpop.xlane.xlu0 %4055
        %v4057 = vadd.f32 %v4011, %v4012
        %4058 = vadd.xlane.f32.xlu0 %v4057
        %v4059 = vpop.xlane.xlu0 %4058
        %v4060 = vadd.f32 %v4013, %v4014
        %4061 = vadd.xlane.f32.xlu0 %v4060
        %v4062 = vpop.xlane.xlu0 %4061
        %v4063 = vrcp.pop %v4017
        %v4064 = vrcp.pop %v4020
        %v4065 = vrcp.pop %v4023
        %v4066 = vrcp.pop %v4026
        %v4067 = vrcp.pop %v4029
        %v4068 = vrcp.pop %v4032
        %v4069 = vrcp.pop %v4035
        %v4070 = vrcp.pop %v4038
        %v4071 = vrcp.pop %v4041
        %v4072 = vrcp.pop %v4044
        %v4073 = vrcp.pop %v4047
        %v4074 = vrcp.pop %v4050
        %v4075 = vrcp.pop %v4053
        %v4076 = vrcp.pop %v4056
        %v4077 = vrcp.pop %v4059
        %v4078 = vrcp.pop %v4062
        %v4079 = vpack.c.bf16 %v4064, %v4063
        %v4080 = vpack.c.bf16 %v4066, %v4065
        %v4081 = vpack.c.bf16 %v4068, %v4067
        %v4082 = vpack.c.bf16 %v4070, %v4069
        %v4083 = vpack.c.bf16 %v4072, %v4071
        %v4084 = vpack.c.bf16 %v4074, %v4073
        %v4085 = vpack.c.bf16 %v4076, %v4075
        %v4086 = vpack.c.bf16 %v4078, %v4077
        %v4087 = vmul.bf16 %v3937, %v4079
        %v4088 = vmul.bf16 %v3940, %v4079
        %v4089 = vmul.bf16 %v3943, %v4080
        %v4090 = vmul.bf16 %v3946, %v4080
        %v4091 = vmul.bf16 %v3949, %v4081
        %v4092 = vmul.bf16 %v3952, %v4081
        %v4093 = vmul.bf16 %v3955, %v4082
        %v4094 = vmul.bf16 %v3958, %v4082
        %v4095 = vmul.bf16 %v3961, %v4083
        %v4096 = vmul.bf16 %v3964, %v4083
        %v4097 = vmul.bf16 %v3967, %v4084
        %v4098 = vmul.bf16 %v3970, %v4084
        %v4099 = vmul.bf16 %v3973, %v4085
        %v4100 = vmul.bf16 %v3976, %v4085
        %v4101 = vmul.bf16 %v3979, %v4086
        %v4102 = vmul.bf16 %v3982, %v4086
        %v4103 = vld [vmem:[#allocation3] sm:$0xff]
        %v4104 = vld [vmem:[#allocation3 + $0x8] sm:$0xff]
        %v4105 = vld [vmem:[#allocation3 + $0x10] sm:$0xff]
        %v4106 = vld [vmem:[#allocation3 + $0x18] sm:$0xff]
        %v4107 = vld [vmem:[#allocation3 + $0x20] sm:$0xff]
        %v4108 = vld [vmem:[#allocation3 + $0x28] sm:$0xff]
        %v4109 = vld [vmem:[#allocation3 + $0x30] sm:$0xff]
        %v4110 = vld [vmem:[#allocation3 + $0x38] sm:$0xff]
        %v4111 = vld [vmem:[#allocation3 + $0x40] sm:$0xff]
        %v4112 = vld [vmem:[#allocation3 + $0x48] sm:$0xff]
        %v4113 = vld [vmem:[#allocation3 + $0x50] sm:$0xff]
        %v4114 = vld [vmem:[#allocation3 + $0x58] sm:$0xff]
        %v4115 = vld [vmem:[#allocation3 + $0x60] sm:$0xff]
        %v4116 = vld [vmem:[#allocation3 + $0x68] sm:$0xff]
        %v4117 = vld [vmem:[#allocation3 + $0x70] sm:$0xff]
        %v4118 = vld [vmem:[#allocation3 + $0x78] sm:$0xff]
        %4135 = vrot.lane.b32.xlu0 %v4103, 32
        %v4136 = vpop.permute.xlu0 %4135
        %4137 = vrot.lane.b32.xlu0 %v4104, 32
        %v4138 = vpop.permute.xlu0 %4137
        %4139 = vrot.lane.b32.xlu0 %v4105, 32
        %v4140 = vpop.permute.xlu0 %4139
        %4141 = vrot.lane.b32.xlu0 %v4106, 32
        %v4142 = vpop.permute.xlu0 %4141
        %4143 = vrot.lane.b32.xlu0 %v4107, 32
        %v4144 = vpop.permute.xlu0 %4143
        %4145 = vrot.lane.b32.xlu0 %v4108, 32
        %v4146 = vpop.permute.xlu0 %4145
        %4147 = vrot.lane.b32.xlu0 %v4109, 32
        %v4148 = vpop.permute.xlu0 %4147
        %4149 = vrot.lane.b32.xlu0 %v4110, 32
        %v4150 = vpop.permute.xlu0 %4149
        %4151 = vrot.lane.b32.xlu0 %v4111, 32
        %v4152 = vpop.permute.xlu0 %4151
        %4153 = vrot.lane.b32.xlu0 %v4112, 32
        %v4154 = vpop.permute.xlu0 %4153
        %4155 = vrot.lane.b32.xlu0 %v4113, 32
        %v4156 = vpop.permute.xlu0 %4155
        %4157 = vrot.lane.b32.xlu0 %v4114, 32
        %v4158 = vpop.permute.xlu0 %4157
        %4159 = vrot.lane.b32.xlu0 %v4115, 32
        %v4160 = vpop.permute.xlu0 %4159
        %4161 = vrot.lane.b32.xlu0 %v4116, 32
        %v4162 = vpop.permute.xlu0 %4161
        %4163 = vrot.lane.b32.xlu0 %v4117, 32
        %v4164 = vpop.permute.xlu0 %4163
        %4165 = vrot.lane.b32.xlu0 %v4118, 32
        %v4166 = vpop.permute.xlu0 %4165
        %4183 = vmatprep.subr.bf16.mxu0 0
        %4184 = vmatpush1.bf16.msra.mxu0 %v4136
        %4185 = vmatprep.subr.bf16.mxu0 0
        %4186 = vmatpush1.bf16.msra.mxu0 %v4138
        %4187 = vmatprep.subr.bf16.mxu0 0
        %4188 = vmatpush1.bf16.msra.mxu0 %v4140
        %4189 = vmatprep.subr.bf16.mxu0 0
        %4190 = vmatpush1.bf16.msra.mxu0 %v4142
        %4191 = vmatprep.subr.bf16.mxu0 0
        %4192 = vmatpush1.bf16.msra.mxu0 %v4144
        %4193 = vmatprep.subr.bf16.mxu0 0
        %4194 = vmatpush1.bf16.msra.mxu0 %v4146
        %4195 = vmatprep.subr.bf16.mxu0 0
        %4196 = vmatpush1.bf16.msra.mxu0 %v4148
        %4197 = vmatprep.subr.bf16.mxu0 0
        %4198 = vmatpush1.bf16.msra.mxu0 %v4150
        %4199 = vmatprep.subr.bf16.mxu0 0
        %4200 = vmatpush1.bf16.msra.mxu0 %v4152
        %4201 = vmatprep.subr.bf16.mxu0 0
        %4202 = vmatpush1.bf16.msra.mxu0 %v4154
        %4203 = vmatprep.subr.bf16.mxu0 0
        %4204 = vmatpush1.bf16.msra.mxu0 %v4156
        %4205 = vmatprep.subr.bf16.mxu0 0
        %4206 = vmatpush1.bf16.msra.mxu0 %v4158
        %4207 = vmatprep.subr.bf16.mxu0 0
        %4208 = vmatpush1.bf16.msra.mxu0 %v4160
        %4209 = vmatprep.subr.bf16.mxu0 0
        %4210 = vmatpush1.bf16.msra.mxu0 %v4162
        %4211 = vmatprep.subr.bf16.mxu0 0
        %4212 = vmatpush1.bf16.msra.mxu0 %v4164
        %4213 = vmatprep.subr.bf16.mxu0 0
        %4214 = vmatpush1.bf16.msra.mxu0 %v4166
        %4215 = vmatprep.mubr.bf16.mxu0 %v4088
        %4216 = vmatmul.mubr.bf16.gmra.mrb[0].mxu0 %v4087
        %v4217 = vpop.f32.mrb[0].mxu0
        %v4218 = vadd.f32 0.0, %v4217
        %v4219 = vpop.f32.mrb[0].mxu0
        %v4220 = vpop.f32.mrb[0].mxu0
        %v4221 = vadd.f32 0.0, %v4220
        %v4222 = vpop.f32.mrb[0].mxu0
        %4223 = vmatprep.mubr.bf16.mxu0 %v4090
        %4224 = vmatmul.mubr.bf16.gmra.mrb[0].mxu0 %v4089
        %v4225 = vpop.f32.mrb[0].mxu0
        %v4226 = vadd.f32 0.0, %v4225
        %v4227 = vpop.f32.mrb[0].mxu0
        %v4228 = vpop.f32.mrb[0].mxu0
        %v4229 = vadd.f32 0.0, %v4228
        %v4230 = vpop.f32.mrb[0].mxu0
        %4231 = vmatprep.mubr.bf16.mxu0 %v4092
        %4232 = vmatmul.mubr.bf16.gmra.mrb[0].mxu0 %v4091
        %v4233 = vpop.f32.mrb[0].mxu0
        %v4234 = vadd.f32 0.0, %v4233
        %v4235 = vpop.f32.mrb[0].mxu0
        %v4236 = vpop.f32.mrb[0].mxu0
        %v4237 = vadd.f32 0.0, %v4236
        %v4238 = vpop.f32.mrb[0].mxu0
        %4239 = vmatprep.mubr.bf16.mxu0 %v4094
        %4240 = vmatmul.mubr.bf16.gmra.mrb[0].mxu0 %v4093
        %v4241 = vpop.f32.mrb[0].mxu0
        %v4242 = vadd.f32 0.0, %v4241
        %v4243 = vpop.f32.mrb[0].mxu0
        %v4244 = vpop.f32.mrb[0].mxu0
        %v4245 = vadd.f32 0.0, %v4244
        %v4246 = vpop.f32.mrb[0].mxu0
        %4247 = vmatprep.mubr.bf16.mxu0 %v4096
        %4248 = vmatmul.mubr.bf16.gmra.mrb[0].mxu0 %v4095
        %v4249 = vpop.f32.mrb[0].mxu0
        %v4250 = vadd.f32 0.0, %v4249
        %v4251 = vpop.f32.mrb[0].mxu0
        %v4252 = vpop.f32.mrb[0].mxu0
        %v4253 = vadd.f32 0.0, %v4252
        %v4254 = vpop.f32.mrb[0].mxu0
        %4255 = vmatprep.mubr.bf16.mxu0 %v4098
        %4256 = vmatmul.mubr.bf16.gmra.mrb[0].mxu0 %v4097
        %v4257 = vpop.f32.mrb[0].mxu0
        %v4258 = vadd.f32 0.0, %v4257
        %v4259 = vpop.f32.mrb[0].mxu0
        %v4260 = vpop.f32.mrb[0].mxu0
        %v4261 = vadd.f32 0.0, %v4260
        %v4262 = vpop.f32.mrb[0].mxu0
        %4263 = vmatprep.mubr.bf16.mxu0 %v4100
        %4264 = vmatmul.mubr.bf16.gmra.mrb[0].mxu0 %v4099
        %v4265 = vpop.f32.mrb[0].mxu0
        %v4266 = vadd.f32 0.0, %v4265
        %v4267 = vpop.f32.mrb[0].mxu0
        %v4268 = vpop.f32.mrb[0].mxu0
        %v4269 = vadd.f32 0.0, %v4268
        %v4270 = vpop.f32.mrb[0].mxu0
        %4271 = vmatprep.mubr.bf16.mxu0 %v4102
        %4272 = vmatmul.mubr.bf16.gmra.mrb[0].mxu0 %v4101
        %v4273 = vpop.f32.mrb[0].mxu0
        %v4274 = vadd.f32 0.0, %v4273
        %v4275 = vpop.f32.mrb[0].mxu0
        %v4276 = vpop.f32.mrb[0].mxu0
        %v4277 = vadd.f32 0.0, %v4276
        %v4278 = vpop.f32.mrb[0].mxu0
        %4279 = vdwg.mxu0
        %v4280 = vpack.c.bf16 %v4221, %v4218
        %v4281 = vpack.c.bf16 %v4229, %v4226
        %v4282 = vpack.c.bf16 %v4237, %v4234
        %v4283 = vpack.c.bf16 %v4245, %v4242
        %v4284 = vpack.c.bf16 %v4253, %v4250
        %v4285 = vpack.c.bf16 %v4261, %v4258
        %v4286 = vpack.c.bf16 %v4269, %v4266
        %v4287 = vpack.c.bf16 %v4277, %v4274
        %4296 = vrot.lane.b32.xlu0 %v4280, 96
        %v4297 = vpop.permute.xlu0 %4296
        %4298 = vrot.lane.b32.xlu0 %v4281, 96
        %v4299 = vpop.permute.xlu0 %4298
        %4300 = vrot.lane.b32.xlu0 %v4282, 96
        %v4301 = vpop.permute.xlu0 %4300
        %4302 = vrot.lane.b32.xlu0 %v4283, 96
        %v4303 = vpop.permute.xlu0 %4302
        %4304 = vrot.lane.b32.xlu0 %v4284, 96
        %v4305 = vpop.permute.xlu0 %4304
        %4306 = vrot.lane.b32.xlu0 %v4285, 96
        %v4307 = vpop.permute.xlu0 %4306
        %4308 = vrot.lane.b32.xlu0 %v4286, 96
        %v4309 = vpop.permute.xlu0 %4308
        %4310 = vrot.lane.b32.xlu0 %v4287, 96
        %v4311 = vpop.permute.xlu0 %4310
        %vm4320 = vcmask 1048320
        %4321 = vst.msk [vmem:[#allocation5] sm:$0xff] %vm4320, %v4297
        %4322 = vst.msk [vmem:[#allocation5 + $0x8] sm:$0xff] %vm4320, %v4299
        %4323 = vst.msk [vmem:[#allocation5 + $0x10] sm:$0xff] %vm4320, %v4301
        %4324 = vst.msk [vmem:[#allocation5 + $0x18] sm:$0xff] %vm4320, %v4303
        %4325 = vst.msk [vmem:[#allocation5 + $0x20] sm:$0xff] %vm4320, %v4305
        %4326 = vst.msk [vmem:[#allocation5 + $0x28] sm:$0xff] %vm4320, %v4307
        %4327 = vst.msk [vmem:[#allocation5 + $0x30] sm:$0xff] %vm4320, %v4309
        %4328 = vst.msk [vmem:[#allocation5 + $0x38] sm:$0xff] %vm4320, %v4311
        %v4329 = vld [vmem:[#allocation5] sm:$0xff]
        %v4330 = vld [vmem:[#allocation5 + $0x8] sm:$0xff]
        %v4331 = vld [vmem:[#allocation5 + $0x10] sm:$0xff]
        %v4332 = vld [vmem:[#allocation5 + $0x18] sm:$0xff]
        %v4333 = vld [vmem:[#allocation5 + $0x20] sm:$0xff]
        %v4334 = vld [vmem:[#allocation5 + $0x28] sm:$0xff]
        %v4335 = vld [vmem:[#allocation5 + $0x30] sm:$0xff]
        %v4336 = vld [vmem:[#allocation5 + $0x38] sm:$0xff]
        %v4337 = vld [vmem:[#allocation17] sm:$0xf]
        %v4338 = vld [vmem:[#allocation17 + $0x4] sm:$0xf]
        %v4339 = vld [vmem:[#allocation17 + $0x8] sm:$0xf]
        %v4340 = vld [vmem:[#allocation17 + $0xc] sm:$0xf]
        %v4341 = vld [vmem:[#allocation17 + $0x10] sm:$0xf]
        %v4342 = vld [vmem:[#allocation17 + $0x14] sm:$0xf]
        %v4343 = vld [vmem:[#allocation17 + $0x18] sm:$0xf]
        %v4344 = vld [vmem:[#allocation17 + $0x1c] sm:$0xf]
        %v4345 = vld [vmem:[#allocation17 + $0x20] sm:$0xf]
        %v4346 = vld [vmem:[#allocation17 + $0x24] sm:$0xf]
        %v4347 = vld [vmem:[#allocation17 + $0x28] sm:$0xf]
        %v4348 = vld [vmem:[#allocation17 + $0x2c] sm:$0xf]
        %v4349 = vld [vmem:[#allocation17 + $0x30] sm:$0xf]
        %v4350 = vld [vmem:[#allocation17 + $0x34] sm:$0xf]
        %v4351 = vld [vmem:[#allocation17 + $0x38] sm:$0xf]
        %v4352 = vld [vmem:[#allocation17 + $0x3c] sm:$0xf]
        %v4353 = vld [vmem:[%s10] sm:$0x1]
        %v4355 = vlaneseq
        %v4356 = vshrl.u32 %v4355, 7
        %v4357 = vsub.s32 0, %v4356
        %v4358 = vrot.slane %v4353, %v4357
        %v4376 = vunpack.c.l.b16 %v4337
        %v4377 = vunpack.c.l.b16 %v4338
        %v4378 = vunpack.c.l.b16 %v4339
        %v4379 = vunpack.c.l.b16 %v4340
        %v4380 = vunpack.c.l.b16 %v4341
        %v4381 = vunpack.c.l.b16 %v4342
        %v4382 = vunpack.c.l.b16 %v4343
        %v4383 = vunpack.c.l.b16 %v4344
        %v4384 = vunpack.c.l.b16 %v4345
        %v4385 = vunpack.c.l.b16 %v4346
        %v4386 = vunpack.c.l.b16 %v4347
        %v4387 = vunpack.c.l.b16 %v4348
        %v4388 = vunpack.c.l.b16 %v4349
        %v4389 = vunpack.c.l.b16 %v4350
        %v4390 = vunpack.c.l.b16 %v4351
        %v4391 = vunpack.c.l.b16 %v4352
        %v4392 = vpack.c.b16 %v4377, %v4376
        %v4393 = vpack.c.b16 %v4379, %v4378
        %v4394 = vpack.c.b16 %v4381, %v4380
        %v4395 = vpack.c.b16 %v4383, %v4382
        %v4396 = vpack.c.b16 %v4385, %v4384
        %v4397 = vpack.c.b16 %v4387, %v4386
        %v4398 = vpack.c.b16 %v4389, %v4388
        %v4399 = vpack.c.b16 %v4391, %v4390
        %4408 = vmatprep.subr.bf16.mxu0 0
        %4409 = vmatpush1.bf16.msra.mxu0 %v4392
        %4410 = vmatprep.subr.bf16.mxu0 0
        %4411 = vmatpush1.bf16.msra.mxu0 %v4393
        %4412 = vmatprep.subr.bf16.mxu0 0
        %4413 = vmatpush1.bf16.msra.mxu0 %v4394
        %4414 = vmatprep.subr.bf16.mxu0 0
        %4415 = vmatpush1.bf16.msra.mxu0 %v4395
        %4416 = vmatprep.subr.bf16.mxu0 0
        %4417 = vmatpush1.bf16.msra.mxu0 %v4396
        %4418 = vmatprep.subr.bf16.mxu0 0
        %4419 = vmatpush1.bf16.msra.mxu0 %v4397
        %4420 = vmatprep.subr.bf16.mxu0 0
        %4421 = vmatpush1.bf16.msra.mxu0 %v4398
        %4422 = vmatprep.subr.bf16.mxu0 0
        %4423 = vmatpush1.bf16.msra.mxu0 %v4399
        %4424 = vmatprep.subr.bf16.mxu0 0
        %4425 = vmatpush1.bf16.msra.mxu0 0
        %4426 = vmatprep.subr.bf16.mxu0 0
        %4427 = vmatpush1.bf16.msra.mxu0 0
        %4428 = vmatprep.subr.bf16.mxu0 0
        %4429 = vmatpush1.bf16.msra.mxu0 0
        %4430 = vmatprep.subr.bf16.mxu0 0
        %4431 = vmatpush1.bf16.msra.mxu0 0
        %4432 = vmatprep.subr.bf16.mxu0 0
        %4433 = vmatpush1.bf16.msra.mxu0 0
        %4434 = vmatprep.subr.bf16.mxu0 0
        %4435 = vmatpush1.bf16.msra.mxu0 0
        %4436 = vmatprep.subr.bf16.mxu0 0
        %4437 = vmatpush1.bf16.msra.mxu0 0
        %4438 = vmatprep.subr.bf16.mxu0 0
        %4439 = vmatpush1.bf16.msra.mxu0 0
        %4440 = vmatprep.mubr.bf16.mxu0 0
        %4441 = vmatmul.mubr.bf16.gmra.mrb[0].mxu0 %v4329
        %v4442 = vpop.f32.mrb[0].mxu0
        %v4443 = vadd.f32 %v4358, %v4442
        %v4444 = vpop.f32.mrb[0].mxu0
        %v4445 = vpop.f32.mrb[0].mxu0
        %v4446 = vadd.f32 %v4358, %v4445
        %v4447 = vpop.f32.mrb[0].mxu0
        %4448 = vmatprep.mubr.bf16.mxu0 0
        %4449 = vmatmul.mubr.bf16.gmra.mrb[0].mxu0 %v4330
        %v4450 = vpop.f32.mrb[0].mxu0
        %v4451 = vadd.f32 %v4358, %v4450
        %v4452 = vpop.f32.mrb[0].mxu0
        %v4453 = vpop.f32.mrb[0].mxu0
        %v4454 = vadd.f32 %v4358, %v4453
        %v4455 = vpop.f32.mrb[0].mxu0
        %4456 = vmatprep.mubr.bf16.mxu0 0
        %4457 = vmatmul.mubr.bf16.gmra.mrb[0].mxu0 %v4331
        %v4458 = vpop.f32.mrb[0].mxu0
        %v4459 = vadd.f32 %v4358, %v4458
        %v4460 = vpop.f32.mrb[0].mxu0
        %v4461 = vpop.f32.mrb[0].mxu0
        %v4462 = vadd.f32 %v4358, %v4461
        %v4463 = vpop.f32.mrb[0].mxu0
        %4464 = vmatprep.mubr.bf16.mxu0 0
        %4465 = vmatmul.mubr.bf16.gmra.mrb[0].mxu0 %v4332
        %v4466 = vpop.f32.mrb[0].mxu0
        %v4467 = vadd.f32 %v4358, %v4466
        %v4468 = vpop.f32.mrb[0].mxu0
        %v4469 = vpop.f32.mrb[0].mxu0
        %v4470 = vadd.f32 %v4358, %v4469
        %v4471 = vpop.f32.mrb[0].mxu0
        %4472 = vmatprep.mubr.bf16.mxu0 0
        %4473 = vmatmul.mubr.bf16.gmra.mrb[0].mxu0 %v4333
        %v4474 = vpop.f32.mrb[0].mxu0
        %v4475 = vadd.f32 %v4358, %v4474
        %v4476 = vpop.f32.mrb[0].mxu0
        %v4477 = vpop.f32.mrb[0].mxu0
        %v4478 = vadd.f32 %v4358, %v4477
        %v4479 = vpop.f32.mrb[0].mxu0
        %4480 = vmatprep.mubr.bf16.mxu0 0
        %4481 = vmatmul.mubr.bf16.gmra.mrb[0].mxu0 %v4334
        %v4482 = vpop.f32.mrb[0].mxu0
        %v4483 = vadd.f32 %v4358, %v4482
        %v4484 = vpop.f32.mrb[0].mxu0
        %v4485 = vpop.f32.mrb[0].mxu0
        %v4486 = vadd.f32 %v4358, %v4485
        %v4487 = vpop.f32.mrb[0].mxu0
        %4488 = vmatprep.mubr.bf16.mxu0 0
        %4489 = vmatmul.mubr.bf16.gmra.mrb[0].mxu0 %v4335
        %v4490 = vpop.f32.mrb[0].mxu0
        %v4491 = vadd.f32 %v4358, %v4490
        %v4492 = vpop.f32.mrb[0].mxu0
        %v4493 = vpop.f32.mrb[0].mxu0
        %v4494 = vadd.f32 %v4358, %v4493
        %v4495 = vpop.f32.mrb[0].mxu0
        %4496 = vmatprep.mubr.bf16.mxu0 0
        %4497 = vmatmul.mubr.bf16.gmra.mrb[0].mxu0 %v4336
        %v4498 = vpop.f32.mrb[0].mxu0
        %v4499 = vadd.f32 %v4358, %v4498
        %v4500 = vpop.f32.mrb[0].mxu0
        %v4501 = vpop.f32.mrb[0].mxu0
        %v4502 = vadd.f32 %v4358, %v4501
        %v4503 = vpop.f32.mrb[0].mxu0
        %4504 = vdwg.mxu0
        %v4505 = vadd.f32 %v1589, %v4443
        %v4506 = vadd.f32 %v1590, %v4446
        %v4507 = vadd.f32 %v1591, %v4451
        %v4508 = vadd.f32 %v1592, %v4454
        %v4509 = vadd.f32 %v1593, %v4459
        %v4510 = vadd.f32 %v1594, %v4462
        %v4511 = vadd.f32 %v1595, %v4467
        %v4512 = vadd.f32 %v1596, %v4470
        %v4513 = vadd.f32 %v1597, %v4475
        %v4514 = vadd.f32 %v1598, %v4478
        %v4515 = vadd.f32 %v1599, %v4483
        %v4516 = vadd.f32 %v1600, %v4486
        %v4517 = vadd.f32 %v1601, %v4491
        %v4518 = vadd.f32 %v1602, %v4494
        %v4519 = vadd.f32 %v1603, %v4499
        %v4520 = vadd.f32 %v1604, %v4502
        %4521 = vadd.xlane.f32.xlu0 %v4505
        %v4522 = vpop.xlane.xlu0 %4521
        %4523 = vadd.xlane.f32.xlu0 %v4506
        %v4524 = vpop.xlane.xlu0 %4523
        %4525 = vadd.xlane.f32.xlu0 %v4507
        %v4526 = vpop.xlane.xlu0 %4525
        %4527 = vadd.xlane.f32.xlu0 %v4508
        %v4528 = vpop.xlane.xlu0 %4527
        %4529 = vadd.xlane.f32.xlu0 %v4509
        %v4530 = vpop.xlane.xlu0 %4529
        %4531 = vadd.xlane.f32.xlu0 %v4510
        %v4532 = vpop.xlane.xlu0 %4531
        %4533 = vadd.xlane.f32.xlu0 %v4511
        %v4534 = vpop.xlane.xlu0 %4533
        %4535 = vadd.xlane.f32.xlu0 %v4512
        %v4536 = vpop.xlane.xlu0 %4535
        %4537 = vadd.xlane.f32.xlu0 %v4513
        %v4538 = vpop.xlane.xlu0 %4537
        %4539 = vadd.xlane.f32.xlu0 %v4514
        %v4540 = vpop.xlane.xlu0 %4539
        %4541 = vadd.xlane.f32.xlu0 %v4515
        %v4542 = vpop.xlane.xlu0 %4541
        %4543 = vadd.xlane.f32.xlu0 %v4516
        %v4544 = vpop.xlane.xlu0 %4543
        %4545 = vadd.xlane.f32.xlu0 %v4517
        %v4546 = vpop.xlane.xlu0 %4545
        %4547 = vadd.xlane.f32.xlu0 %v4518
        %v4548 = vpop.xlane.xlu0 %4547
        %4549 = vadd.xlane.f32.xlu0 %v4519
        %v4550 = vpop.xlane.xlu0 %4549
        %4551 = vadd.xlane.f32.xlu0 %v4520
        %v4552 = vpop.xlane.xlu0 %4551
        %v4553 = vrcp.pop 128.0
        %v4554 = vmul.f32 %v4522, %v4553
        %v4555 = vmul.f32 %v4524, %v4553
        %v4556 = vmul.f32 %v4526, %v4553
        %v4557 = vmul.f32 %v4528, %v4553
        %v4558 = vmul.f32 %v4530, %v4553
        %v4559 = vmul.f32 %v4532, %v4553
        %v4560 = vmul.f32 %v4534, %v4553
        %v4561 = vmul.f32 %v4536, %v4553
        %v4562 = vmul.f32 %v4538, %v4553
        %v4563 = vmul.f32 %v4540, %v4553
        %v4564 = vmul.f32 %v4542, %v4553
        %v4565 = vmul.f32 %v4544, %v4553
        %v4566 = vmul.f32 %v4546, %v4553
        %v4567 = vmul.f32 %v4548, %v4553
        %v4568 = vmul.f32 %v4550, %v4553
        %v4569 = vmul.f32 %v4552, %v4553
        %v4570 = vsub.f32 %v4505, %v4554
        %v4571 = vsub.f32 %v4506, %v4555
        %v4572 = vsub.f32 %v4507, %v4556
        %v4573 = vsub.f32 %v4508, %v4557
        %v4574 = vsub.f32 %v4509, %v4558
        %v4575 = vsub.f32 %v4510, %v4559
        %v4576 = vsub.f32 %v4511, %v4560
        %v4577 = vsub.f32 %v4512, %v4561
        %v4578 = vsub.f32 %v4513, %v4562
        %v4579 = vsub.f32 %v4514, %v4563
        %v4580 = vsub.f32 %v4515, %v4564
        %v4581 = vsub.f32 %v4516, %v4565
        %v4582 = vsub.f32 %v4517, %v4566
        %v4583 = vsub.f32 %v4518, %v4567
        %v4584 = vsub.f32 %v4519, %v4568
        %v4585 = vsub.f32 %v4520, %v4569
        %v4586 = vmul.f32 %v4570, %v4570
        %v4587 = vmul.f32 %v4571, %v4571
        %v4588 = vmul.f32 %v4572, %v4572
        %v4589 = vmul.f32 %v4573, %v4573
        %v4590 = vmul.f32 %v4574, %v4574
        %v4591 = vmul.f32 %v4575, %v4575
        %v4592 = vmul.f32 %v4576, %v4576
        %v4593 = vmul.f32 %v4577, %v4577
        %v4594 = vmul.f32 %v4578, %v4578
        %v4595 = vmul.f32 %v4579, %v4579
        %v4596 = vmul.f32 %v4580, %v4580
        %v4597 = vmul.f32 %v4581, %v4581
        %v4598 = vmul.f32 %v4582, %v4582
        %v4599 = vmul.f32 %v4583, %v4583
        %v4600 = vmul.f32 %v4584, %v4584
        %v4601 = vmul.f32 %v4585, %v4585
        %4602 = vadd.xlane.f32.xlu0 %v4586
        %v4603 = vpop.xlane.xlu0 %4602
        %4604 = vadd.xlane.f32.xlu0 %v4587
        %v4605 = vpop.xlane.xlu0 %4604
        %4606 = vadd.xlane.f32.xlu0 %v4588
        %v4607 = vpop.xlane.xlu0 %4606
        %4608 = vadd.xlane.f32.xlu0 %v4589
        %v4609 = vpop.xlane.xlu0 %4608
        %4610 = vadd.xlane.f32.xlu0 %v4590
        %v4611 = vpop.xlane.xlu0 %4610
        %4612 = vadd.xlane.f32.xlu0 %v4591
        %v4613 = vpop.xlane.xlu0 %4612
        %4614 = vadd.xlane.f32.xlu0 %v4592
        %v4615 = vpop.xlane.xlu0 %4614
        %4616 = vadd.xlane.f32.xlu0 %v4593
        %v4617 = vpop.xlane.xlu0 %4616
        %4618 = vadd.xlane.f32.xlu0 %v4594
        %v4619 = vpop.xlane.xlu0 %4618
        %4620 = vadd.xlane.f32.xlu0 %v4595
        %v4621 = vpop.xlane.xlu0 %4620
        %4622 = vadd.xlane.f32.xlu0 %v4596
        %v4623 = vpop.xlane.xlu0 %4622
        %4624 = vadd.xlane.f32.xlu0 %v4597
        %v4625 = vpop.xlane.xlu0 %4624
        %4626 = vadd.xlane.f32.xlu0 %v4598
        %v4627 = vpop.xlane.xlu0 %4626
        %4628 = vadd.xlane.f32.xlu0 %v4599
        %v4629 = vpop.xlane.xlu0 %4628
        %4630 = vadd.xlane.f32.xlu0 %v4600
        %v4631 = vpop.xlane.xlu0 %4630
        %4632 = vadd.xlane.f32.xlu0 %v4601
        %v4633 = vpop.xlane.xlu0 %4632
        %v4634 = vmul.f32 %v4603, %v4553
        %v4635 = vmul.f32 %v4605, %v4553
        %v4636 = vmul.f32 %v4607, %v4553
        %v4637 = vmul.f32 %v4609, %v4553
        %v4638 = vmul.f32 %v4611, %v4553
        %v4639 = vmul.f32 %v4613, %v4553
        %v4640 = vmul.f32 %v4615, %v4553
        %v4641 = vmul.f32 %v4617, %v4553
        %v4642 = vmul.f32 %v4619, %v4553
        %v4643 = vmul.f32 %v4621, %v4553
        %v4644 = vmul.f32 %v4623, %v4553
        %v4645 = vmul.f32 %v4625, %v4553
        %v4646 = vmul.f32 %v4627, %v4553
        %v4647 = vmul.f32 %v4629, %v4553
        %v4648 = vmul.f32 %v4631, %v4553
        %v4649 = vmul.f32 %v4633, %v4553
        %v4650 = vadd.f32 %v4634, 1e-05
        %v4651 = vadd.f32 %v4635, 1e-05
        %v4652 = vadd.f32 %v4636, 1e-05
        %v4653 = vadd.f32 %v4637, 1e-05
        %v4654 = vadd.f32 %v4638, 1e-05
        %v4655 = vadd.f32 %v4639, 1e-05
        %v4656 = vadd.f32 %v4640, 1e-05
        %v4657 = vadd.f32 %v4641, 1e-05
        %v4658 = vadd.f32 %v4642, 1e-05
        %v4659 = vadd.f32 %v4643, 1e-05
        %v4660 = vadd.f32 %v4644, 1e-05
        %v4661 = vadd.f32 %v4645, 1e-05
        %v4662 = vadd.f32 %v4646, 1e-05
        %v4663 = vadd.f32 %v4647, 1e-05
        %v4664 = vadd.f32 %v4648, 1e-05
        %v4665 = vadd.f32 %v4649, 1e-05
        %v4666 = vrsqrt.pop %v4650
        %v4667 = vrsqrt.pop %v4651
        %v4668 = vrsqrt.pop %v4652
        %v4669 = vrsqrt.pop %v4653
        %v4670 = vrsqrt.pop %v4654
        %v4671 = vrsqrt.pop %v4655
        %v4672 = vrsqrt.pop %v4656
        %v4673 = vrsqrt.pop %v4657
        %v4674 = vrsqrt.pop %v4658
        %v4675 = vrsqrt.pop %v4659
        %v4676 = vrsqrt.pop %v4660
        %v4677 = vrsqrt.pop %v4661
        %v4678 = vrsqrt.pop %v4662
        %v4679 = vrsqrt.pop %v4663
        %v4680 = vrsqrt.pop %v4664
        %v4681 = vrsqrt.pop %v4665
        %v4682 = vmul.f32 %v4570, %v4666
        %v4683 = vmul.f32 %v4571, %v4667
        %v4684 = vmul.f32 %v4572, %v4668
        %v4685 = vmul.f32 %v4573, %v4669
        %v4686 = vmul.f32 %v4574, %v4670
        %v4687 = vmul.f32 %v4575, %v4671
        %v4688 = vmul.f32 %v4576, %v4672
        %v4689 = vmul.f32 %v4577, %v4673
        %v4690 = vmul.f32 %v4578, %v4674
        %v4691 = vmul.f32 %v4579, %v4675
        %v4692 = vmul.f32 %v4580, %v4676
        %v4693 = vmul.f32 %v4581, %v4677
        %v4694 = vmul.f32 %v4582, %v4678
        %v4695 = vmul.f32 %v4583, %v4679
        %v4696 = vmul.f32 %v4584, %v4680
        %v4697 = vmul.f32 %v4585, %v4681
        %v4698 = vld [vmem:[%s15] sm:$0x1]
        %v4700 = vlaneseq
        %v4701 = vshrl.u32 %v4700, 7
        %v4702 = vsub.s32 0, %v4701
        %v4703 = vrot.slane %v4698, %v4702
        %v4705 = vmul.f32 %v4682, %v4703
        %v4706 = vmul.f32 %v4683, %v4703
        %v4707 = vmul.f32 %v4684, %v4703
        %v4708 = vmul.f32 %v4685, %v4703
        %v4709 = vmul.f32 %v4686, %v4703
        %v4710 = vmul.f32 %v4687, %v4703
        %v4711 = vmul.f32 %v4688, %v4703
        %v4712 = vmul.f32 %v4689, %v4703
        %v4713 = vmul.f32 %v4690, %v4703
        %v4714 = vmul.f32 %v4691, %v4703
        %v4715 = vmul.f32 %v4692, %v4703
        %v4716 = vmul.f32 %v4693, %v4703
        %v4717 = vmul.f32 %v4694, %v4703
        %v4718 = vmul.f32 %v4695, %v4703
        %v4719 = vmul.f32 %v4696, %v4703
        %v4720 = vmul.f32 %v4697, %v4703
        %v4721 = vld [vmem:[%s16] sm:$0x1]
        %v4723 = vlaneseq
        %v4724 = vshrl.u32 %v4723, 7
        %v4725 = vsub.s32 0, %v4724
        %v4726 = vrot.slane %v4721, %v4725
        %v4728 = vadd.f32 %v4705, %v4726
        %v4729 = vadd.f32 %v4706, %v4726
        %v4730 = vadd.f32 %v4707, %v4726
        %v4731 = vadd.f32 %v4708, %v4726
        %v4732 = vadd.f32 %v4709, %v4726
        %v4733 = vadd.f32 %v4710, %v4726
        %v4734 = vadd.f32 %v4711, %v4726
        %v4735 = vadd.f32 %v4712, %v4726
        %v4736 = vadd.f32 %v4713, %v4726
        %v4737 = vadd.f32 %v4714, %v4726
        %v4738 = vadd.f32 %v4715, %v4726
        %v4739 = vadd.f32 %v4716, %v4726
        %v4740 = vadd.f32 %v4717, %v4726
        %v4741 = vadd.f32 %v4718, %v4726
        %v4742 = vadd.f32 %v4719, %v4726
        %v4743 = vadd.f32 %v4720, %v4726
        %v4744 = vpack.c.bf16 %v4729, %v4728
        %v4745 = vpack.c.bf16 %v4731, %v4730
        %v4746 = vpack.c.bf16 %v4733, %v4732
        %v4747 = vpack.c.bf16 %v4735, %v4734
        %v4748 = vpack.c.bf16 %v4737, %v4736
        %v4749 = vpack.c.bf16 %v4739, %v4738
        %v4750 = vpack.c.bf16 %v4741, %v4740
        %v4751 = vpack.c.bf16 %v4743, %v4742
        %v4752 = vld [vmem:[%s11] sm:$0xff]
        %v4753 = vld [vmem:[%s11 + $0x8] sm:$0xff]
        %v4754 = vld [vmem:[%s11 + $0x10] sm:$0xff]
        %v4755 = vld [vmem:[%s11 + $0x18] sm:$0xff]
        %v4756 = vld [vmem:[%s11 + $0x20] sm:$0xff]
        %v4757 = vld [vmem:[%s11 + $0x28] sm:$0xff]
        %v4758 = vld [vmem:[%s11 + $0x30] sm:$0xff]
        %v4759 = vld [vmem:[%s11 + $0x38] sm:$0xff]
        %v4760 = vld [vmem:[%s11 + $0x40] sm:$0xff]
        %v4761 = vld [vmem:[%s11 + $0x48] sm:$0xff]
        %v4762 = vld [vmem:[%s11 + $0x50] sm:$0xff]
        %v4763 = vld [vmem:[%s11 + $0x58] sm:$0xff]
        %v4764 = vld [vmem:[%s11 + $0x60] sm:$0xff]
        %v4765 = vld [vmem:[%s11 + $0x68] sm:$0xff]
        %v4766 = vld [vmem:[%s11 + $0x70] sm:$0xff]
        %v4767 = vld [vmem:[%s11 + $0x78] sm:$0xff]
        %v4768 = vld [vmem:[%s12] sm:$0x3]
        %v4770 = vlaneseq
        %v4771 = vshrl.u32 %v4770, 7
        %v4772 = vsub.s32 0, %v4771
        %v4773 = vrot.slane %v4768, %v4772
        %v4774 = vlaneseq
        %v4775 = vshrl.u32 %v4774, 7
        %v4776 = vsub.s32 1, %v4775
        %v4777 = vrot.slane %v4768, %v4776
        %v4796 = vunpack.c.l.b16 %v4752
        %v4797 = vunpack.c.h.b16 %v4752
        %v4798 = vunpack.c.l.b16 %v4753
        %v4799 = vunpack.c.h.b16 %v4753
        %v4800 = vunpack.c.l.b16 %v4754
        %v4801 = vunpack.c.h.b16 %v4754
        %v4802 = vunpack.c.l.b16 %v4755
        %v4803 = vunpack.c.h.b16 %v4755
        %v4804 = vunpack.c.l.b16 %v4756
        %v4805 = vunpack.c.h.b16 %v4756
        %v4806 = vunpack.c.l.b16 %v4757
        %v4807 = vunpack.c.h.b16 %v4757
        %v4808 = vunpack.c.l.b16 %v4758
        %v4809 = vunpack.c.h.b16 %v4758
        %v4810 = vunpack.c.l.b16 %v4759
        %v4811 = vunpack.c.h.b16 %v4759
        %v4812 = vunpack.c.l.b16 %v4760
        %v4813 = vunpack.c.h.b16 %v4760
        %v4814 = vunpack.c.l.b16 %v4761
        %v4815 = vunpack.c.h.b16 %v4761
        %v4816 = vunpack.c.l.b16 %v4762
        %v4817 = vunpack.c.h.b16 %v4762
        %v4818 = vunpack.c.l.b16 %v4763
        %v4819 = vunpack.c.h.b16 %v4763
        %v4820 = vunpack.c.l.b16 %v4764
        %v4821 = vunpack.c.h.b16 %v4764
        %v4822 = vunpack.c.l.b16 %v4765
        %v4823 = vunpack.c.h.b16 %v4765
        %v4824 = vunpack.c.l.b16 %v4766
        %v4825 = vunpack.c.h.b16 %v4766
        %v4826 = vunpack.c.l.b16 %v4767
        %v4827 = vunpack.c.h.b16 %v4767
        %v4828 = vpack.c.b16 %v4798, %v4796
        %v4829 = vpack.c.b16 %v4799, %v4797
        %v4830 = vpack.c.b16 %v4802, %v4800
        %v4831 = vpack.c.b16 %v4803, %v4801
        %v4832 = vpack.c.b16 %v4806, %v4804
        %v4833 = vpack.c.b16 %v4807, %v4805
        %v4834 = vpack.c.b16 %v4810, %v4808
        %v4835 = vpack.c.b16 %v4811, %v4809
        %v4836 = vpack.c.b16 %v4814, %v4812
        %v4837 = vpack.c.b16 %v4815, %v4813
        %v4838 = vpack.c.b16 %v4818, %v4816
        %v4839 = vpack.c.b16 %v4819, %v4817
        %v4840 = vpack.c.b16 %v4822, %v4820
        %v4841 = vpack.c.b16 %v4823, %v4821
        %v4842 = vpack.c.b16 %v4826, %v4824
        %v4843 = vpack.c.b16 %v4827, %v4825
        %4860 = vmatprep.subr.bf16.mxu0 %v4829
        %4861 = vmatpush1.bf16.msra.mxu0 %v4828
        %4862 = vmatprep.subr.bf16.mxu0 %v4831
        %4863 = vmatpush1.bf16.msra.mxu0 %v4830
        %4864 = vmatprep.subr.bf16.mxu0 %v4833
        %4865 = vmatpush1.bf16.msra.mxu0 %v4832
        %4866 = vmatprep.subr.bf16.mxu0 %v4835
        %4867 = vmatpush1.bf16.msra.mxu0 %v4834
        %4868 = vmatprep.subr.bf16.mxu0 %v4837
        %4869 = vmatpush1.bf16.msra.mxu0 %v4836
        %4870 = vmatprep.subr.bf16.mxu0 %v4839
        %4871 = vmatpush1.bf16.msra.mxu0 %v4838
        %4872 = vmatprep.subr.bf16.mxu0 %v4841
        %4873 = vmatpush1.bf16.msra.mxu0 %v4840
        %4874 = vmatprep.subr.bf16.mxu0 %v4843
        %4875 = vmatpush1.bf16.msra.mxu0 %v4842
        %4876 = vmatprep.subr.bf16.mxu0 0
        %4877 = vmatpush1.bf16.msra.mxu0 0
        %4878 = vmatprep.subr.bf16.mxu0 0
        %4879 = vmatpush1.bf16.msra.mxu0 0
        %4880 = vmatprep.subr.bf16.mxu0 0
        %4881 = vmatpush1.bf16.msra.mxu0 0
        %4882 = vmatprep.subr.bf16.mxu0 0
        %4883 = vmatpush1.bf16.msra.mxu0 0
        %4884 = vmatprep.subr.bf16.mxu0 0
        %4885 = vmatpush1.bf16.msra.mxu0 0
        %4886 = vmatprep.subr.bf16.mxu0 0
        %4887 = vmatpush1.bf16.msra.mxu0 0
        %4888 = vmatprep.subr.bf16.mxu0 0
        %4889 = vmatpush1.bf16.msra.mxu0 0
        %4890 = vmatprep.subr.bf16.mxu0 0
        %4891 = vmatpush1.bf16.msra.mxu0 0
        %4892 = vmatprep.mubr.bf16.mxu0 0
        %4893 = vmatmul.mubr.bf16.gmra.mrb[0].mxu0 %v4744
        %v4894 = vpop.f32.mrb[0].mxu0
        %v4895 = vadd.f32 %v4773, %v4894
        %v4896 = vpop.f32.mrb[0].mxu0
        %v4897 = vadd.f32 %v4777, %v4896
        %v4898 = vpop.f32.mrb[0].mxu0
        %v4899 = vadd.f32 %v4773, %v4898
        %v4900 = vpop.f32.mrb[0].mxu0
        %v4901 = vadd.f32 %v4777, %v4900
        %4902 = vmatprep.mubr.bf16.mxu0 0
        %4903 = vmatmul.mubr.bf16.gmra.mrb[0].mxu0 %v4745
        %v4904 = vpop.f32.mrb[0].mxu0
        %v4905 = vadd.f32 %v4773, %v4904
        %v4906 = vpop.f32.mrb[0].mxu0
        %v4907 = vadd.f32 %v4777, %v4906
        %v4908 = vpop.f32.mrb[0].mxu0
        %v4909 = vadd.f32 %v4773, %v4908
        %v4910 = vpop.f32.mrb[0].mxu0
        %v4911 = vadd.f32 %v4777, %v4910
        %4912 = vmatprep.mubr.bf16.mxu0 0
        %4913 = vmatmul.mubr.bf16.gmra.mrb[0].mxu0 %v4746
        %v4914 = vpop.f32.mrb[0].mxu0
        %v4915 = vadd.f32 %v4773, %v4914
        %v4916 = vpop.f32.mrb[0].mxu0
        %v4917 = vadd.f32 %v4777, %v4916
        %v4918 = vpop.f32.mrb[0].mxu0
        %v4919 = vadd.f32 %v4773, %v4918
        %v4920 = vpop.f32.mrb[0].mxu0
        %v4921 = vadd.f32 %v4777, %v4920
        %4922 = vmatprep.mubr.bf16.mxu0 0
        %4923 = vmatmul.mubr.bf16.gmra.mrb[0].mxu0 %v4747
        %v4924 = vpop.f32.mrb[0].mxu0
        %v4925 = vadd.f32 %v4773, %v4924
        %v4926 = vpop.f32.mrb[0].mxu0
        %v4927 = vadd.f32 %v4777, %v4926
        %v4928 = vpop.f32.mrb[0].mxu0
        %v4929 = vadd.f32 %v4773, %v4928
        %v4930 = vpop.f32.mrb[0].mxu0
        %v4931 = vadd.f32 %v4777, %v4930
        %4932 = vmatprep.mubr.bf16.mxu0 0
        %4933 = vmatmul.mubr.bf16.gmra.mrb[0].mxu0 %v4748
        %v4934 = vpop.f32.mrb[0].mxu0
        %v4935 = vadd.f32 %v4773, %v4934
        %v4936 = vpop.f32.mrb[0].mxu0
        %v4937 = vadd.f32 %v4777, %v4936
        %v4938 = vpop.f32.mrb[0].mxu0
        %v4939 = vadd.f32 %v4773, %v4938
        %v4940 = vpop.f32.mrb[0].mxu0
        %v4941 = vadd.f32 %v4777, %v4940
        %4942 = vmatprep.mubr.bf16.mxu0 0
        %4943 = vmatmul.mubr.bf16.gmra.mrb[0].mxu0 %v4749
        %v4944 = vpop.f32.mrb[0].mxu0
        %v4945 = vadd.f32 %v4773, %v4944
        %v4946 = vpop.f32.mrb[0].mxu0
        %v4947 = vadd.f32 %v4777, %v4946
        %v4948 = vpop.f32.mrb[0].mxu0
        %v4949 = vadd.f32 %v4773, %v4948
        %v4950 = vpop.f32.mrb[0].mxu0
        %v4951 = vadd.f32 %v4777, %v4950
        %4952 = vmatprep.mubr.bf16.mxu0 0
        %4953 = vmatmul.mubr.bf16.gmra.mrb[0].mxu0 %v4750
        %v4954 = vpop.f32.mrb[0].mxu0
        %v4955 = vadd.f32 %v4773, %v4954
        %v4956 = vpop.f32.mrb[0].mxu0
        %v4957 = vadd.f32 %v4777, %v4956
        %v4958 = vpop.f32.mrb[0].mxu0
        %v4959 = vadd.f32 %v4773, %v4958
        %v4960 = vpop.f32.mrb[0].mxu0
        %v4961 = vadd.f32 %v4777, %v4960
        %4962 = vmatprep.mubr.bf16.mxu0 0
        %4963 = vmatmul.mubr.bf16.gmra.mrb[0].mxu0 %v4751
        %v4964 = vpop.f32.mrb[0].mxu0
        %v4965 = vadd.f32 %v4773, %v4964
        %v4966 = vpop.f32.mrb[0].mxu0
        %v4967 = vadd.f32 %v4777, %v4966
        %v4968 = vpop.f32.mrb[0].mxu0
        %v4969 = vadd.f32 %v4773, %v4968
        %v4970 = vpop.f32.mrb[0].mxu0
        %v4971 = vadd.f32 %v4777, %v4970
        %4972 = vdwg.mxu0
        %v4973 = vmax.f32 %v4895, 0.0
        %v4974 = vmax.f32 %v4897, 0.0
        %v4975 = vmax.f32 %v4899, 0.0
        %v4976 = vmax.f32 %v4901, 0.0
        %v4977 = vmax.f32 %v4905, 0.0
        %v4978 = vmax.f32 %v4907, 0.0
        %v4979 = vmax.f32 %v4909, 0.0
        %v4980 = vmax.f32 %v4911, 0.0
        %v4981 = vmax.f32 %v4915, 0.0
        %v4982 = vmax.f32 %v4917, 0.0
        %v4983 = vmax.f32 %v4919, 0.0
        %v4984 = vmax.f32 %v4921, 0.0
        %v4985 = vmax.f32 %v4925, 0.0
        %v4986 = vmax.f32 %v4927, 0.0
        %v4987 = vmax.f32 %v4929, 0.0
        %v4988 = vmax.f32 %v4931, 0.0
        %v4989 = vmax.f32 %v4935, 0.0
        %v4990 = vmax.f32 %v4937, 0.0
        %v4991 = vmax.f32 %v4939, 0.0
        %v4992 = vmax.f32 %v4941, 0.0
        %v4993 = vmax.f32 %v4945, 0.0
        %v4994 = vmax.f32 %v4947, 0.0
        %v4995 = vmax.f32 %v4949, 0.0
        %v4996 = vmax.f32 %v4951, 0.0
        %v4997 = vmax.f32 %v4955, 0.0
        %v4998 = vmax.f32 %v4957, 0.0
        %v4999 = vmax.f32 %v4959, 0.0
        %v5000 = vmax.f32 %v4961, 0.0
        %v5001 = vmax.f32 %v4965, 0.0
        %v5002 = vmax.f32 %v4967, 0.0
        %v5003 = vmax.f32 %v4969, 0.0
        %v5004 = vmax.f32 %v4971, 0.0
        %v5005 = vpack.c.bf16 %v4975, %v4973
        %v5006 = vpack.c.bf16 %v4976, %v4974
        %v5007 = vpack.c.bf16 %v4979, %v4977
        %v5008 = vpack.c.bf16 %v4980, %v4978
        %v5009 = vpack.c.bf16 %v4983, %v4981
        %v5010 = vpack.c.bf16 %v4984, %v4982
        %v5011 = vpack.c.bf16 %v4987, %v4985
        %v5012 = vpack.c.bf16 %v4988, %v4986
        %v5013 = vpack.c.bf16 %v4991, %v4989
        %v5014 = vpack.c.bf16 %v4992, %v4990
        %v5015 = vpack.c.bf16 %v4995, %v4993
        %v5016 = vpack.c.bf16 %v4996, %v4994
        %v5017 = vpack.c.bf16 %v4999, %v4997
        %v5018 = vpack.c.bf16 %v5000, %v4998
        %v5019 = vpack.c.bf16 %v5003, %v5001
        %v5020 = vpack.c.bf16 %v5004, %v5002
        %v5021 = vld [vmem:[#allocation18] sm:$0xf]
        %v5022 = vld [vmem:[#allocation18 + $0x4] sm:$0xf]
        %v5023 = vld [vmem:[#allocation18 + $0x8] sm:$0xf]
        %v5024 = vld [vmem:[#allocation18 + $0xc] sm:$0xf]
        %v5025 = vld [vmem:[#allocation18 + $0x10] sm:$0xf]
        %v5026 = vld [vmem:[#allocation18 + $0x14] sm:$0xf]
        %v5027 = vld [vmem:[#allocation18 + $0x18] sm:$0xf]
        %v5028 = vld [vmem:[#allocation18 + $0x1c] sm:$0xf]
        %v5029 = vld [vmem:[#allocation18 + $0x20] sm:$0xf]
        %v5030 = vld [vmem:[#allocation18 + $0x24] sm:$0xf]
        %v5031 = vld [vmem:[#allocation18 + $0x28] sm:$0xf]
        %v5032 = vld [vmem:[#allocation18 + $0x2c] sm:$0xf]
        %v5033 = vld [vmem:[#allocation18 + $0x30] sm:$0xf]
        %v5034 = vld [vmem:[#allocation18 + $0x34] sm:$0xf]
        %v5035 = vld [vmem:[#allocation18 + $0x38] sm:$0xf]
        %v5036 = vld [vmem:[#allocation18 + $0x3c] sm:$0xf]
        %v5037 = vld [vmem:[#allocation18 + $0x40] sm:$0xf]
        %v5038 = vld [vmem:[#allocation18 + $0x44] sm:$0xf]
        %v5039 = vld [vmem:[#allocation18 + $0x48] sm:$0xf]
        %v5040 = vld [vmem:[#allocation18 + $0x4c] sm:$0xf]
        %v5041 = vld [vmem:[#allocation18 + $0x50] sm:$0xf]
        %v5042 = vld [vmem:[#allocation18 + $0x54] sm:$0xf]
        %v5043 = vld [vmem:[#allocation18 + $0x58] sm:$0xf]
        %v5044 = vld [vmem:[#allocation18 + $0x5c] sm:$0xf]
        %v5045 = vld [vmem:[#allocation18 + $0x60] sm:$0xf]
        %v5046 = vld [vmem:[#allocation18 + $0x64] sm:$0xf]
        %v5047 = vld [vmem:[#allocation18 + $0x68] sm:$0xf]
        %v5048 = vld [vmem:[#allocation18 + $0x6c] sm:$0xf]
        %v5049 = vld [vmem:[#allocation18 + $0x70] sm:$0xf]
        %v5050 = vld [vmem:[#allocation18 + $0x74] sm:$0xf]
        %v5051 = vld [vmem:[#allocation18 + $0x78] sm:$0xf]
        %v5052 = vld [vmem:[#allocation18 + $0x7c] sm:$0xf]
        %v5053 = vld [vmem:[%s14] sm:$0x1]
        %v5055 = vlaneseq
        %v5056 = vshrl.u32 %v5055, 7
        %v5057 = vsub.s32 0, %v5056
        %v5058 = vrot.slane %v5053, %v5057
        %v5092 = vunpack.c.l.b16 %v5021
        %v5093 = vunpack.c.l.b16 %v5022
        %v5094 = vunpack.c.l.b16 %v5023
        %v5095 = vunpack.c.l.b16 %v5024
        %v5096 = vunpack.c.l.b16 %v5025
        %v5097 = vunpack.c.l.b16 %v5026
        %v5098 = vunpack.c.l.b16 %v5027
        %v5099 = vunpack.c.l.b16 %v5028
        %v5100 = vunpack.c.l.b16 %v5029
        %v5101 = vunpack.c.l.b16 %v5030
        %v5102 = vunpack.c.l.b16 %v5031
        %v5103 = vunpack.c.l.b16 %v5032
        %v5104 = vunpack.c.l.b16 %v5033
        %v5105 = vunpack.c.l.b16 %v5034
        %v5106 = vunpack.c.l.b16 %v5035
        %v5107 = vunpack.c.l.b16 %v5036
        %v5108 = vunpack.c.l.b16 %v5037
        %v5109 = vunpack.c.l.b16 %v5038
        %v5110 = vunpack.c.l.b16 %v5039
        %v5111 = vunpack.c.l.b16 %v5040
        %v5112 = vunpack.c.l.b16 %v5041
        %v5113 = vunpack.c.l.b16 %v5042
        %v5114 = vunpack.c.l.b16 %v5043
        %v5115 = vunpack.c.l.b16 %v5044
        %v5116 = vunpack.c.l.b16 %v5045
        %v5117 = vunpack.c.l.b16 %v5046
        %v5118 = vunpack.c.l.b16 %v5047
        %v5119 = vunpack.c.l.b16 %v5048
        %v5120 = vunpack.c.l.b16 %v5049
        %v5121 = vunpack.c.l.b16 %v5050
        %v5122 = vunpack.c.l.b16 %v5051
        %v5123 = vunpack.c.l.b16 %v5052
        %v5124 = vpack.c.b16 %v5093, %v5092
        %v5125 = vpack.c.b16 %v5095, %v5094
        %v5126 = vpack.c.b16 %v5097, %v5096
        %v5127 = vpack.c.b16 %v5099, %v5098
        %v5128 = vpack.c.b16 %v5101, %v5100
        %v5129 = vpack.c.b16 %v5103, %v5102
        %v5130 = vpack.c.b16 %v5105, %v5104
        %v5131 = vpack.c.b16 %v5107, %v5106
        %v5132 = vpack.c.b16 %v5109, %v5108
        %v5133 = vpack.c.b16 %v5111, %v5110
        %v5134 = vpack.c.b16 %v5113, %v5112
        %v5135 = vpack.c.b16 %v5115, %v5114
        %v5136 = vpack.c.b16 %v5117, %v5116
        %v5137 = vpack.c.b16 %v5119, %v5118
        %v5138 = vpack.c.b16 %v5121, %v5120
        %v5139 = vpack.c.b16 %v5123, %v5122
        %5156 = vmatprep.subr.bf16.mxu0 0
        %5157 = vmatpush1.bf16.msra.mxu0 %v5124
        %5158 = vmatprep.subr.bf16.mxu0 0
        %5159 = vmatpush1.bf16.msra.mxu0 %v5125
        %5160 = vmatprep.subr.bf16.mxu0 0
        %5161 = vmatpush1.bf16.msra.mxu0 %v5126
        %5162 = vmatprep.subr.bf16.mxu0 0
        %5163 = vmatpush1.bf16.msra.mxu0 %v5127
        %5164 = vmatprep.subr.bf16.mxu0 0
        %5165 = vmatpush1.bf16.msra.mxu0 %v5128
        %5166 = vmatprep.subr.bf16.mxu0 0
        %5167 = vmatpush1.bf16.msra.mxu0 %v5129
        %5168 = vmatprep.subr.bf16.mxu0 0
        %5169 = vmatpush1.bf16.msra.mxu0 %v5130
        %5170 = vmatprep.subr.bf16.mxu0 0
        %5171 = vmatpush1.bf16.msra.mxu0 %v5131
        %5172 = vmatprep.subr.bf16.mxu0 0
        %5173 = vmatpush1.bf16.msra.mxu0 %v5132
        %5174 = vmatprep.subr.bf16.mxu0 0
        %5175 = vmatpush1.bf16.msra.mxu0 %v5133
        %5176 = vmatprep.subr.bf16.mxu0 0
        %5177 = vmatpush1.bf16.msra.mxu0 %v5134
        %5178 = vmatprep.subr.bf16.mxu0 0
        %5179 = vmatpush1.bf16.msra.mxu0 %v5135
        %5180 = vmatprep.subr.bf16.mxu0 0
        %5181 = vmatpush1.bf16.msra.mxu0 %v5136
        %5182 = vmatprep.subr.bf16.mxu0 0
        %5183 = vmatpush1.bf16.msra.mxu0 %v5137
        %5184 = vmatprep.subr.bf16.mxu0 0
        %5185 = vmatpush1.bf16.msra.mxu0 %v5138
        %5186 = vmatprep.subr.bf16.mxu0 0
        %5187 = vmatpush1.bf16.msra.mxu0 %v5139
        %5188 = vmatprep.mubr.bf16.mxu0 %v5006
        %5189 = vmatmul.mubr.bf16.gmra.mrb[0].mxu0 %v5005
        %v5190 = vpop.f32.mrb[0].mxu0
        %v5191 = vadd.f32 %v5058, %v5190
        %v5192 = vpop.f32.mrb[0].mxu0
        %v5193 = vpop.f32.mrb[0].mxu0
        %v5194 = vadd.f32 %v5058, %v5193
        %v5195 = vpop.f32.mrb[0].mxu0
        %5196 = vmatprep.mubr.bf16.mxu0 %v5008
        %5197 = vmatmul.mubr.bf16.gmra.mrb[0].mxu0 %v5007
        %v5198 = vpop.f32.mrb[0].mxu0
        %v5199 = vadd.f32 %v5058, %v5198
        %v5200 = vpop.f32.mrb[0].mxu0
        %v5201 = vpop.f32.mrb[0].mxu0
        %v5202 = vadd.f32 %v5058, %v5201
        %v5203 = vpop.f32.mrb[0].mxu0
        %5204 = vmatprep.mubr.bf16.mxu0 %v5010
        %5205 = vmatmul.mubr.bf16.gmra.mrb[0].mxu0 %v5009
        %v5206 = vpop.f32.mrb[0].mxu0
        %v5207 = vadd.f32 %v5058, %v5206
        %v5208 = vpop.f32.mrb[0].mxu0
        %v5209 = vpop.f32.mrb[0].mxu0
        %v5210 = vadd.f32 %v5058, %v5209
        %v5211 = vpop.f32.mrb[0].mxu0
        %5212 = vmatprep.mubr.bf16.mxu0 %v5012
        %5213 = vmatmul.mubr.bf16.gmra.mrb[0].mxu0 %v5011
        %v5214 = vpop.f32.mrb[0].mxu0
        %v5215 = vadd.f32 %v5058, %v5214
        %v5216 = vpop.f32.mrb[0].mxu0
        %v5217 = vpop.f32.mrb[0].mxu0
        %v5218 = vadd.f32 %v5058, %v5217
        %v5219 = vpop.f32.mrb[0].mxu0
        %5220 = vmatprep.mubr.bf16.mxu0 %v5014
        %5221 = vmatmul.mubr.bf16.gmra.mrb[0].mxu0 %v5013
        %v5222 = vpop.f32.mrb[0].mxu0
        %v5223 = vadd.f32 %v5058, %v5222
        %v5224 = vpop.f32.mrb[0].mxu0
        %v5225 = vpop.f32.mrb[0].mxu0
        %v5226 = vadd.f32 %v5058, %v5225
        %v5227 = vpop.f32.mrb[0].mxu0
        %5228 = vmatprep.mubr.bf16.mxu0 %v5016
        %5229 = vmatmul.mubr.bf16.gmra.mrb[0].mxu0 %v5015
        %v5230 = vpop.f32.mrb[0].mxu0
        %v5231 = vadd.f32 %v5058, %v5230
        %v5232 = vpop.f32.mrb[0].mxu0
        %v5233 = vpop.f32.mrb[0].mxu0
        %v5234 = vadd.f32 %v5058, %v5233
        %v5235 = vpop.f32.mrb[0].mxu0
        %5236 = vmatprep.mubr.bf16.mxu0 %v5018
        %5237 = vmatmul.mubr.bf16.gmra.mrb[0].mxu0 %v5017
        %v5238 = vpop.f32.mrb[0].mxu0
        %v5239 = vadd.f32 %v5058, %v5238
        %v5240 = vpop.f32.mrb[0].mxu0
        %v5241 = vpop.f32.mrb[0].mxu0
        %v5242 = vadd.f32 %v5058, %v5241
        %v5243 = vpop.f32.mrb[0].mxu0
        %5244 = vmatprep.mubr.bf16.mxu0 %v5020
        %5245 = vmatmul.mubr.bf16.gmra.mrb[0].mxu0 %v5019
        %v5246 = vpop.f32.mrb[0].mxu0
        %v5247 = vadd.f32 %v5058, %v5246
        %v5248 = vpop.f32.mrb[0].mxu0
        %v5249 = vpop.f32.mrb[0].mxu0
        %v5250 = vadd.f32 %v5058, %v5249
        %v5251 = vpop.f32.mrb[0].mxu0
        %5252 = vdwg.mxu0
        %v5253 = vadd.f32 %v4728, %v5191
        %v5254 = vadd.f32 %v4729, %v5194
        %v5255 = vadd.f32 %v4730, %v5199
        %v5256 = vadd.f32 %v4731, %v5202
        %v5257 = vadd.f32 %v4732, %v5207
        %v5258 = vadd.f32 %v4733, %v5210
        %v5259 = vadd.f32 %v4734, %v5215
        %v5260 = vadd.f32 %v4735, %v5218
        %v5261 = vadd.f32 %v4736, %v5223
        %v5262 = vadd.f32 %v4737, %v5226
        %v5263 = vadd.f32 %v4738, %v5231
        %v5264 = vadd.f32 %v4739, %v5234
        %v5265 = vadd.f32 %v4740, %v5239
        %v5266 = vadd.f32 %v4741, %v5242
        %v5267 = vadd.f32 %v4742, %v5247
        %v5268 = vadd.f32 %v4743, %v5250
        %5269 = vadd.xlane.f32.xlu0 %v5253
        %v5270 = vpop.xlane.xlu0 %5269
        %5271 = vadd.xlane.f32.xlu0 %v5254
        %v5272 = vpop.xlane.xlu0 %5271
        %5273 = vadd.xlane.f32.xlu0 %v5255
        %v5274 = vpop.xlane.xlu0 %5273
        %5275 = vadd.xlane.f32.xlu0 %v5256
        %v5276 = vpop.xlane.xlu0 %5275
        %5277 = vadd.xlane.f32.xlu0 %v5257
        %v5278 = vpop.xlane.xlu0 %5277
        %5279 = vadd.xlane.f32.xlu0 %v5258
        %v5280 = vpop.xlane.xlu0 %5279
        %5281 = vadd.xlane.f32.xlu0 %v5259
        %v5282 = vpop.xlane.xlu0 %5281
        %5283 = vadd.xlane.f32.xlu0 %v5260
        %v5284 = vpop.xlane.xlu0 %5283
        %5285 = vadd.xlane.f32.xlu0 %v5261
        %v5286 = vpop.xlane.xlu0 %5285
        %5287 = vadd.xlane.f32.xlu0 %v5262
        %v5288 = vpop.xlane.xlu0 %5287
        %5289 = vadd.xlane.f32.xlu0 %v5263
        %v5290 = vpop.xlane.xlu0 %5289
        %5291 = vadd.xlane.f32.xlu0 %v5264
        %v5292 = vpop.xlane.xlu0 %5291
        %5293 = vadd.xlane.f32.xlu0 %v5265
        %v5294 = vpop.xlane.xlu0 %5293
        %5295 = vadd.xlane.f32.xlu0 %v5266
        %v5296 = vpop.xlane.xlu0 %5295
        %5297 = vadd.xlane.f32.xlu0 %v5267
        %v5298 = vpop.xlane.xlu0 %5297
        %5299 = vadd.xlane.f32.xlu0 %v5268
        %v5300 = vpop.xlane.xlu0 %5299
        %v5301 = vmul.f32 %v5270, %v4553
        %v5302 = vmul.f32 %v5272, %v4553
        %v5303 = vmul.f32 %v5274, %v4553
        %v5304 = vmul.f32 %v5276, %v4553
        %v5305 = vmul.f32 %v5278, %v4553
        %v5306 = vmul.f32 %v5280, %v4553
        %v5307 = vmul.f32 %v5282, %v4553
        %v5308 = vmul.f32 %v5284, %v4553
        %v5309 = vmul.f32 %v5286, %v4553
        %v5310 = vmul.f32 %v5288, %v4553
        %v5311 = vmul.f32 %v5290, %v4553
        %v5312 = vmul.f32 %v5292, %v4553
        %v5313 = vmul.f32 %v5294, %v4553
        %v5314 = vmul.f32 %v5296, %v4553
        %v5315 = vmul.f32 %v5298, %v4553
        %v5316 = vmul.f32 %v5300, %v4553
        %v5317 = vsub.f32 %v5253, %v5301
        %v5318 = vsub.f32 %v5254, %v5302
        %v5319 = vsub.f32 %v5255, %v5303
        %v5320 = vsub.f32 %v5256, %v5304
        %v5321 = vsub.f32 %v5257, %v5305
        %v5322 = vsub.f32 %v5258, %v5306
        %v5323 = vsub.f32 %v5259, %v5307
        %v5324 = vsub.f32 %v5260, %v5308
        %v5325 = vsub.f32 %v5261, %v5309
        %v5326 = vsub.f32 %v5262, %v5310
        %v5327 = vsub.f32 %v5263, %v5311
        %v5328 = vsub.f32 %v5264, %v5312
        %v5329 = vsub.f32 %v5265, %v5313
        %v5330 = vsub.f32 %v5266, %v5314
        %v5331 = vsub.f32 %v5267, %v5315
        %v5332 = vsub.f32 %v5268, %v5316
        %v5333 = vmul.f32 %v5317, %v5317
        %v5334 = vmul.f32 %v5318, %v5318
        %v5335 = vmul.f32 %v5319, %v5319
        %v5336 = vmul.f32 %v5320, %v5320
        %v5337 = vmul.f32 %v5321, %v5321
        %v5338 = vmul.f32 %v5322, %v5322
        %v5339 = vmul.f32 %v5323, %v5323
        %v5340 = vmul.f32 %v5324, %v5324
        %v5341 = vmul.f32 %v5325, %v5325
        %v5342 = vmul.f32 %v5326, %v5326
        %v5343 = vmul.f32 %v5327, %v5327
        %v5344 = vmul.f32 %v5328, %v5328
        %v5345 = vmul.f32 %v5329, %v5329
        %v5346 = vmul.f32 %v5330, %v5330
        %v5347 = vmul.f32 %v5331, %v5331
        %v5348 = vmul.f32 %v5332, %v5332
        %5349 = vadd.xlane.f32.xlu0 %v5333
        %v5350 = vpop.xlane.xlu0 %5349
        %5351 = vadd.xlane.f32.xlu0 %v5334
        %v5352 = vpop.xlane.xlu0 %5351
        %5353 = vadd.xlane.f32.xlu0 %v5335
        %v5354 = vpop.xlane.xlu0 %5353
        %5355 = vadd.xlane.f32.xlu0 %v5336
        %v5356 = vpop.xlane.xlu0 %5355
        %5357 = vadd.xlane.f32.xlu0 %v5337
        %v5358 = vpop.xlane.xlu0 %5357
        %5359 = vadd.xlane.f32.xlu0 %v5338
        %v5360 = vpop.xlane.xlu0 %5359
        %5361 = vadd.xlane.f32.xlu0 %v5339
        %v5362 = vpop.xlane.xlu0 %5361
        %5363 = vadd.xlane.f32.xlu0 %v5340
        %v5364 = vpop.xlane.xlu0 %5363
        %5365 = vadd.xlane.f32.xlu0 %v5341
        %v5366 = vpop.xlane.xlu0 %5365
        %5367 = vadd.xlane.f32.xlu0 %v5342
        %v5368 = vpop.xlane.xlu0 %5367
        %5369 = vadd.xlane.f32.xlu0 %v5343
        %v5370 = vpop.xlane.xlu0 %5369
        %5371 = vadd.xlane.f32.xlu0 %v5344
        %v5372 = vpop.xlane.xlu0 %5371
        %5373 = vadd.xlane.f32.xlu0 %v5345
        %v5374 = vpop.xlane.xlu0 %5373
        %5375 = vadd.xlane.f32.xlu0 %v5346
        %v5376 = vpop.xlane.xlu0 %5375
        %5377 = vadd.xlane.f32.xlu0 %v5347
        %v5378 = vpop.xlane.xlu0 %5377
        %5379 = vadd.xlane.f32.xlu0 %v5348
        %v5380 = vpop.xlane.xlu0 %5379
        %v5381 = vmul.f32 %v5350, %v4553
        %v5382 = vmul.f32 %v5352, %v4553
        %v5383 = vmul.f32 %v5354, %v4553
        %v5384 = vmul.f32 %v5356, %v4553
        %v5385 = vmul.f32 %v5358, %v4553
        %v5386 = vmul.f32 %v5360, %v4553
        %v5387 = vmul.f32 %v5362, %v4553
        %v5388 = vmul.f32 %v5364, %v4553
        %v5389 = vmul.f32 %v5366, %v4553
        %v5390 = vmul.f32 %v5368, %v4553
        %v5391 = vmul.f32 %v5370, %v4553
        %v5392 = vmul.f32 %v5372, %v4553
        %v5393 = vmul.f32 %v5374, %v4553
        %v5394 = vmul.f32 %v5376, %v4553
        %v5395 = vmul.f32 %v5378, %v4553
        %v5396 = vmul.f32 %v5380, %v4553
        %v5397 = vadd.f32 %v5381, 1e-05
        %v5398 = vadd.f32 %v5382, 1e-05
        %v5399 = vadd.f32 %v5383, 1e-05
        %v5400 = vadd.f32 %v5384, 1e-05
        %v5401 = vadd.f32 %v5385, 1e-05
        %v5402 = vadd.f32 %v5386, 1e-05
        %v5403 = vadd.f32 %v5387, 1e-05
        %v5404 = vadd.f32 %v5388, 1e-05
        %v5405 = vadd.f32 %v5389, 1e-05
        %v5406 = vadd.f32 %v5390, 1e-05
        %v5407 = vadd.f32 %v5391, 1e-05
        %v5408 = vadd.f32 %v5392, 1e-05
        %v5409 = vadd.f32 %v5393, 1e-05
        %v5410 = vadd.f32 %v5394, 1e-05
        %v5411 = vadd.f32 %v5395, 1e-05
        %v5412 = vadd.f32 %v5396, 1e-05
        %v5413 = vrsqrt.pop %v5397
        %v5414 = vrsqrt.pop %v5398
        %v5415 = vrsqrt.pop %v5399
        %v5416 = vrsqrt.pop %v5400
        %v5417 = vrsqrt.pop %v5401
        %v5418 = vrsqrt.pop %v5402
        %v5419 = vrsqrt.pop %v5403
        %v5420 = vrsqrt.pop %v5404
        %v5421 = vrsqrt.pop %v5405
        %v5422 = vrsqrt.pop %v5406
        %v5423 = vrsqrt.pop %v5407
        %v5424 = vrsqrt.pop %v5408
        %v5425 = vrsqrt.pop %v5409
        %v5426 = vrsqrt.pop %v5410
        %v5427 = vrsqrt.pop %v5411
        %v5428 = vrsqrt.pop %v5412
        %v5429 = vmul.f32 %v5317, %v5413
        %v5430 = vmul.f32 %v5318, %v5414
        %v5431 = vmul.f32 %v5319, %v5415
        %v5432 = vmul.f32 %v5320, %v5416
        %v5433 = vmul.f32 %v5321, %v5417
        %v5434 = vmul.f32 %v5322, %v5418
        %v5435 = vmul.f32 %v5323, %v5419
        %v5436 = vmul.f32 %v5324, %v5420
        %v5437 = vmul.f32 %v5325, %v5421
        %v5438 = vmul.f32 %v5326, %v5422
        %v5439 = vmul.f32 %v5327, %v5423
        %v5440 = vmul.f32 %v5328, %v5424
        %v5441 = vmul.f32 %v5329, %v5425
        %v5442 = vmul.f32 %v5330, %v5426
        %v5443 = vmul.f32 %v5331, %v5427
        %v5444 = vmul.f32 %v5332, %v5428
        %v5445 = vld [vmem:[%s17] sm:$0x1]
        %v5447 = vlaneseq
        %v5448 = vshrl.u32 %v5447, 7
        %v5449 = vsub.s32 0, %v5448
        %v5450 = vrot.slane %v5445, %v5449
        %v5452 = vmul.f32 %v5429, %v5450
        %v5453 = vmul.f32 %v5430, %v5450
        %v5454 = vmul.f32 %v5431, %v5450
        %v5455 = vmul.f32 %v5432, %v5450
        %v5456 = vmul.f32 %v5433, %v5450
        %v5457 = vmul.f32 %v5434, %v5450
        %v5458 = vmul.f32 %v5435, %v5450
        %v5459 = vmul.f32 %v5436, %v5450
        %v5460 = vmul.f32 %v5437, %v5450
        %v5461 = vmul.f32 %v5438, %v5450
        %v5462 = vmul.f32 %v5439, %v5450
        %v5463 = vmul.f32 %v5440, %v5450
        %v5464 = vmul.f32 %v5441, %v5450
        %v5465 = vmul.f32 %v5442, %v5450
        %v5466 = vmul.f32 %v5443, %v5450
        %v5467 = vmul.f32 %v5444, %v5450
        %v5468 = vld [vmem:[%s18] sm:$0x1]
        %v5470 = vlaneseq
        %v5471 = vshrl.u32 %v5470, 7
        %v5472 = vsub.s32 0, %v5471
        %v5473 = vrot.slane %v5468, %v5472
        %v5475 = vadd.f32 %v5452, %v5473
        %v5476 = vadd.f32 %v5453, %v5473
        %v5477 = vadd.f32 %v5454, %v5473
        %v5478 = vadd.f32 %v5455, %v5473
        %v5479 = vadd.f32 %v5456, %v5473
        %v5480 = vadd.f32 %v5457, %v5473
        %v5481 = vadd.f32 %v5458, %v5473
        %v5482 = vadd.f32 %v5459, %v5473
        %v5483 = vadd.f32 %v5460, %v5473
        %v5484 = vadd.f32 %v5461, %v5473
        %v5485 = vadd.f32 %v5462, %v5473
        %v5486 = vadd.f32 %v5463, %v5473
        %v5487 = vadd.f32 %v5464, %v5473
        %v5488 = vadd.f32 %v5465, %v5473
        %v5489 = vadd.f32 %v5466, %v5473
        %v5490 = vadd.f32 %v5467, %v5473
        %5491 = vst [vmem:[%s788] sm:$0xff] %v5475
        %5492 = vst [vmem:[%s788 + $0x8] sm:$0xff] %v5476
        %5493 = vst [vmem:[%s788 + $0x10] sm:$0xff] %v5477
        %5494 = vst [vmem:[%s788 + $0x18] sm:$0xff] %v5478
        %5495 = vst [vmem:[%s788 + $0x20] sm:$0xff] %v5479
        %5496 = vst [vmem:[%s788 + $0x28] sm:$0xff] %v5480
        %5497 = vst [vmem:[%s788 + $0x30] sm:$0xff] %v5481
        %5498 = vst [vmem:[%s788 + $0x38] sm:$0xff] %v5482
        %5499 = vst [vmem:[%s788 + $0x40] sm:$0xff] %v5483
        %5500 = vst [vmem:[%s788 + $0x48] sm:$0xff] %v5484
        %5501 = vst [vmem:[%s788 + $0x50] sm:$0xff] %v5485
        %5502 = vst [vmem:[%s788 + $0x58] sm:$0xff] %v5486
        %5503 = vst [vmem:[%s788 + $0x60] sm:$0xff] %v5487
        %5504 = vst [vmem:[%s788 + $0x68] sm:$0xff] %v5488
        %5505 = vst [vmem:[%s788 + $0x70] sm:$0xff] %v5489
        %5506 = vst [vmem:[%s788 + $0x78] sm:$0xff] %v5490
        %s5507 = sand.u32 %s480, 1
        %s5508 = scalar_lea.sflag [#allocation8], %s5507
        %s5509 = sand.u32 %s480, 1
        %s5510 = smul.addr %s5509, 128
        %s5511 = scalar_lea.vmem [#allocation20], %s5510
        // Predicated region
        $region133: #{tpu_custom_call.1} parent=95 // pred_check
          %p5512 = pneg %p490
        $region134: #{tpu_custom_call.1} parent=95 // pred_check_branch
          %5514 = sbr.rel (%p5512) target = $region136
        $region135: #{tpu_custom_call.1} parent=95 // pred_region
          %s5515 = smul.u32 16, %s47
          %s5517 = ssub.s32 2048, 2048
          %5518 = vsyncadd %s5508, %s5517
          %s5519 = smul.addr %s46, 32
          %s5520 = sadd.s32 %s5515, %s5519
          %s5521 = smul.addr %s5520, 128
          %s5522 = scalar_lea.hbm %s19, %s5521
          %s5523 = sshll.u32 %s5511, 4
          %s5524 = int_to_ptr.vmem [resolvable:$true] %s5523
          %5529 = dma.vmem_to_hbm [thread:$0]  %s5524, 2048, %s5522, %s5508, 128, 128, 8
        $region136: #{tpu_custom_call.1} parent=95 // pred_fallthru
          _
      $region96: #{tpu_custom_call.1} parent=5 // pred_fallthru
        _
      %p5530 = scmp.le.s32.totalorder 2, %s37
      // Predicated region
      $region137: #{tpu_custom_call.1} parent=5 // pred_check
        %p5531 = pneg %p5530
      $region138: #{tpu_custom_call.1} parent=5 // pred_check_branch
        %5533 = sbr.rel (%p5531) target = $region140
      $region139: #{tpu_custom_call.1} parent=5 // pred_region
        %s5534 = ssub.s32 %s37, 2
        // Predicated region
        $region141: #{tpu_custom_call.1} parent=139 // pred_check
          %p5535 = pneg %p496
        $region142: #{tpu_custom_call.1} parent=139 // pred_check_branch
          %5537 = sbr.rel (%p5535) target = $region144
        $region143: #{tpu_custom_call.1} parent=139 // pred_region
          %s5538 = sand.u32 %s481, 1
          %s5539 = scalar_lea.sflag [#allocation8], %s5538
          %s5540 = sand.u32 %s481, 1
          %s5541 = smul.addr %s5540, 128
          %s5542 = scalar_lea.vmem [#allocation20], %s5541
          %5543 = dma.done %s5539, 2048
        $region144: #{tpu_custom_call.1} parent=139 // pred_fallthru
          _
      $region140: #{tpu_custom_call.1} parent=5 // pred_fallthru
        _
    $region6: #{tpu_custom_call.1} parent=1 // loop_footer
      %s41 = sadd.s32 1, %s37
    $region7: #{tpu_custom_call.1} parent=1 // loop_footer_branch
      %36 = sbr.rel target = $region3
    $region8: #{tpu_custom_call.1} parent=1 // loop_exit
      _
    %5544 = vsyncpa [#allocation7], 1
    %s5545 = scalar_lea.sflag [#allocation7], 1
    %5546 = vsyncpa %s5545, 1
    %5547 = vsyncpa [#allocation10], 1
    %s5548 = scalar_lea.sflag [#allocation10], 1
    %5549 = vsyncpa %s5548, 1
    %5550 = vsyncpa [#allocation13], 1
    %5551 = vsyncpa [#allocation16], 1
    %5552 = vsyncpa [#allocation19], 1
    %5553 = vsyncpa [#allocation8], 1
    %s5554 = scalar_lea.sflag [#allocation8], 1
    %5555 = vsyncpa %s5554, 1

</llo_original>
